<compile_context>
chip_gen: v7x
topology: tpu7x:2x2x1
jax: 0.10.0
libtpu: 0.0.40
codegen_flags: <defaults>
</compile_context>

<pallas_src>
import functools

import jax
import jax.numpy as jnp
from jax import lax
from jax.experimental import pallas as pl
from jax.experimental.pallas import tpu as pltpu


def _round_up(x, m):
    return ((x + m - 1) // m) * m


def _vmem_capacity_bytes():
    """Physical VMEM per TensorCore; conservative default if undetectable."""
    try:
        info = pltpu.get_tpu_info()
        cap = int(getattr(info, "vmem_capacity_bytes", 0) or 0)
        if cap > 0:
            return cap
    except Exception:
        pass
    return 64 * 1024 * 1024          # v7x per-TC value (smallest generation)


def _bf16_eup_ok():
    """bf16 transcendentals exist on v6e/v7x, not on v5e (or CPU interpret)."""
    try:
        kind = jax.devices()[0].device_kind.lower()
    except Exception:
        return False
    if "v5e" in kind or "v5 lite" in kind or "v5lite" in kind:
        return False
    return any(tag in kind for tag in ("v6", "v7", "trillium"))


def _choose_b_blk(B, S_pad, twoH_pad, H, itemsize, vmem_budget):
    """Batch block: multiple of 16, as big as the VMEM budget allows, but keep
    at least two grid steps when the batch permits (v7x megacore split)."""

    def footprint(b):
        enc_in = 2 * b * S_pad * twoH_pad * itemsize        # streamed enc, double-buffered
        f32_tmp = b * S_pad * (2 * H + twoH_pad) * 4        # enc_proj + tanh + weighted-sum temps
        outs = 2 * b * (twoH_pad + S_pad) * 4               # ctx + alphas, double-buffered
        weights = 2 * twoH_pad * H * itemsize + 2 * H * 4   # resident W_enc^T, v
        misc = 4 * b * (H + 8) * 4                          # dec_proj, lens, slack
        return enc_in + f32_tmp + outs + weights + misc

    b_ceil = _round_up(max(B, 1), 16)
    blk = 16
    while blk < b_ceil and footprint(blk + 16) <= vmem_budget:
        blk += 16
    blk = min(blk, b_ceil)
    if b_ceil >= 32:                                        # keep grid length >= 2
        blk = min(blk, max(16, _round_up(-(-B // 2), 16)))
    while blk > 16 and footprint(blk) > vmem_budget:
        blk -= 16
    return blk


def attention_kernel(dec_ref,      # VMEM [Bb, H]   f32   (precomputed dec projection)
                     enc_ref,      # VMEM [Bb, Sp, 2Hp]   compute dtype
                     len_ref,      # VMEM [Bb, 1]   int32
                     w_encT_ref,   # VMEM [2Hp, H]        compute dtype
                     v_ref,        # VMEM [1, H]    f32
                     ctx_ref,      # VMEM [Bb, 2Hp] f32
                     alpha_ref,    # VMEM [Bb, Sp]  f32
                     *, tanh_dtype):
    b_blk, S, twoH = enc_ref.shape
    H = w_encT_ref.shape[1]

    enc3 = enc_ref[...]                                           # (Bb, Sp, 2Hp)

    # Encoder projection: the one big MXU matmul, M = Bb*Sp, f32 accumulation.
    # (In a decode loop this is step-invariant and could be hoisted out of the
    # per-step kernel; kept here to match the module's single forward pass.)
    enc_proj = jnp.dot(enc3.reshape(b_blk * S, twoH), w_encT_ref[...],
                       preferred_element_type=jnp.float32)        # (Bb*Sp, H)

    pre = enc_proj.reshape(b_blk, S, H) + dec_ref[...][:, None, :]
    # tanh in bf16 on v6e/v7x (bf16 EUP), f32 elsewhere.
    t = jnp.tanh(pre.astype(tanh_dtype)).astype(jnp.float32)      # (Bb, Sp, H)

    # Energies: VPU multiply + lane reduction against v (no (S,H) transpose).
    v_f32 = v_ref[...].reshape(1, 1, H)
    e = jnp.sum(t * v_f32, axis=-1)                               # (Bb, Sp) f32

    # Sequence mask.  Finite fill (-1e30) instead of -inf so src_length == 0
    # cannot produce NaNs (the PyTorch reference would yield NaN there).
    pos = lax.broadcasted_iota(jnp.int32, (b_blk, S), 1)
    e = jnp.where(pos < len_ref[...], e, -1e30)

    # Numerically stable softmax with exact normalization (sum(alphas) == 1).
    m = jnp.max(e, axis=-1, keepdims=True)
    p = jnp.exp(e - m)
    alphas = p / jnp.sum(p, axis=-1, keepdims=True)               # (Bb, Sp) f32
    alpha_ref[...] = alphas

    # Context: weighted sum over source positions on VPU/XLU slots
    # (avoids b_blk separate M=1 MXU matmuls).
    ctx = jnp.sum(alphas[:, :, None] * enc3.astype(jnp.float32), axis=1)
    ctx_ref[...] = ctx                                            # (Bb, 2Hp) f32


def bahdanau_attention(dec_state, enc_state, src_length, w_enc, w_dec, v,
                       compute_dtype=jnp.bfloat16):
    B, S, twoH = enc_state.shape
    H = twoH // 2
    assert dec_state.shape == (B, 1, H)
    assert w_enc.shape == (H, twoH)
    assert w_dec.shape == (H, H)
    assert v.shape == (1, H)

    itemsize = jnp.dtype(compute_dtype).itemsize

    # Lane-dense padding: S and 2H up to multiples of 128.
    S_pad = _round_up(S, 128)
    twoH_pad = _round_up(twoH, 128)

    # Generation-aware VMEM budget / limit.
    vmem_cap = _vmem_capacity_bytes()
    vmem_limit = min(vmem_cap * 3 // 4, 100 * 1024 * 1024)
    vmem_budget = max(vmem_limit - (4 << 20), 8 << 20)

    B_BLK = _choose_b_blk(B, S_pad, twoH_pad, H, itemsize, vmem_budget)
    B_pad = B_BLK * pl.cdiv(B, B_BLK)

    tanh_dtype = compute_dtype if (compute_dtype == jnp.bfloat16
                                   and _bf16_eup_ok()) else jnp.float32

    # Layout plumbing + hoisted decoder projection (tiny M=B matmul done once
    # in XLA instead of once per grid step on the MXU).
    dec2 = dec_state.reshape(B, H).astype(compute_dtype)
    dec_proj = jnp.dot(dec2, w_dec.T.astype(compute_dtype),
                       preferred_element_type=jnp.float32)        # (B, H) f32
    enc3 = enc_state.astype(compute_dtype)
    w_encT = w_enc.T.astype(compute_dtype)                        # (2H, H)
    v_f32 = v.astype(jnp.float32)
    lens = jnp.maximum(src_length.astype(jnp.int32), 0).reshape(B, 1)

    dec_proj = jnp.pad(dec_proj, ((0, B_pad - B), (0, 0)))
    enc3 = jnp.pad(enc3, ((0, B_pad - B), (0, S_pad - S), (0, twoH_pad - twoH)))
    w_encT = jnp.pad(w_encT, ((0, twoH_pad - twoH), (0, 0)))
    lens = jnp.pad(lens, ((0, B_pad - B), (0, 0)), constant_values=1)

    grid = (B_pad // B_BLK,)

    grid_spec = pltpu.PrefetchScalarGridSpec(
        num_scalar_prefetch=0,
        grid=grid,
        in_specs=[
            pl.BlockSpec((B_BLK, H), lambda g: (g, 0)),                   # dec_proj
            pl.BlockSpec((B_BLK, S_pad, twoH_pad), lambda g: (g, 0, 0)),  # enc
            pl.BlockSpec((B_BLK, 1), lambda g: (g, 0)),                   # lengths
            pl.BlockSpec((twoH_pad, H), lambda g: (0, 0)),                # W_enc^T (resident)
            pl.BlockSpec((1, H), lambda g: (0, 0)),                       # v       (resident)
        ],
        out_specs=[
            pl.BlockSpec((B_BLK, twoH_pad), lambda g: (g, 0)),            # context (lane-dense)
            pl.BlockSpec((B_BLK, S_pad), lambda g: (g, 0)),               # alphas  (lane-dense)
        ],
    )

    ctx2, alphas2 = pl.pallas_call(
        functools.partial(attention_kernel, tanh_dtype=tanh_dtype),
        out_shape=(
            jax.ShapeDtypeStruct((B_pad, twoH_pad), jnp.float32),
            jax.ShapeDtypeStruct((B_pad, S_pad), jnp.float32),
        ),
        grid_spec=grid_spec,
        compiler_params=pltpu.CompilerParams(
            dimension_semantics=("parallel",),       # disjoint output blocks
            vmem_limit_bytes=int(vmem_limit),
        ),
    )(dec_proj, enc3, lens, w_encT, v_f32)

    context = ctx2[:B, :twoH].reshape(B, 1, twoH)
    alphas = alphas2[:B, :S].reshape(B, 1, S)
    return context, alphas


def reference(dec_state, enc_state, src_length, w_enc, w_dec, v):
    """Pure-JAX f32 reference mirroring the PyTorch module (finite mask fill)."""
    enc = jnp.einsum('bsk,hk->bsh', enc_state, w_enc)              # (B,S,H)
    dec = jnp.einsum('bqk,hk->bqh', dec_state, w_dec)              # (B,1,H)
    t = jnp.tanh(dec + enc)
    e = jnp.einsum('bsh,h->bs', t, v[0])[:, None, :]               # (B,1,S)
    S = enc_state.shape[1]
    mask = (jnp.arange(S)[None, :] < src_length[:, None])[:, None, :]
    e = jnp.where(mask, e, -1e30)
    alphas = jax.nn.softmax(e, axis=-1)                            # (B,1,S)
    context = jnp.einsum('bqs,bsh->bqh', alphas, enc_state)        # (B,1,2H)
    return context, alphas


if __name__ == "__main__":
    B, S, H = 2, 8, 32

    key = jax.random.PRNGKey(0)
    k1, k2, k3, k4, k5 = jax.random.split(key, 5)

    dec_state = jax.random.normal(k1, (B, 1, H), dtype=jnp.float32)
    enc_state = jax.random.normal(k2, (B, S, 2 * H), dtype=jnp.float32)
    src_length = jnp.array([5, 8], dtype=jnp.int32)

    # nn.Linear-style weights [out, in].
    w_enc = jax.random.normal(k3, (H, 2 * H), dtype=jnp.float32) * 0.1
    w_dec = jax.random.normal(k4, (H, H), dtype=jnp.float32) * 0.1
    v = jax.random.normal(k5, (1, H), dtype=jnp.float32) * 0.1

    ctx_ref, al_ref = reference(dec_state, enc_state, src_length, w_enc, w_dec, v)

    # bf16 compute path (default).
    context, alphas = bahdanau_attention(dec_state, enc_state, src_length,
                                         w_enc, w_dec, v,
                                         compute_dtype=jnp.bfloat16)
    jax.block_until_ready((context, alphas))
    assert context.shape == (B, 1, 2 * H) and alphas.shape == (B, 1, S)
    assert jnp.allclose(context, ctx_ref, atol=5e-2, rtol=5e-2)
    assert jnp.allclose(alphas, al_ref, atol=5e-2, rtol=5e-2)
    assert jnp.allclose(jnp.sum(alphas, axis=-1), 1.0, atol=1e-3)

    # f32 compute path: tight match with the module's full-precision semantics.
    ctx32, al32 = bahdanau_attention(dec_state, enc_state, src_length,
                                     w_enc, w_dec, v,
                                     compute_dtype=jnp.float32)
    jax.block_until_ready((ctx32, al32))
    assert jnp.allclose(ctx32, ctx_ref, atol=1e-3, rtol=1e-3)
    assert jnp.allclose(al32, al_ref, atol=1e-3, rtol=1e-3)
    assert jnp.allclose(jnp.sum(al32, axis=-1), 1.0, atol=1e-3)

    print("KERNEL_OK")
</pallas_src>

<mosaic_0001>
module attributes {stable_mosaic.version = 11 : i64} {
  func.func @attention_kernel(%arg0: i32, %arg1: memref<16x32xf32, #tpu.memory_space<vmem>>, %arg2: memref<16x128x128xbf16, #tpu.memory_space<vmem>>, %arg3: memref<16x1xi32, #tpu.memory_space<vmem>>, %arg4: memref<128x32xbf16, #tpu.memory_space<vmem>>, %arg5: memref<1x32xf32, #tpu.memory_space<vmem>>, %arg6: memref<16x128xf32, #tpu.memory_space<vmem>>, %arg7: memref<16x128xf32, #tpu.memory_space<vmem>>) attributes {dimension_semantics = [#tpu.dimension_semantics<parallel>], iteration_bounds = array<i64: 1>, scalar_prefetch = 0 : i64, scratch_operands = 0 : i64, tpu.core_type = #tpu.core_type<tc>, window_params = [{transform_indices = @transform_0, window_bounds = array<i64: 16, 32>}, {transform_indices = @transform_1, window_bounds = array<i64: 16, 128, 128>}, {transform_indices = @transform_2, window_bounds = array<i64: 16, 1>}, {pipeline_mode = #tpu.pipeline_mode<synchronous>, transform_indices = @transform_3, window_bounds = array<i64: 128, 32>}, {pipeline_mode = #tpu.pipeline_mode<synchronous>, transform_indices = @transform_4, window_bounds = array<i64: 1, 32>}, {transform_indices = @transform_5, window_bounds = array<i64: 16, 128>}, {transform_indices = @transform_6, window_bounds = array<i64: 16, 128>}]} {
    %c0 = arith.constant 0 : index
    %c0_0 = arith.constant 0 : index
    %c0_1 = arith.constant 0 : index
    %0 = vector.load %arg2[%c0, %c0_0, %c0_1] : memref<16x128x128xbf16, #tpu.memory_space<vmem>>, vector<16x128x128xbf16>
    %1 = vector.shape_cast %0 : vector<16x128x128xbf16> to vector<2048x128xbf16>
    %c0_2 = arith.constant 0 : index
    %c0_3 = arith.constant 0 : index
    %2 = vector.load %arg4[%c0_2, %c0_3] : memref<128x32xbf16, #tpu.memory_space<vmem>>, vector<128x32xbf16>
    %cst = arith.constant dense<0.000000e+00> : vector<2048x32xf32>
    %3 = tpu.matmul %1, %2, %cst {dimension_numbers = #tpu.dot_dimension_numbers<[1], [0], [0], [1], [0, 0, 1, 1], [], []>} : vector<2048x128xbf16>, vector<128x32xbf16>, vector<2048x32xf32> -> vector<2048x32xf32>
    %4 = vector.shape_cast %3 : vector<2048x32xf32> to vector<16x128x32xf32>
    %c0_4 = arith.constant 0 : index
    %c0_5 = arith.constant 0 : index
    %5 = vector.load %arg1[%c0_4, %c0_5] : memref<16x32xf32, #tpu.memory_space<vmem>>, vector<16x32xf32>
    %6 = vector.shape_cast %5 : vector<16x32xf32> to vector<16x1x32xf32>
    %7 = vector.broadcast %6 : vector<16x1x32xf32> to vector<16x128x32xf32>
    %8 = arith.addf %4, %7 : vector<16x128x32xf32>
    %9 = math.tanh %8 : vector<16x128x32xf32>
    %c0_6 = arith.constant 0 : index
    %c0_7 = arith.constant 0 : index
    %10 = vector.load %arg5[%c0_6, %c0_7] : memref<1x32xf32, #tpu.memory_space<vmem>>, vector<1x32xf32>
    %11 = vector.shape_cast %10 : vector<1x32xf32> to vector<1x1x32xf32>
    %12 = vector.broadcast %11 : vector<1x1x32xf32> to vector<16x128x32xf32>
    %13 = arith.mulf %9, %12 : vector<16x128x32xf32>
    %cst_8 = arith.constant dense<0.000000e+00> : vector<16x128xf32>
    %14 = vector.multi_reduction <add>, %13, %cst_8 [2] : vector<16x128x32xf32> to vector<16x128xf32>
    %15 = tpu.iota {dimensions = array<i32: 1>} : vector<16x128xi32>
    %c0_9 = arith.constant 0 : index
    %c0_10 = arith.constant 0 : index
    %16 = vector.load %arg3[%c0_9, %c0_10] : memref<16x1xi32, #tpu.memory_space<vmem>>, vector<16x1xi32>
    %17 = vector.broadcast %16 : vector<16x1xi32> to vector<16x128xi32>
    %18 = arith.cmpi slt, %15, %17 : vector<16x128xi32>
    %cst_11 = arith.constant -1.000000e+30 : f32
    %19 = vector.broadcast %cst_11 : f32 to vector<16x128xf32>
    %20 = arith.select %18, %14, %19 : vector<16x128xi1>, vector<16x128xf32>
    %cst_12 = arith.constant dense<0xFF800000> : vector<16xf32>
    %21 = vector.multi_reduction <maximumf>, %20, %cst_12 [1] : vector<16x128xf32> to vector<16xf32>
    %22 = vector.shape_cast %21 : vector<16xf32> to vector<16x1xf32>
    %23 = vector.broadcast %22 : vector<16x1xf32> to vector<16x128xf32>
    %24 = arith.subf %20, %23 : vector<16x128xf32>
    %25 = math.exp %24 : vector<16x128xf32>
    %cst_13 = arith.constant dense<0.000000e+00> : vector<16xf32>
    %26 = vector.multi_reduction <add>, %25, %cst_13 [1] : vector<16x128xf32> to vector<16xf32>
    %27 = vector.shape_cast %26 : vector<16xf32> to vector<16x1xf32>
    %28 = vector.broadcast %27 : vector<16x1xf32> to vector<16x128xf32>
    %29 = arith.divf %25, %28 : vector<16x128xf32>
    %c0_14 = arith.constant 0 : index
    %c0_15 = arith.constant 0 : index
    %30 = vector.load %arg7[%c0_14, %c0_15] : memref<16x128xf32, #tpu.memory_space<vmem>>, vector<16x128xf32>
    tpu.vector_store %arg7[%c0_14, %c0_15], %29 {strides = array<i32>} : memref<16x128xf32, #tpu.memory_space<vmem>>, vector<16x128xf32>,
    %31 = vector.shape_cast %29 : vector<16x128xf32> to vector<16x128x1xf32>
    %32 = arith.extf %0 : vector<16x128x128xbf16> to vector<16x128x128xf32>
    %33 = vector.broadcast %31 : vector<16x128x1xf32> to vector<16x128x128xf32>
    %34 = arith.mulf %33, %32 : vector<16x128x128xf32>
    %cst_16 = arith.constant dense<0.000000e+00> : vector<16x128xf32>
    %35 = vector.multi_reduction <add>, %34, %cst_16 [1] : vector<16x128x128xf32> to vector<16x128xf32>
    %c0_17 = arith.constant 0 : index
    %c0_18 = arith.constant 0 : index
    %36 = vector.load %arg6[%c0_17, %c0_18] : memref<16x128xf32, #tpu.memory_space<vmem>>, vector<16x128xf32>
    tpu.vector_store %arg6[%c0_17, %c0_18], %35 {strides = array<i32>} : memref<16x128xf32, #tpu.memory_space<vmem>>, vector<16x128xf32>,
    return
  }
  func.func @transform_0(%arg0: i32) -> (i32, i32) {
    %c0_i32 = arith.constant 0 : i32
    %c0_i32_0 = arith.constant 0 : i32
    return %arg0, %c0_i32 : i32, i32
  }
  func.func @transform_1(%arg0: i32) -> (i32, i32, i32) {
    %c0_i32 = arith.constant 0 : i32
    %c0_i32_0 = arith.constant 0 : i32
    %c0_i32_1 = arith.constant 0 : i32
    return %arg0, %c0_i32, %c0_i32_0 : i32, i32, i32
  }
  func.func @transform_2(%arg0: i32) -> (i32, i32) {
    %c0_i32 = arith.constant 0 : i32
    %c0_i32_0 = arith.constant 0 : i32
    return %arg0, %c0_i32 : i32, i32
  }
  func.func @transform_3(%arg0: i32) -> (i32, i32) {
    %c0_i32 = arith.constant 0 : i32
    %c0_i32_0 = arith.constant 0 : i32
    %c0_i32_1 = arith.constant 0 : i32
    return %c0_i32, %c0_i32_0 : i32, i32
  }
  func.func @transform_4(%arg0: i32) -> (i32, i32) {
    %c0_i32 = arith.constant 0 : i32
    %c0_i32_0 = arith.constant 0 : i32
    %c0_i32_1 = arith.constant 0 : i32
    return %c0_i32, %c0_i32_0 : i32, i32
  }
  func.func @transform_5(%arg0: i32) -> (i32, i32) {
    %c0_i32 = arith.constant 0 : i32
    %c0_i32_0 = arith.constant 0 : i32
    return %arg0, %c0_i32 : i32, i32
  }
  func.func @transform_6(%arg0: i32) -> (i32, i32) {
    %c0_i32 = arith.constant 0 : i32
    %c0_i32_0 = arith.constant 0 : i32
    return %arg0, %c0_i32 : i32, i32
  }
}

</mosaic_0001>

<llo_original>
// kernel: tpu_custom_call.1
$region0: #{tpu_custom_call.1}
  #allocation0 [shape = 'u32[]', space=smem, size = 0x4, offset = 0x4, fixed_abs, tag = 'smem constant byte address 0x4 - core index']
  #allocation1 [shape = 'u32[144,128]{1,0:T(1,128)}', space=vmem, size = 0x12000, scoped, tag = 'internal scratch']
  %s0 = inlined_call_operand.vmem [shape: f32[16,32], index: 0, kind: input, shape index: {}]
  %s1 = inlined_call_operand.hbm [shape: bf16[16,128,128], index: 1, kind: input, shape index: {}]
  %s2 = inlined_call_operand.vmem [shape: s32[16,1], index: 2, kind: input, shape index: {}]
  %s3 = inlined_call_operand.vmem [shape: bf16[128,32], index: 3, kind: input, shape index: {}]
  %s4 = inlined_call_operand.vmem [shape: f32[1,32], index: 4, kind: input, shape index: {}]
  %s5 = inlined_call_operand.hbm [shape: f32[16,128], index: 5, kind: output, shape index: {0}]
  %s6 = inlined_call_operand.hbm [shape: f32[16,128], index: 6, kind: output, shape index: {1}]
  %7 = xla_tuple %s5, %s6
  %s8 = sld [smem:[#allocation0]]
  $region42: #{tpu_custom_call.1} parent=0
    _
  %s10 = ssub.s32 1, %s8
  %s11 = scalar_select 0, %s10, %s8
  $region1: #{tpu_custom_call.1} parent=0
    #allocation2 [shape = 'u8[524288]{0}', space=vmem, size = 0x80000, scoped, tag = 'input window, operand 1, single buffered']
    #allocation3 [shape = 's32[1]{0}', space=sflag, size = 0x4, scoped, tag = 'scoped memory for tpu_custom_call.1']
    #allocation4 [shape = 's32[1]{0}', space=sflag, size = 0x4, scoped, tag = 'scoped memory for tpu_custom_call.1']
    #allocation5 [shape = 'u8[8192]{0}', space=vmem, size = 0x2000, scoped, tag = 'output window, operand 0, single buffered']
    #allocation6 [shape = 'u8[8192]{0}', space=vmem, size = 0x2000, scoped, tag = 'output window, operand 1, single buffered']
    #allocation7 [shape = 's32[1]{0}', space=sflag, size = 0x4, scoped, tag = 'scoped memory for tpu_custom_call.1']
    %12 = vsyncpa [#allocation3], 0
    %13 = vsyncpa [#allocation4], 0
    %14 = vsyncpa [#allocation7], 0
    // Predicated region
    $region2: #{tpu_custom_call.1} parent=1 // pred_check
      _
    $region3: #{tpu_custom_call.1} parent=1 // pred_check_branch
      %16 = sbr.rel (0) target = $region5
    $region4: #{tpu_custom_call.1} parent=1 // pred_region
      _
    $region5: #{tpu_custom_call.1} parent=1 // pred_fallthru
      _
    // Predicated region
    $region6: #{tpu_custom_call.1} parent=1 // pred_check
      _
    $region7: #{tpu_custom_call.1} parent=1 // pred_check_branch
      %18 = sbr.rel (0) target = $region9
    $region8: #{tpu_custom_call.1} parent=1 // pred_region
      %s20 = ssub.s32 16384, 16384
      %21 = vsyncadd [#allocation3], %s20
      %s22 = sshll.u32 [#allocation2], 4
      %s23 = int_to_ptr.vmem [resolvable:$true] %s22
      %28 = dma.hbm_to_vmem [thread:$0]  %s1, 16384, %s23, [#allocation3], 64, 64, 4
    $region9: #{tpu_custom_call.1} parent=1 // pred_fallthru
      _
    // Predicated region
    $region10: #{tpu_custom_call.1} parent=1 // pred_check
      _
    $region11: #{tpu_custom_call.1} parent=1 // pred_check_branch
      %30 = sbr.rel (0) target = $region13
    $region12: #{tpu_custom_call.1} parent=1 // pred_region
      _
    $region13: #{tpu_custom_call.1} parent=1 // pred_fallthru
      _
    // Predicated region
    $region14: #{tpu_custom_call.1} parent=1 // pred_check
      _
    $region15: #{tpu_custom_call.1} parent=1 // pred_check_branch
      %32 = sbr.rel (0) target = $region17
    $region16: #{tpu_custom_call.1} parent=1 // pred_region
      _
    $region17: #{tpu_custom_call.1} parent=1 // pred_fallthru
      _
    // Predicated region
    $region18: #{tpu_custom_call.1} parent=1 // pred_check
      _
    $region19: #{tpu_custom_call.1} parent=1 // pred_check_branch
      %34 = sbr.rel (0) target = $region21
    $region20: #{tpu_custom_call.1} parent=1 // pred_region
      _
    $region21: #{tpu_custom_call.1} parent=1 // pred_fallthru
      _
    // Predicated region
    $region22: #{tpu_custom_call.1} parent=1 // pred_check
      _
    $region23: #{tpu_custom_call.1} parent=1 // pred_check_branch
      %36 = sbr.rel (0) target = $region25
    $region24: #{tpu_custom_call.1} parent=1 // pred_region
      %37 = dma.done [#allocation3], 16384
    $region25: #{tpu_custom_call.1} parent=1 // pred_fallthru
      _
    %v39 = vld [vmem:[#allocation2] sm:$0xf]
    %v40 = vld [vmem:[#allocation2 + $0x4] sm:$0xf]
    %v41 = vld [vmem:[#allocation2 + $0x8] sm:$0xf]
    %v42 = vld [vmem:[#allocation2 + $0xc] sm:$0xf]
    %v43 = vld [vmem:[#allocation2 + $0x10] sm:$0xf]
    %v44 = vld [vmem:[#allocation2 + $0x14] sm:$0xf]
    %v45 = vld [vmem:[#allocation2 + $0x18] sm:$0xf]
    %v46 = vld [vmem:[#allocation2 + $0x1c] sm:$0xf]
    %v47 = vld [vmem:[#allocation2 + $0x20] sm:$0xf]
    %v48 = vld [vmem:[#allocation2 + $0x24] sm:$0xf]
    %v49 = vld [vmem:[#allocation2 + $0x28] sm:$0xf]
    %v50 = vld [vmem:[#allocation2 + $0x2c] sm:$0xf]
    %v51 = vld [vmem:[#allocation2 + $0x30] sm:$0xf]
    %v52 = vld [vmem:[#allocation2 + $0x34] sm:$0xf]
    %v53 = vld [vmem:[#allocation2 + $0x38] sm:$0xf]
    %v54 = vld [vmem:[#allocation2 + $0x3c] sm:$0xf]
    %v55 = vld [vmem:[#allocation2 + $0x40] sm:$0xf]
    %v56 = vld [vmem:[#allocation2 + $0x44] sm:$0xf]
    %v57 = vld [vmem:[#allocation2 + $0x48] sm:$0xf]
    %v58 = vld [vmem:[#allocation2 + $0x4c] sm:$0xf]
    %v59 = vld [vmem:[#allocation2 + $0x50] sm:$0xf]
    %v60 = vld [vmem:[#allocation2 + $0x54] sm:$0xf]
    %v61 = vld [vmem:[#allocation2 + $0x58] sm:$0xf]
    %v62 = vld [vmem:[#allocation2 + $0x5c] sm:$0xf]
    %v63 = vld [vmem:[#allocation2 + $0x60] sm:$0xf]
    %v64 = vld [vmem:[#allocation2 + $0x64] sm:$0xf]
    %v65 = vld [vmem:[#allocation2 + $0x68] sm:$0xf]
    %v66 = vld [vmem:[#allocation2 + $0x6c] sm:$0xf]
    %v67 = vld [vmem:[#allocation2 + $0x70] sm:$0xf]
    %v68 = vld [vmem:[#allocation2 + $0x74] sm:$0xf]
    %v69 = vld [vmem:[#allocation2 + $0x78] sm:$0xf]
    %v70 = vld [vmem:[#allocation2 + $0x7c] sm:$0xf]
    %v71 = vld [vmem:[#allocation2 + $0x80] sm:$0xf]
    %v72 = vld [vmem:[#allocation2 + $0x84] sm:$0xf]
    %v73 = vld [vmem:[#allocation2 + $0x88] sm:$0xf]
    %v74 = vld [vmem:[#allocation2 + $0x8c] sm:$0xf]
    %v75 = vld [vmem:[#allocation2 + $0x90] sm:$0xf]
    %v76 = vld [vmem:[#allocation2 + $0x94] sm:$0xf]
    %v77 = vld [vmem:[#allocation2 + $0x98] sm:$0xf]
    %v78 = vld [vmem:[#allocation2 + $0x9c] sm:$0xf]
    %v79 = vld [vmem:[#allocation2 + $0xa0] sm:$0xf]
    %v80 = vld [vmem:[#allocation2 + $0xa4] sm:$0xf]
    %v81 = vld [vmem:[#allocation2 + $0xa8] sm:$0xf]
    %v82 = vld [vmem:[#allocation2 + $0xac] sm:$0xf]
    %v83 = vld [vmem:[#allocation2 + $0xb0] sm:$0xf]
    %v84 = vld [vmem:[#allocation2 + $0xb4] sm:$0xf]
    %v85 = vld [vmem:[#allocation2 + $0xb8] sm:$0xf]
    %v86 = vld [vmem:[#allocation2 + $0xbc] sm:$0xf]
    %v87 = vld [vmem:[#allocation2 + $0xc0] sm:$0xf]
    %v88 = vld [vmem:[#allocation2 + $0xc4] sm:$0xf]
    %v89 = vld [vmem:[#allocation2 + $0xc8] sm:$0xf]
    %v90 = vld [vmem:[#allocation2 + $0xcc] sm:$0xf]
    %v91 = vld [vmem:[#allocation2 + $0xd0] sm:$0xf]
    %v92 = vld [vmem:[#allocation2 + $0xd4] sm:$0xf]
    %v93 = vld [vmem:[#allocation2 + $0xd8] sm:$0xf]
    %v94 = vld [vmem:[#allocation2 + $0xdc] sm:$0xf]
    %v95 = vld [vmem:[#allocation2 + $0xe0] sm:$0xf]
    %v96 = vld [vmem:[#allocation2 + $0xe4] sm:$0xf]
    %v97 = vld [vmem:[#allocation2 + $0xe8] sm:$0xf]
    %v98 = vld [vmem:[#allocation2 + $0xec] sm:$0xf]
    %v99 = vld [vmem:[#allocation2 + $0xf0] sm:$0xf]
    %v100 = vld [vmem:[#allocation2 + $0xf4] sm:$0xf]
    %v101 = vld [vmem:[#allocation2 + $0xf8] sm:$0xf]
    %v102 = vld [vmem:[#allocation2 + $0xfc] sm:$0xf]
    %v103 = vld [vmem:[#allocation2 + $0x100] sm:$0xf]
    %v104 = vld [vmem:[#allocation2 + $0x104] sm:$0xf]
    %v105 = vld [vmem:[#allocation2 + $0x108] sm:$0xf]
    %v106 = vld [vmem:[#allocation2 + $0x10c] sm:$0xf]
    %v107 = vld [vmem:[#allocation2 + $0x110] sm:$0xf]
    %v108 = vld [vmem:[#allocation2 + $0x114] sm:$0xf]
    %v109 = vld [vmem:[#allocation2 + $0x118] sm:$0xf]
    %v110 = vld [vmem:[#allocation2 + $0x11c] sm:$0xf]
    %v111 = vld [vmem:[#allocation2 + $0x120] sm:$0xf]
    %v112 = vld [vmem:[#allocation2 + $0x124] sm:$0xf]
    %v113 = vld [vmem:[#allocation2 + $0x128] sm:$0xf]
    %v114 = vld [vmem:[#allocation2 + $0x12c] sm:$0xf]
    %v115 = vld [vmem:[#allocation2 + $0x130] sm:$0xf]
    %v116 = vld [vmem:[#allocation2 + $0x134] sm:$0xf]
    %v117 = vld [vmem:[#allocation2 + $0x138] sm:$0xf]
    %v118 = vld [vmem:[#allocation2 + $0x13c] sm:$0xf]
    %v119 = vld [vmem:[#allocation2 + $0x140] sm:$0xf]
    %v120 = vld [vmem:[#allocation2 + $0x144] sm:$0xf]
    %v121 = vld [vmem:[#allocation2 + $0x148] sm:$0xf]
    %v122 = vld [vmem:[#allocation2 + $0x14c] sm:$0xf]
    %v123 = vld [vmem:[#allocation2 + $0x150] sm:$0xf]
    %v124 = vld [vmem:[#allocation2 + $0x154] sm:$0xf]
    %v125 = vld [vmem:[#allocation2 + $0x158] sm:$0xf]
    %v126 = vld [vmem:[#allocation2 + $0x15c] sm:$0xf]
    %v127 = vld [vmem:[#allocation2 + $0x160] sm:$0xf]
    %v128 = vld [vmem:[#allocation2 + $0x164] sm:$0xf]
    %v129 = vld [vmem:[#allocation2 + $0x168] sm:$0xf]
    %v130 = vld [vmem:[#allocation2 + $0x16c] sm:$0xf]
    %v131 = vld [vmem:[#allocation2 + $0x170] sm:$0xf]
    %v132 = vld [vmem:[#allocation2 + $0x174] sm:$0xf]
    %v133 = vld [vmem:[#allocation2 + $0x178] sm:$0xf]
    %v134 = vld [vmem:[#allocation2 + $0x17c] sm:$0xf]
    %v135 = vld [vmem:[#allocation2 + $0x180] sm:$0xf]
    %v136 = vld [vmem:[#allocation2 + $0x184] sm:$0xf]
    %v137 = vld [vmem:[#allocation2 + $0x188] sm:$0xf]
    %v138 = vld [vmem:[#allocation2 + $0x18c] sm:$0xf]
    %v139 = vld [vmem:[#allocation2 + $0x190] sm:$0xf]
    %v140 = vld [vmem:[#allocation2 + $0x194] sm:$0xf]
    %v141 = vld [vmem:[#allocation2 + $0x198] sm:$0xf]
    %v142 = vld [vmem:[#allocation2 + $0x19c] sm:$0xf]
    %v143 = vld [vmem:[#allocation2 + $0x1a0] sm:$0xf]
    %v144 = vld [vmem:[#allocation2 + $0x1a4] sm:$0xf]
    %v145 = vld [vmem:[#allocation2 + $0x1a8] sm:$0xf]
    %v146 = vld [vmem:[#allocation2 + $0x1ac] sm:$0xf]
    %v147 = vld [vmem:[#allocation2 + $0x1b0] sm:$0xf]
    %v148 = vld [vmem:[#allocation2 + $0x1b4] sm:$0xf]
    %v149 = vld [vmem:[#allocation2 + $0x1b8] sm:$0xf]
    %v150 = vld [vmem:[#allocation2 + $0x1bc] sm:$0xf]
    %v151 = vld [vmem:[#allocation2 + $0x1c0] sm:$0xf]
    %v152 = vld [vmem:[#allocation2 + $0x1c4] sm:$0xf]
    %v153 = vld [vmem:[#allocation2 + $0x1c8] sm:$0xf]
    %v154 = vld [vmem:[#allocation2 + $0x1cc] sm:$0xf]
    %v155 = vld [vmem:[#allocation2 + $0x1d0] sm:$0xf]
    %v156 = vld [vmem:[#allocation2 + $0x1d4] sm:$0xf]
    %v157 = vld [vmem:[#allocation2 + $0x1d8] sm:$0xf]
    %v158 = vld [vmem:[#allocation2 + $0x1dc] sm:$0xf]
    %v159 = vld [vmem:[#allocation2 + $0x1e0] sm:$0xf]
    %v160 = vld [vmem:[#allocation2 + $0x1e4] sm:$0xf]
    %v161 = vld [vmem:[#allocation2 + $0x1e8] sm:$0xf]
    %v162 = vld [vmem:[#allocation2 + $0x1ec] sm:$0xf]
    %v163 = vld [vmem:[#allocation2 + $0x1f0] sm:$0xf]
    %v164 = vld [vmem:[#allocation2 + $0x1f4] sm:$0xf]
    %v165 = vld [vmem:[#allocation2 + $0x1f8] sm:$0xf]
    %v166 = vld [vmem:[#allocation2 + $0x1fc] sm:$0xf]
    %v167 = vld [vmem:[#allocation2 + $0x200] sm:$0xf]
    %v168 = vld [vmem:[#allocation2 + $0x204] sm:$0xf]
    %v169 = vld [vmem:[#allocation2 + $0x208] sm:$0xf]
    %v170 = vld [vmem:[#allocation2 + $0x20c] sm:$0xf]
    %v171 = vld [vmem:[#allocation2 + $0x210] sm:$0xf]
    %v172 = vld [vmem:[#allocation2 + $0x214] sm:$0xf]
    %v173 = vld [vmem:[#allocation2 + $0x218] sm:$0xf]
    %v174 = vld [vmem:[#allocation2 + $0x21c] sm:$0xf]
    %v175 = vld [vmem:[#allocation2 + $0x220] sm:$0xf]
    %v176 = vld [vmem:[#allocation2 + $0x224] sm:$0xf]
    %v177 = vld [vmem:[#allocation2 + $0x228] sm:$0xf]
    %v178 = vld [vmem:[#allocation2 + $0x22c] sm:$0xf]
    %v179 = vld [vmem:[#allocation2 + $0x230] sm:$0xf]
    %v180 = vld [vmem:[#allocation2 + $0x234] sm:$0xf]
    %v181 = vld [vmem:[#allocation2 + $0x238] sm:$0xf]
    %v182 = vld [vmem:[#allocation2 + $0x23c] sm:$0xf]
    %v183 = vld [vmem:[#allocation2 + $0x240] sm:$0xf]
    %v184 = vld [vmem:[#allocation2 + $0x244] sm:$0xf]
    %v185 = vld [vmem:[#allocation2 + $0x248] sm:$0xf]
    %v186 = vld [vmem:[#allocation2 + $0x24c] sm:$0xf]
    %v187 = vld [vmem:[#allocation2 + $0x250] sm:$0xf]
    %v188 = vld [vmem:[#allocation2 + $0x254] sm:$0xf]
    %v189 = vld [vmem:[#allocation2 + $0x258] sm:$0xf]
    %v190 = vld [vmem:[#allocation2 + $0x25c] sm:$0xf]
    %v191 = vld [vmem:[#allocation2 + $0x260] sm:$0xf]
    %v192 = vld [vmem:[#allocation2 + $0x264] sm:$0xf]
    %v193 = vld [vmem:[#allocation2 + $0x268] sm:$0xf]
    %v194 = vld [vmem:[#allocation2 + $0x26c] sm:$0xf]
    %v195 = vld [vmem:[#allocation2 + $0x270] sm:$0xf]
    %v196 = vld [vmem:[#allocation2 + $0x274] sm:$0xf]
    %v197 = vld [vmem:[#allocation2 + $0x278] sm:$0xf]
    %v198 = vld [vmem:[#allocation2 + $0x27c] sm:$0xf]
    %v199 = vld [vmem:[#allocation2 + $0x280] sm:$0xf]
    %v200 = vld [vmem:[#allocation2 + $0x284] sm:$0xf]
    %v201 = vld [vmem:[#allocation2 + $0x288] sm:$0xf]
    %v202 = vld [vmem:[#allocation2 + $0x28c] sm:$0xf]
    %v203 = vld [vmem:[#allocation2 + $0x290] sm:$0xf]
    %v204 = vld [vmem:[#allocation2 + $0x294] sm:$0xf]
    %v205 = vld [vmem:[#allocation2 + $0x298] sm:$0xf]
    %v206 = vld [vmem:[#allocation2 + $0x29c] sm:$0xf]
    %v207 = vld [vmem:[#allocation2 + $0x2a0] sm:$0xf]
    %v208 = vld [vmem:[#allocation2 + $0x2a4] sm:$0xf]
    %v209 = vld [vmem:[#allocation2 + $0x2a8] sm:$0xf]
    %v210 = vld [vmem:[#allocation2 + $0x2ac] sm:$0xf]
    %v211 = vld [vmem:[#allocation2 + $0x2b0] sm:$0xf]
    %v212 = vld [vmem:[#allocation2 + $0x2b4] sm:$0xf]
    %v213 = vld [vmem:[#allocation2 + $0x2b8] sm:$0xf]
    %v214 = vld [vmem:[#allocation2 + $0x2bc] sm:$0xf]
    %v215 = vld [vmem:[#allocation2 + $0x2c0] sm:$0xf]
    %v216 = vld [vmem:[#allocation2 + $0x2c4] sm:$0xf]
    %v217 = vld [vmem:[#allocation2 + $0x2c8] sm:$0xf]
    %v218 = vld [vmem:[#allocation2 + $0x2cc] sm:$0xf]
    %v219 = vld [vmem:[#allocation2 + $0x2d0] sm:$0xf]
    %v220 = vld [vmem:[#allocation2 + $0x2d4] sm:$0xf]
    %v221 = vld [vmem:[#allocation2 + $0x2d8] sm:$0xf]
    %v222 = vld [vmem:[#allocation2 + $0x2dc] sm:$0xf]
    %v223 = vld [vmem:[#allocation2 + $0x2e0] sm:$0xf]
    %v224 = vld [vmem:[#allocation2 + $0x2e4] sm:$0xf]
    %v225 = vld [vmem:[#allocation2 + $0x2e8] sm:$0xf]
    %v226 = vld [vmem:[#allocation2 + $0x2ec] sm:$0xf]
    %v227 = vld [vmem:[#allocation2 + $0x2f0] sm:$0xf]
    %v228 = vld [vmem:[#allocation2 + $0x2f4] sm:$0xf]
    %v229 = vld [vmem:[#allocation2 + $0x2f8] sm:$0xf]
    %v230 = vld [vmem:[#allocation2 + $0x2fc] sm:$0xf]
    %v231 = vld [vmem:[#allocation2 + $0x300] sm:$0xf]
    %v232 = vld [vmem:[#allocation2 + $0x304] sm:$0xf]
    %v233 = vld [vmem:[#allocation2 + $0x308] sm:$0xf]
    %v234 = vld [vmem:[#allocation2 + $0x30c] sm:$0xf]
    %v235 = vld [vmem:[#allocation2 + $0x310] sm:$0xf]
    %v236 = vld [vmem:[#allocation2 + $0x314] sm:$0xf]
    %v237 = vld [vmem:[#allocation2 + $0x318] sm:$0xf]
    %v238 = vld [vmem:[#allocation2 + $0x31c] sm:$0xf]
    %v239 = vld [vmem:[#allocation2 + $0x320] sm:$0xf]
    %v240 = vld [vmem:[#allocation2 + $0x324] sm:$0xf]
    %v241 = vld [vmem:[#allocation2 + $0x328] sm:$0xf]
    %v242 = vld [vmem:[#allocation2 + $0x32c] sm:$0xf]
    %v243 = vld [vmem:[#allocation2 + $0x330] sm:$0xf]
    %v244 = vld [vmem:[#allocation2 + $0x334] sm:$0xf]
    %v245 = vld [vmem:[#allocation2 + $0x338] sm:$0xf]
    %v246 = vld [vmem:[#allocation2 + $0x33c] sm:$0xf]
    %v247 = vld [vmem:[#allocation2 + $0x340] sm:$0xf]
    %v248 = vld [vmem:[#allocation2 + $0x344] sm:$0xf]
    %v249 = vld [vmem:[#allocation2 + $0x348] sm:$0xf]
    %v250 = vld [vmem:[#allocation2 + $0x34c] sm:$0xf]
    %v251 = vld [vmem:[#allocation2 + $0x350] sm:$0xf]
    %v252 = vld [vmem:[#allocation2 + $0x354] sm:$0xf]
    %v253 = vld [vmem:[#allocation2 + $0x358] sm:$0xf]
    %v254 = vld [vmem:[#allocation2 + $0x35c] sm:$0xf]
    %v255 = vld [vmem:[#allocation2 + $0x360] sm:$0xf]
    %v256 = vld [vmem:[#allocation2 + $0x364] sm:$0xf]
    %v257 = vld [vmem:[#allocation2 + $0x368] sm:$0xf]
    %v258 = vld [vmem:[#allocation2 + $0x36c] sm:$0xf]
    %v259 = vld [vmem:[#allocation2 + $0x370] sm:$0xf]
    %v260 = vld [vmem:[#allocation2 + $0x374] sm:$0xf]
    %v261 = vld [vmem:[#allocation2 + $0x378] sm:$0xf]
    %v262 = vld [vmem:[#allocation2 + $0x37c] sm:$0xf]
    %v263 = vld [vmem:[#allocation2 + $0x380] sm:$0xf]
    %v264 = vld [vmem:[#allocation2 + $0x384] sm:$0xf]
    %v265 = vld [vmem:[#allocation2 + $0x388] sm:$0xf]
    %v266 = vld [vmem:[#allocation2 + $0x38c] sm:$0xf]
    %v267 = vld [vmem:[#allocation2 + $0x390] sm:$0xf]
    %v268 = vld [vmem:[#allocation2 + $0x394] sm:$0xf]
    %v269 = vld [vmem:[#allocation2 + $0x398] sm:$0xf]
    %v270 = vld [vmem:[#allocation2 + $0x39c] sm:$0xf]
    %v271 = vld [vmem:[#allocation2 + $0x3a0] sm:$0xf]
    %v272 = vld [vmem:[#allocation2 + $0x3a4] sm:$0xf]
    %v273 = vld [vmem:[#allocation2 + $0x3a8] sm:$0xf]
    %v274 = vld [vmem:[#allocation2 + $0x3ac] sm:$0xf]
    %v275 = vld [vmem:[#allocation2 + $0x3b0] sm:$0xf]
    %v276 = vld [vmem:[#allocation2 + $0x3b4] sm:$0xf]
    %v277 = vld [vmem:[#allocation2 + $0x3b8] sm:$0xf]
    %v278 = vld [vmem:[#allocation2 + $0x3bc] sm:$0xf]
    %v279 = vld [vmem:[#allocation2 + $0x3c0] sm:$0xf]
    %v280 = vld [vmem:[#allocation2 + $0x3c4] sm:$0xf]
    %v281 = vld [vmem:[#allocation2 + $0x3c8] sm:$0xf]
    %v282 = vld [vmem:[#allocation2 + $0x3cc] sm:$0xf]
    %v283 = vld [vmem:[#allocation2 + $0x3d0] sm:$0xf]
    %v284 = vld [vmem:[#allocation2 + $0x3d4] sm:$0xf]
    %v285 = vld [vmem:[#allocation2 + $0x3d8] sm:$0xf]
    %v286 = vld [vmem:[#allocation2 + $0x3dc] sm:$0xf]
    %v287 = vld [vmem:[#allocation2 + $0x3e0] sm:$0xf]
    %v288 = vld [vmem:[#allocation2 + $0x3e4] sm:$0xf]
    %v289 = vld [vmem:[#allocation2 + $0x3e8] sm:$0xf]
    %v290 = vld [vmem:[#allocation2 + $0x3ec] sm:$0xf]
    %v291 = vld [vmem:[#allocation2 + $0x3f0] sm:$0xf]
    %v292 = vld [vmem:[#allocation2 + $0x3f4] sm:$0xf]
    %v293 = vld [vmem:[#allocation2 + $0x3f8] sm:$0xf]
    %v294 = vld [vmem:[#allocation2 + $0x3fc] sm:$0xf]
    %v295 = vld [vmem:[%s3] sm:$0xf]
    %v296 = vld [vmem:[%s3 + $0x4] sm:$0xf]
    %v297 = vld [vmem:[%s3 + $0x8] sm:$0xf]
    %v298 = vld [vmem:[%s3 + $0xc] sm:$0xf]
    %v299 = vld [vmem:[%s3 + $0x10] sm:$0xf]
    %v300 = vld [vmem:[%s3 + $0x14] sm:$0xf]
    %v301 = vld [vmem:[%s3 + $0x18] sm:$0xf]
    %v302 = vld [vmem:[%s3 + $0x1c] sm:$0xf]
    %v303 = vld [vmem:[%s3 + $0x20] sm:$0xf]
    %v304 = vld [vmem:[%s3 + $0x24] sm:$0xf]
    %v305 = vld [vmem:[%s3 + $0x28] sm:$0xf]
    %v306 = vld [vmem:[%s3 + $0x2c] sm:$0xf]
    %v307 = vld [vmem:[%s3 + $0x30] sm:$0xf]
    %v308 = vld [vmem:[%s3 + $0x34] sm:$0xf]
    %v309 = vld [vmem:[%s3 + $0x38] sm:$0xf]
    %v310 = vld [vmem:[%s3 + $0x3c] sm:$0xf]
    %v567 = vunpack.c.l.b16 %v39
    %v568 = vunpack.c.l.b16 %v40
    %v569 = vunpack.c.l.b16 %v41
    %v570 = vunpack.c.l.b16 %v42
    %v571 = vunpack.c.l.b16 %v43
    %v572 = vunpack.c.l.b16 %v44
    %v573 = vunpack.c.l.b16 %v45
    %v574 = vunpack.c.l.b16 %v46
    %v575 = vunpack.c.l.b16 %v47
    %v576 = vunpack.c.l.b16 %v48
    %v577 = vunpack.c.l.b16 %v49
    %v578 = vunpack.c.l.b16 %v50
    %v579 = vunpack.c.l.b16 %v51
    %v580 = vunpack.c.l.b16 %v52
    %v581 = vunpack.c.l.b16 %v53
    %v582 = vunpack.c.l.b16 %v54
    %v583 = vunpack.c.l.b16 %v55
    %v584 = vunpack.c.l.b16 %v56
    %v585 = vunpack.c.l.b16 %v57
    %v586 = vunpack.c.l.b16 %v58
    %v587 = vunpack.c.l.b16 %v59
    %v588 = vunpack.c.l.b16 %v60
    %v589 = vunpack.c.l.b16 %v61
    %v590 = vunpack.c.l.b16 %v62
    %v591 = vunpack.c.l.b16 %v63
    %v592 = vunpack.c.l.b16 %v64
    %v593 = vunpack.c.l.b16 %v65
    %v594 = vunpack.c.l.b16 %v66
    %v595 = vunpack.c.l.b16 %v67
    %v596 = vunpack.c.l.b16 %v68
    %v597 = vunpack.c.l.b16 %v69
    %v598 = vunpack.c.l.b16 %v70
    %v599 = vunpack.c.l.b16 %v71
    %v600 = vunpack.c.l.b16 %v72
    %v601 = vunpack.c.l.b16 %v73
    %v602 = vunpack.c.l.b16 %v74
    %v603 = vunpack.c.l.b16 %v75
    %v604 = vunpack.c.l.b16 %v76
    %v605 = vunpack.c.l.b16 %v77
    %v606 = vunpack.c.l.b16 %v78
    %v607 = vunpack.c.l.b16 %v79
    %v608 = vunpack.c.l.b16 %v80
    %v609 = vunpack.c.l.b16 %v81
    %v610 = vunpack.c.l.b16 %v82
    %v611 = vunpack.c.l.b16 %v83
    %v612 = vunpack.c.l.b16 %v84
    %v613 = vunpack.c.l.b16 %v85
    %v614 = vunpack.c.l.b16 %v86
    %v615 = vunpack.c.l.b16 %v87
    %v616 = vunpack.c.l.b16 %v88
    %v617 = vunpack.c.l.b16 %v89
    %v618 = vunpack.c.l.b16 %v90
    %v619 = vunpack.c.l.b16 %v91
    %v620 = vunpack.c.l.b16 %v92
    %v621 = vunpack.c.l.b16 %v93
    %v622 = vunpack.c.l.b16 %v94
    %v623 = vunpack.c.l.b16 %v95
    %v624 = vunpack.c.l.b16 %v96
    %v625 = vunpack.c.l.b16 %v97
    %v626 = vunpack.c.l.b16 %v98
    %v627 = vunpack.c.l.b16 %v99
    %v628 = vunpack.c.l.b16 %v100
    %v629 = vunpack.c.l.b16 %v101
    %v630 = vunpack.c.l.b16 %v102
    %v631 = vunpack.c.l.b16 %v103
    %v632 = vunpack.c.l.b16 %v104
    %v633 = vunpack.c.l.b16 %v105
    %v634 = vunpack.c.l.b16 %v106
    %v635 = vunpack.c.l.b16 %v107
    %v636 = vunpack.c.l.b16 %v108
    %v637 = vunpack.c.l.b16 %v109
    %v638 = vunpack.c.l.b16 %v110
    %v639 = vunpack.c.l.b16 %v111
    %v640 = vunpack.c.l.b16 %v112
    %v641 = vunpack.c.l.b16 %v113
    %v642 = vunpack.c.l.b16 %v114
    %v643 = vunpack.c.l.b16 %v115
    %v644 = vunpack.c.l.b16 %v116
    %v645 = vunpack.c.l.b16 %v117
    %v646 = vunpack.c.l.b16 %v118
    %v647 = vunpack.c.l.b16 %v119
    %v648 = vunpack.c.l.b16 %v120
    %v649 = vunpack.c.l.b16 %v121
    %v650 = vunpack.c.l.b16 %v122
    %v651 = vunpack.c.l.b16 %v123
    %v652 = vunpack.c.l.b16 %v124
    %v653 = vunpack.c.l.b16 %v125
    %v654 = vunpack.c.l.b16 %v126
    %v655 = vunpack.c.l.b16 %v127
    %v656 = vunpack.c.l.b16 %v128
    %v657 = vunpack.c.l.b16 %v129
    %v658 = vunpack.c.l.b16 %v130
    %v659 = vunpack.c.l.b16 %v131
    %v660 = vunpack.c.l.b16 %v132
    %v661 = vunpack.c.l.b16 %v133
    %v662 = vunpack.c.l.b16 %v134
    %v663 = vunpack.c.l.b16 %v135
    %v664 = vunpack.c.l.b16 %v136
    %v665 = vunpack.c.l.b16 %v137
    %v666 = vunpack.c.l.b16 %v138
    %v667 = vunpack.c.l.b16 %v139
    %v668 = vunpack.c.l.b16 %v140
    %v669 = vunpack.c.l.b16 %v141
    %v670 = vunpack.c.l.b16 %v142
    %v671 = vunpack.c.l.b16 %v143
    %v672 = vunpack.c.l.b16 %v144
    %v673 = vunpack.c.l.b16 %v145
    %v674 = vunpack.c.l.b16 %v146
    %v675 = vunpack.c.l.b16 %v147
    %v676 = vunpack.c.l.b16 %v148
    %v677 = vunpack.c.l.b16 %v149
    %v678 = vunpack.c.l.b16 %v150
    %v679 = vunpack.c.l.b16 %v151
    %v680 = vunpack.c.l.b16 %v152
    %v681 = vunpack.c.l.b16 %v153
    %v682 = vunpack.c.l.b16 %v154
    %v683 = vunpack.c.l.b16 %v155
    %v684 = vunpack.c.l.b16 %v156
    %v685 = vunpack.c.l.b16 %v157
    %v686 = vunpack.c.l.b16 %v158
    %v687 = vunpack.c.l.b16 %v159
    %v688 = vunpack.c.l.b16 %v160
    %v689 = vunpack.c.l.b16 %v161
    %v690 = vunpack.c.l.b16 %v162
    %v691 = vunpack.c.l.b16 %v163
    %v692 = vunpack.c.l.b16 %v164
    %v693 = vunpack.c.l.b16 %v165
    %v694 = vunpack.c.l.b16 %v166
    %v695 = vunpack.c.l.b16 %v167
    %v696 = vunpack.c.l.b16 %v168
    %v697 = vunpack.c.l.b16 %v169
    %v698 = vunpack.c.l.b16 %v170
    %v699 = vunpack.c.l.b16 %v171
    %v700 = vunpack.c.l.b16 %v172
    %v701 = vunpack.c.l.b16 %v173
    %v702 = vunpack.c.l.b16 %v174
    %v703 = vunpack.c.l.b16 %v175
    %v704 = vunpack.c.l.b16 %v176
    %v705 = vunpack.c.l.b16 %v177
    %v706 = vunpack.c.l.b16 %v178
    %v707 = vunpack.c.l.b16 %v179
    %v708 = vunpack.c.l.b16 %v180
    %v709 = vunpack.c.l.b16 %v181
    %v710 = vunpack.c.l.b16 %v182
    %v711 = vunpack.c.l.b16 %v183
    %v712 = vunpack.c.l.b16 %v184
    %v713 = vunpack.c.l.b16 %v185
    %v714 = vunpack.c.l.b16 %v186
    %v715 = vunpack.c.l.b16 %v187
    %v716 = vunpack.c.l.b16 %v188
    %v717 = vunpack.c.l.b16 %v189
    %v718 = vunpack.c.l.b16 %v190
    %v719 = vunpack.c.l.b16 %v191
    %v720 = vunpack.c.l.b16 %v192
    %v721 = vunpack.c.l.b16 %v193
    %v722 = vunpack.c.l.b16 %v194
    %v723 = vunpack.c.l.b16 %v195
    %v724 = vunpack.c.l.b16 %v196
    %v725 = vunpack.c.l.b16 %v197
    %v726 = vunpack.c.l.b16 %v198
    %v727 = vunpack.c.l.b16 %v199
    %v728 = vunpack.c.l.b16 %v200
    %v729 = vunpack.c.l.b16 %v201
    %v730 = vunpack.c.l.b16 %v202
    %v731 = vunpack.c.l.b16 %v203
    %v732 = vunpack.c.l.b16 %v204
    %v733 = vunpack.c.l.b16 %v205
    %v734 = vunpack.c.l.b16 %v206
    %v735 = vunpack.c.l.b16 %v207
    %v736 = vunpack.c.l.b16 %v208
    %v737 = vunpack.c.l.b16 %v209
    %v738 = vunpack.c.l.b16 %v210
    %v739 = vunpack.c.l.b16 %v211
    %v740 = vunpack.c.l.b16 %v212
    %v741 = vunpack.c.l.b16 %v213
    %v742 = vunpack.c.l.b16 %v214
    %v743 = vunpack.c.l.b16 %v215
    %v744 = vunpack.c.l.b16 %v216
    %v745 = vunpack.c.l.b16 %v217
    %v746 = vunpack.c.l.b16 %v218
    %v747 = vunpack.c.l.b16 %v219
    %v748 = vunpack.c.l.b16 %v220
    %v749 = vunpack.c.l.b16 %v221
    %v750 = vunpack.c.l.b16 %v222
    %v751 = vunpack.c.l.b16 %v223
    %v752 = vunpack.c.l.b16 %v224
    %v753 = vunpack.c.l.b16 %v225
    %v754 = vunpack.c.l.b16 %v226
    %v755 = vunpack.c.l.b16 %v227
    %v756 = vunpack.c.l.b16 %v228
    %v757 = vunpack.c.l.b16 %v229
    %v758 = vunpack.c.l.b16 %v230
    %v759 = vunpack.c.l.b16 %v231
    %v760 = vunpack.c.l.b16 %v232
    %v761 = vunpack.c.l.b16 %v233
    %v762 = vunpack.c.l.b16 %v234
    %v763 = vunpack.c.l.b16 %v235
    %v764 = vunpack.c.l.b16 %v236
    %v765 = vunpack.c.l.b16 %v237
    %v766 = vunpack.c.l.b16 %v238
    %v767 = vunpack.c.l.b16 %v239
    %v768 = vunpack.c.l.b16 %v240
    %v769 = vunpack.c.l.b16 %v241
    %v770 = vunpack.c.l.b16 %v242
    %v771 = vunpack.c.l.b16 %v243
    %v772 = vunpack.c.l.b16 %v244
    %v773 = vunpack.c.l.b16 %v245
    %v774 = vunpack.c.l.b16 %v246
    %v775 = vunpack.c.l.b16 %v247
    %v776 = vunpack.c.l.b16 %v248
    %v777 = vunpack.c.l.b16 %v249
    %v778 = vunpack.c.l.b16 %v250
    %v779 = vunpack.c.l.b16 %v251
    %v780 = vunpack.c.l.b16 %v252
    %v781 = vunpack.c.l.b16 %v253
    %v782 = vunpack.c.l.b16 %v254
    %v783 = vunpack.c.l.b16 %v255
    %v784 = vunpack.c.l.b16 %v256
    %v785 = vunpack.c.l.b16 %v257
    %v786 = vunpack.c.l.b16 %v258
    %v787 = vunpack.c.l.b16 %v259
    %v788 = vunpack.c.l.b16 %v260
    %v789 = vunpack.c.l.b16 %v261
    %v790 = vunpack.c.l.b16 %v262
    %v791 = vunpack.c.l.b16 %v263
    %v792 = vunpack.c.l.b16 %v264
    %v793 = vunpack.c.l.b16 %v265
    %v794 = vunpack.c.l.b16 %v266
    %v795 = vunpack.c.l.b16 %v267
    %v796 = vunpack.c.l.b16 %v268
    %v797 = vunpack.c.l.b16 %v269
    %v798 = vunpack.c.l.b16 %v270
    %v799 = vunpack.c.l.b16 %v271
    %v800 = vunpack.c.l.b16 %v272
    %v801 = vunpack.c.l.b16 %v273
    %v802 = vunpack.c.l.b16 %v274
    %v803 = vunpack.c.l.b16 %v275
    %v804 = vunpack.c.l.b16 %v276
    %v805 = vunpack.c.l.b16 %v277
    %v806 = vunpack.c.l.b16 %v278
    %v807 = vunpack.c.l.b16 %v279
    %v808 = vunpack.c.l.b16 %v280
    %v809 = vunpack.c.l.b16 %v281
    %v810 = vunpack.c.l.b16 %v282
    %v811 = vunpack.c.l.b16 %v283
    %v812 = vunpack.c.l.b16 %v284
    %v813 = vunpack.c.l.b16 %v285
    %v814 = vunpack.c.l.b16 %v286
    %v815 = vunpack.c.l.b16 %v287
    %v816 = vunpack.c.l.b16 %v288
    %v817 = vunpack.c.l.b16 %v289
    %v818 = vunpack.c.l.b16 %v290
    %v819 = vunpack.c.l.b16 %v291
    %v820 = vunpack.c.l.b16 %v292
    %v821 = vunpack.c.l.b16 %v293
    %v822 = vunpack.c.l.b16 %v294
    %v823 = vpack.c.b16 %v568, %v567
    %v824 = vpack.c.b16 %v570, %v569
    %v825 = vpack.c.b16 %v572, %v571
    %v826 = vpack.c.b16 %v574, %v573
    %v827 = vpack.c.b16 %v576, %v575
    %v828 = vpack.c.b16 %v578, %v577
    %v829 = vpack.c.b16 %v580, %v579
    %v830 = vpack.c.b16 %v582, %v581
    %v831 = vpack.c.b16 %v584, %v583
    %v832 = vpack.c.b16 %v586, %v585
    %v833 = vpack.c.b16 %v588, %v587
    %v834 = vpack.c.b16 %v590, %v589
    %v835 = vpack.c.b16 %v592, %v591
    %v836 = vpack.c.b16 %v594, %v593
    %v837 = vpack.c.b16 %v596, %v595
    %v838 = vpack.c.b16 %v598, %v597
    %v839 = vpack.c.b16 %v600, %v599
    %v840 = vpack.c.b16 %v602, %v601
    %v841 = vpack.c.b16 %v604, %v603
    %v842 = vpack.c.b16 %v606, %v605
    %v843 = vpack.c.b16 %v608, %v607
    %v844 = vpack.c.b16 %v610, %v609
    %v845 = vpack.c.b16 %v612, %v611
    %v846 = vpack.c.b16 %v614, %v613
    %v847 = vpack.c.b16 %v616, %v615
    %v848 = vpack.c.b16 %v618, %v617
    %v849 = vpack.c.b16 %v620, %v619
    %v850 = vpack.c.b16 %v622, %v621
    %v851 = vpack.c.b16 %v624, %v623
    %v852 = vpack.c.b16 %v626, %v625
    %v853 = vpack.c.b16 %v628, %v627
    %v854 = vpack.c.b16 %v630, %v629
    %v855 = vpack.c.b16 %v632, %v631
    %v856 = vpack.c.b16 %v634, %v633
    %v857 = vpack.c.b16 %v636, %v635
    %v858 = vpack.c.b16 %v638, %v637
    %v859 = vpack.c.b16 %v640, %v639
    %v860 = vpack.c.b16 %v642, %v641
    %v861 = vpack.c.b16 %v644, %v643
    %v862 = vpack.c.b16 %v646, %v645
    %v863 = vpack.c.b16 %v648, %v647
    %v864 = vpack.c.b16 %v650, %v649
    %v865 = vpack.c.b16 %v652, %v651
    %v866 = vpack.c.b16 %v654, %v653
    %v867 = vpack.c.b16 %v656, %v655
    %v868 = vpack.c.b16 %v658, %v657
    %v869 = vpack.c.b16 %v660, %v659
    %v870 = vpack.c.b16 %v662, %v661
    %v871 = vpack.c.b16 %v664, %v663
    %v872 = vpack.c.b16 %v666, %v665
    %v873 = vpack.c.b16 %v668, %v667
    %v874 = vpack.c.b16 %v670, %v669
    %v875 = vpack.c.b16 %v672, %v671
    %v876 = vpack.c.b16 %v674, %v673
    %v877 = vpack.c.b16 %v676, %v675
    %v878 = vpack.c.b16 %v678, %v677
    %v879 = vpack.c.b16 %v680, %v679
    %v880 = vpack.c.b16 %v682, %v681
    %v881 = vpack.c.b16 %v684, %v683
    %v882 = vpack.c.b16 %v686, %v685
    %v883 = vpack.c.b16 %v688, %v687
    %v884 = vpack.c.b16 %v690, %v689
    %v885 = vpack.c.b16 %v692, %v691
    %v886 = vpack.c.b16 %v694, %v693
    %v887 = vpack.c.b16 %v696, %v695
    %v888 = vpack.c.b16 %v698, %v697
    %v889 = vpack.c.b16 %v700, %v699
    %v890 = vpack.c.b16 %v702, %v701
    %v891 = vpack.c.b16 %v704, %v703
    %v892 = vpack.c.b16 %v706, %v705
    %v893 = vpack.c.b16 %v708, %v707
    %v894 = vpack.c.b16 %v710, %v709
    %v895 = vpack.c.b16 %v712, %v711
    %v896 = vpack.c.b16 %v714, %v713
    %v897 = vpack.c.b16 %v716, %v715
    %v898 = vpack.c.b16 %v718, %v717
    %v899 = vpack.c.b16 %v720, %v719
    %v900 = vpack.c.b16 %v722, %v721
    %v901 = vpack.c.b16 %v724, %v723
    %v902 = vpack.c.b16 %v726, %v725
    %v903 = vpack.c.b16 %v728, %v727
    %v904 = vpack.c.b16 %v730, %v729
    %v905 = vpack.c.b16 %v732, %v731
    %v906 = vpack.c.b16 %v734, %v733
    %v907 = vpack.c.b16 %v736, %v735
    %v908 = vpack.c.b16 %v738, %v737
    %v909 = vpack.c.b16 %v740, %v739
    %v910 = vpack.c.b16 %v742, %v741
    %v911 = vpack.c.b16 %v744, %v743
    %v912 = vpack.c.b16 %v746, %v745
    %v913 = vpack.c.b16 %v748, %v747
    %v914 = vpack.c.b16 %v750, %v749
    %v915 = vpack.c.b16 %v752, %v751
    %v916 = vpack.c.b16 %v754, %v753
    %v917 = vpack.c.b16 %v756, %v755
    %v918 = vpack.c.b16 %v758, %v757
    %v919 = vpack.c.b16 %v760, %v759
    %v920 = vpack.c.b16 %v762, %v761
    %v921 = vpack.c.b16 %v764, %v763
    %v922 = vpack.c.b16 %v766, %v765
    %v923 = vpack.c.b16 %v768, %v767
    %v924 = vpack.c.b16 %v770, %v769
    %v925 = vpack.c.b16 %v772, %v771
    %v926 = vpack.c.b16 %v774, %v773
    %v927 = vpack.c.b16 %v776, %v775
    %v928 = vpack.c.b16 %v778, %v777
    %v929 = vpack.c.b16 %v780, %v779
    %v930 = vpack.c.b16 %v782, %v781
    %v931 = vpack.c.b16 %v784, %v783
    %v932 = vpack.c.b16 %v786, %v785
    %v933 = vpack.c.b16 %v788, %v787
    %v934 = vpack.c.b16 %v790, %v789
    %v935 = vpack.c.b16 %v792, %v791
    %v936 = vpack.c.b16 %v794, %v793
    %v937 = vpack.c.b16 %v796, %v795
    %v938 = vpack.c.b16 %v798, %v797
    %v939 = vpack.c.b16 %v800, %v799
    %v940 = vpack.c.b16 %v802, %v801
    %v941 = vpack.c.b16 %v804, %v803
    %v942 = vpack.c.b16 %v806, %v805
    %v943 = vpack.c.b16 %v808, %v807
    %v944 = vpack.c.b16 %v810, %v809
    %v945 = vpack.c.b16 %v812, %v811
    %v946 = vpack.c.b16 %v814, %v813
    %v947 = vpack.c.b16 %v816, %v815
    %v948 = vpack.c.b16 %v818, %v817
    %v949 = vpack.c.b16 %v820, %v819
    %v950 = vpack.c.b16 %v822, %v821
    %v1095 = vunpack.c.l.b16 %v295
    %v1096 = vunpack.c.l.b16 %v296
    %v1097 = vunpack.c.l.b16 %v297
    %v1098 = vunpack.c.l.b16 %v298
    %v1099 = vunpack.c.l.b16 %v299
    %v1100 = vunpack.c.l.b16 %v300
    %v1101 = vunpack.c.l.b16 %v301
    %v1102 = vunpack.c.l.b16 %v302
    %v1103 = vunpack.c.l.b16 %v303
    %v1104 = vunpack.c.l.b16 %v304
    %v1105 = vunpack.c.l.b16 %v305
    %v1106 = vunpack.c.l.b16 %v306
    %v1107 = vunpack.c.l.b16 %v307
    %v1108 = vunpack.c.l.b16 %v308
    %v1109 = vunpack.c.l.b16 %v309
    %v1110 = vunpack.c.l.b16 %v310
    %v1111 = vpack.c.b16 %v1096, %v1095
    %v1112 = vpack.c.b16 %v1098, %v1097
    %v1113 = vpack.c.b16 %v1100, %v1099
    %v1114 = vpack.c.b16 %v1102, %v1101
    %v1115 = vpack.c.b16 %v1104, %v1103
    %v1116 = vpack.c.b16 %v1106, %v1105
    %v1117 = vpack.c.b16 %v1108, %v1107
    %v1118 = vpack.c.b16 %v1110, %v1109
    %1127 = vmatprep.subr.bf16.mxu0 0
    %1128 = vmatpush1.bf16.msra.mxu0 %v1111
    %1129 = vmatprep.subr.bf16.mxu0 0
    %1130 = vmatpush1.bf16.msra.mxu0 %v1112
    %1131 = vmatprep.subr.bf16.mxu0 0
    %1132 = vmatpush1.bf16.msra.mxu0 %v1113
    %1133 = vmatprep.subr.bf16.mxu0 0
    %1134 = vmatpush1.bf16.msra.mxu0 %v1114
    %1135 = vmatprep.subr.bf16.mxu0 0
    %1136 = vmatpush1.bf16.msra.mxu0 %v1115
    %1137 = vmatprep.subr.bf16.mxu0 0
    %1138 = vmatpush1.bf16.msra.mxu0 %v1116
    %1139 = vmatprep.subr.bf16.mxu0 0
    %1140 = vmatpush1.bf16.msra.mxu0 %v1117
    %1141 = vmatprep.subr.bf16.mxu0 0
    %1142 = vmatpush1.bf16.msra.mxu0 %v1118
    %1143 = vmatprep.subr.bf16.mxu0 0
    %1144 = vmatpush1.bf16.msra.mxu0 0
    %1145 = vmatprep.subr.bf16.mxu0 0
    %1146 = vmatpush1.bf16.msra.mxu0 0
    %1147 = vmatprep.subr.bf16.mxu0 0
    %1148 = vmatpush1.bf16.msra.mxu0 0
    %1149 = vmatprep.subr.bf16.mxu0 0
    %1150 = vmatpush1.bf16.msra.mxu0 0
    %1151 = vmatprep.subr.bf16.mxu0 0
    %1152 = vmatpush1.bf16.msra.mxu0 0
    %1153 = vmatprep.subr.bf16.mxu0 0
    %1154 = vmatpush1.bf16.msra.mxu0 0
    %1155 = vmatprep.subr.bf16.mxu0 0
    %1156 = vmatpush1.bf16.msra.mxu0 0
    %1157 = vmatprep.subr.bf16.mxu0 0
    %1158 = vmatpush1.bf16.msra.mxu0 0
    %1159 = vmatprep.mubr.bf16.mxu0 0
    %1160 = vmatmul.mubr.bf16.gmra.mrb[0].mxu0 %v823
    %v1161 = vpop.f32.mrb[0].mxu0
    %v1162 = vadd.f32 0.0, %v1161
    %v1163 = vpop.f32.mrb[0].mxu0
    %v1164 = vpop.f32.mrb[0].mxu0
    %v1165 = vadd.f32 0.0, %v1164
    %v1166 = vpop.f32.mrb[0].mxu0
    %1167 = vmatprep.mubr.bf16.mxu0 0
    %1168 = vmatmul.mubr.bf16.gmra.mrb[0].mxu0 %v824
    %v1169 = vpop.f32.mrb[0].mxu0
    %v1170 = vadd.f32 0.0, %v1169
    %v1171 = vpop.f32.mrb[0].mxu0
    %v1172 = vpop.f32.mrb[0].mxu0
    %v1173 = vadd.f32 0.0, %v1172
    %v1174 = vpop.f32.mrb[0].mxu0
    %1175 = vmatprep.mubr.bf16.mxu0 0
    %1176 = vmatmul.mubr.bf16.gmra.mrb[0].mxu0 %v825
    %v1177 = vpop.f32.mrb[0].mxu0
    %v1178 = vadd.f32 0.0, %v1177
    %v1179 = vpop.f32.mrb[0].mxu0
    %v1180 = vpop.f32.mrb[0].mxu0
    %v1181 = vadd.f32 0.0, %v1180
    %v1182 = vpop.f32.mrb[0].mxu0
    %1183 = vmatprep.mubr.bf16.mxu0 0
    %1184 = vmatmul.mubr.bf16.gmra.mrb[0].mxu0 %v826
    %v1185 = vpop.f32.mrb[0].mxu0
    %v1186 = vadd.f32 0.0, %v1185
    %v1187 = vpop.f32.mrb[0].mxu0
    %v1188 = vpop.f32.mrb[0].mxu0
    %v1189 = vadd.f32 0.0, %v1188
    %v1190 = vpop.f32.mrb[0].mxu0
    %1191 = vmatprep.mubr.bf16.mxu0 0
    %1192 = vmatmul.mubr.bf16.gmra.mrb[0].mxu0 %v827
    %v1193 = vpop.f32.mrb[0].mxu0
    %v1194 = vadd.f32 0.0, %v1193
    %v1195 = vpop.f32.mrb[0].mxu0
    %v1196 = vpop.f32.mrb[0].mxu0
    %v1197 = vadd.f32 0.0, %v1196
    %v1198 = vpop.f32.mrb[0].mxu0
    %1199 = vmatprep.mubr.bf16.mxu0 0
    %1200 = vmatmul.mubr.bf16.gmra.mrb[0].mxu0 %v828
    %v1201 = vpop.f32.mrb[0].mxu0
    %v1202 = vadd.f32 0.0, %v1201
    %v1203 = vpop.f32.mrb[0].mxu0
    %v1204 = vpop.f32.mrb[0].mxu0
    %v1205 = vadd.f32 0.0, %v1204
    %v1206 = vpop.f32.mrb[0].mxu0
    %1207 = vmatprep.mubr.bf16.mxu0 0
    %1208 = vmatmul.mubr.bf16.gmra.mrb[0].mxu0 %v829
    %v1209 = vpop.f32.mrb[0].mxu0
    %v1210 = vadd.f32 0.0, %v1209
    %v1211 = vpop.f32.mrb[0].mxu0
    %v1212 = vpop.f32.mrb[0].mxu0
    %v1213 = vadd.f32 0.0, %v1212
    %v1214 = vpop.f32.mrb[0].mxu0
    %1215 = vmatprep.mubr.bf16.mxu0 0
    %1216 = vmatmul.mubr.bf16.gmra.mrb[0].mxu0 %v830
    %v1217 = vpop.f32.mrb[0].mxu0
    %v1218 = vadd.f32 0.0, %v1217
    %v1219 = vpop.f32.mrb[0].mxu0
    %v1220 = vpop.f32.mrb[0].mxu0
    %v1221 = vadd.f32 0.0, %v1220
    %v1222 = vpop.f32.mrb[0].mxu0
    %1223 = vmatprep.mubr.bf16.mxu0 0
    %1224 = vmatmul.mubr.bf16.gmra.mrb[0].mxu0 %v831
    %v1225 = vpop.f32.mrb[0].mxu0
    %v1226 = vadd.f32 0.0, %v1225
    %v1227 = vpop.f32.mrb[0].mxu0
    %v1228 = vpop.f32.mrb[0].mxu0
    %v1229 = vadd.f32 0.0, %v1228
    %v1230 = vpop.f32.mrb[0].mxu0
    %1231 = vmatprep.mubr.bf16.mxu0 0
    %1232 = vmatmul.mubr.bf16.gmra.mrb[0].mxu0 %v832
    %v1233 = vpop.f32.mrb[0].mxu0
    %v1234 = vadd.f32 0.0, %v1233
    %v1235 = vpop.f32.mrb[0].mxu0
    %v1236 = vpop.f32.mrb[0].mxu0
    %v1237 = vadd.f32 0.0, %v1236
    %v1238 = vpop.f32.mrb[0].mxu0
    %1239 = vmatprep.mubr.bf16.mxu0 0
    %1240 = vmatmul.mubr.bf16.gmra.mrb[0].mxu0 %v833
    %v1241 = vpop.f32.mrb[0].mxu0
    %v1242 = vadd.f32 0.0, %v1241
    %v1243 = vpop.f32.mrb[0].mxu0
    %v1244 = vpop.f32.mrb[0].mxu0
    %v1245 = vadd.f32 0.0, %v1244
    %v1246 = vpop.f32.mrb[0].mxu0
    %1247 = vmatprep.mubr.bf16.mxu0 0
    %1248 = vmatmul.mubr.bf16.gmra.mrb[0].mxu0 %v834
    %v1249 = vpop.f32.mrb[0].mxu0
    %v1250 = vadd.f32 0.0, %v1249
    %v1251 = vpop.f32.mrb[0].mxu0
    %v1252 = vpop.f32.mrb[0].mxu0
    %v1253 = vadd.f32 0.0, %v1252
    %v1254 = vpop.f32.mrb[0].mxu0
    %1255 = vmatprep.mubr.bf16.mxu0 0
    %1256 = vmatmul.mubr.bf16.gmra.mrb[0].mxu0 %v835
    %v1257 = vpop.f32.mrb[0].mxu0
    %v1258 = vadd.f32 0.0, %v1257
    %v1259 = vpop.f32.mrb[0].mxu0
    %v1260 = vpop.f32.mrb[0].mxu0
    %v1261 = vadd.f32 0.0, %v1260
    %v1262 = vpop.f32.mrb[0].mxu0
    %1263 = vmatprep.mubr.bf16.mxu0 0
    %1264 = vmatmul.mubr.bf16.gmra.mrb[0].mxu0 %v836
    %v1265 = vpop.f32.mrb[0].mxu0
    %v1266 = vadd.f32 0.0, %v1265
    %v1267 = vpop.f32.mrb[0].mxu0
    %v1268 = vpop.f32.mrb[0].mxu0
    %v1269 = vadd.f32 0.0, %v1268
    %v1270 = vpop.f32.mrb[0].mxu0
    %1271 = vmatprep.mubr.bf16.mxu0 0
    %1272 = vmatmul.mubr.bf16.gmra.mrb[0].mxu0 %v837
    %v1273 = vpop.f32.mrb[0].mxu0
    %v1274 = vadd.f32 0.0, %v1273
    %v1275 = vpop.f32.mrb[0].mxu0
    %v1276 = vpop.f32.mrb[0].mxu0
    %v1277 = vadd.f32 0.0, %v1276
    %v1278 = vpop.f32.mrb[0].mxu0
    %1279 = vmatprep.mubr.bf16.mxu0 0
    %1280 = vmatmul.mubr.bf16.gmra.mrb[0].mxu0 %v838
    %v1281 = vpop.f32.mrb[0].mxu0
    %v1282 = vadd.f32 0.0, %v1281
    %v1283 = vpop.f32.mrb[0].mxu0
    %v1284 = vpop.f32.mrb[0].mxu0
    %v1285 = vadd.f32 0.0, %v1284
    %v1286 = vpop.f32.mrb[0].mxu0
    %1287 = vmatprep.mubr.bf16.mxu0 0
    %1288 = vmatmul.mubr.bf16.gmra.mrb[0].mxu0 %v839
    %v1289 = vpop.f32.mrb[0].mxu0
    %v1290 = vadd.f32 0.0, %v1289
    %v1291 = vpop.f32.mrb[0].mxu0
    %v1292 = vpop.f32.mrb[0].mxu0
    %v1293 = vadd.f32 0.0, %v1292
    %v1294 = vpop.f32.mrb[0].mxu0
    %1295 = vmatprep.mubr.bf16.mxu0 0
    %1296 = vmatmul.mubr.bf16.gmra.mrb[0].mxu0 %v840
    %v1297 = vpop.f32.mrb[0].mxu0
    %v1298 = vadd.f32 0.0, %v1297
    %v1299 = vpop.f32.mrb[0].mxu0
    %v1300 = vpop.f32.mrb[0].mxu0
    %v1301 = vadd.f32 0.0, %v1300
    %v1302 = vpop.f32.mrb[0].mxu0
    %1303 = vmatprep.mubr.bf16.mxu0 0
    %1304 = vmatmul.mubr.bf16.gmra.mrb[0].mxu0 %v841
    %v1305 = vpop.f32.mrb[0].mxu0
    %v1306 = vadd.f32 0.0, %v1305
    %v1307 = vpop.f32.mrb[0].mxu0
    %v1308 = vpop.f32.mrb[0].mxu0
    %v1309 = vadd.f32 0.0, %v1308
    %v1310 = vpop.f32.mrb[0].mxu0
    %1311 = vmatprep.mubr.bf16.mxu0 0
    %1312 = vmatmul.mubr.bf16.gmra.mrb[0].mxu0 %v842
    %v1313 = vpop.f32.mrb[0].mxu0
    %v1314 = vadd.f32 0.0, %v1313
    %v1315 = vpop.f32.mrb[0].mxu0
    %v1316 = vpop.f32.mrb[0].mxu0
    %v1317 = vadd.f32 0.0, %v1316
    %v1318 = vpop.f32.mrb[0].mxu0
    %1319 = vmatprep.mubr.bf16.mxu0 0
    %1320 = vmatmul.mubr.bf16.gmra.mrb[0].mxu0 %v843
    %v1321 = vpop.f32.mrb[0].mxu0
    %v1322 = vadd.f32 0.0, %v1321
    %v1323 = vpop.f32.mrb[0].mxu0
    %v1324 = vpop.f32.mrb[0].mxu0
    %v1325 = vadd.f32 0.0, %v1324
    %v1326 = vpop.f32.mrb[0].mxu0
    %1327 = vmatprep.mubr.bf16.mxu0 0
    %1328 = vmatmul.mubr.bf16.gmra.mrb[0].mxu0 %v844
    %v1329 = vpop.f32.mrb[0].mxu0
    %v1330 = vadd.f32 0.0, %v1329
    %v1331 = vpop.f32.mrb[0].mxu0
    %v1332 = vpop.f32.mrb[0].mxu0
    %v1333 = vadd.f32 0.0, %v1332
    %v1334 = vpop.f32.mrb[0].mxu0
    %1335 = vmatprep.mubr.bf16.mxu0 0
    %1336 = vmatmul.mubr.bf16.gmra.mrb[0].mxu0 %v845
    %v1337 = vpop.f32.mrb[0].mxu0
    %v1338 = vadd.f32 0.0, %v1337
    %v1339 = vpop.f32.mrb[0].mxu0
    %v1340 = vpop.f32.mrb[0].mxu0
    %v1341 = vadd.f32 0.0, %v1340
    %v1342 = vpop.f32.mrb[0].mxu0
    %1343 = vmatprep.mubr.bf16.mxu0 0
    %1344 = vmatmul.mubr.bf16.gmra.mrb[0].mxu0 %v846
    %v1345 = vpop.f32.mrb[0].mxu0
    %v1346 = vadd.f32 0.0, %v1345
    %v1347 = vpop.f32.mrb[0].mxu0
    %v1348 = vpop.f32.mrb[0].mxu0
    %v1349 = vadd.f32 0.0, %v1348
    %v1350 = vpop.f32.mrb[0].mxu0
    %1351 = vmatprep.mubr.bf16.mxu0 0
    %1352 = vmatmul.mubr.bf16.gmra.mrb[0].mxu0 %v847
    %v1353 = vpop.f32.mrb[0].mxu0
    %v1354 = vadd.f32 0.0, %v1353
    %v1355 = vpop.f32.mrb[0].mxu0
    %v1356 = vpop.f32.mrb[0].mxu0
    %v1357 = vadd.f32 0.0, %v1356
    %v1358 = vpop.f32.mrb[0].mxu0
    %1359 = vmatprep.mubr.bf16.mxu0 0
    %1360 = vmatmul.mubr.bf16.gmra.mrb[0].mxu0 %v848
    %v1361 = vpop.f32.mrb[0].mxu0
    %v1362 = vadd.f32 0.0, %v1361
    %v1363 = vpop.f32.mrb[0].mxu0
    %v1364 = vpop.f32.mrb[0].mxu0
    %v1365 = vadd.f32 0.0, %v1364
    %v1366 = vpop.f32.mrb[0].mxu0
    %1367 = vmatprep.mubr.bf16.mxu0 0
    %1368 = vmatmul.mubr.bf16.gmra.mrb[0].mxu0 %v849
    %v1369 = vpop.f32.mrb[0].mxu0
    %v1370 = vadd.f32 0.0, %v1369
    %v1371 = vpop.f32.mrb[0].mxu0
    %v1372 = vpop.f32.mrb[0].mxu0
    %v1373 = vadd.f32 0.0, %v1372
    %v1374 = vpop.f32.mrb[0].mxu0
    %1375 = vmatprep.mubr.bf16.mxu0 0
    %1376 = vmatmul.mubr.bf16.gmra.mrb[0].mxu0 %v850
    %v1377 = vpop.f32.mrb[0].mxu0
    %v1378 = vadd.f32 0.0, %v1377
    %v1379 = vpop.f32.mrb[0].mxu0
    %v1380 = vpop.f32.mrb[0].mxu0
    %v1381 = vadd.f32 0.0, %v1380
    %v1382 = vpop.f32.mrb[0].mxu0
    %1383 = vmatprep.mubr.bf16.mxu0 0
    %1384 = vmatmul.mubr.bf16.gmra.mrb[0].mxu0 %v851
    %v1385 = vpop.f32.mrb[0].mxu0
    %v1386 = vadd.f32 0.0, %v1385
    %v1387 = vpop.f32.mrb[0].mxu0
    %v1388 = vpop.f32.mrb[0].mxu0
    %v1389 = vadd.f32 0.0, %v1388
    %v1390 = vpop.f32.mrb[0].mxu0
    %1391 = vmatprep.mubr.bf16.mxu0 0
    %1392 = vmatmul.mubr.bf16.gmra.mrb[0].mxu0 %v852
    %v1393 = vpop.f32.mrb[0].mxu0
    %v1394 = vadd.f32 0.0, %v1393
    %v1395 = vpop.f32.mrb[0].mxu0
    %v1396 = vpop.f32.mrb[0].mxu0
    %v1397 = vadd.f32 0.0, %v1396
    %v1398 = vpop.f32.mrb[0].mxu0
    %1399 = vmatprep.mubr.bf16.mxu0 0
    %1400 = vmatmul.mubr.bf16.gmra.mrb[0].mxu0 %v853
    %v1401 = vpop.f32.mrb[0].mxu0
    %v1402 = vadd.f32 0.0, %v1401
    %v1403 = vpop.f32.mrb[0].mxu0
    %v1404 = vpop.f32.mrb[0].mxu0
    %v1405 = vadd.f32 0.0, %v1404
    %v1406 = vpop.f32.mrb[0].mxu0
    %1407 = vmatprep.mubr.bf16.mxu0 0
    %1408 = vmatmul.mubr.bf16.gmra.mrb[0].mxu0 %v854
    %v1409 = vpop.f32.mrb[0].mxu0
    %v1410 = vadd.f32 0.0, %v1409
    %v1411 = vpop.f32.mrb[0].mxu0
    %v1412 = vpop.f32.mrb[0].mxu0
    %v1413 = vadd.f32 0.0, %v1412
    %v1414 = vpop.f32.mrb[0].mxu0
    %1415 = vmatprep.mubr.bf16.mxu0 0
    %1416 = vmatmul.mubr.bf16.gmra.mrb[0].mxu0 %v855
    %v1417 = vpop.f32.mrb[0].mxu0
    %v1418 = vadd.f32 0.0, %v1417
    %v1419 = vpop.f32.mrb[0].mxu0
    %v1420 = vpop.f32.mrb[0].mxu0
    %v1421 = vadd.f32 0.0, %v1420
    %v1422 = vpop.f32.mrb[0].mxu0
    %1423 = vmatprep.mubr.bf16.mxu0 0
    %1424 = vmatmul.mubr.bf16.gmra.mrb[0].mxu0 %v856
    %v1425 = vpop.f32.mrb[0].mxu0
    %v1426 = vadd.f32 0.0, %v1425
    %v1427 = vpop.f32.mrb[0].mxu0
    %v1428 = vpop.f32.mrb[0].mxu0
    %v1429 = vadd.f32 0.0, %v1428
    %v1430 = vpop.f32.mrb[0].mxu0
    %1431 = vmatprep.mubr.bf16.mxu0 0
    %1432 = vmatmul.mubr.bf16.gmra.mrb[0].mxu0 %v857
    %v1433 = vpop.f32.mrb[0].mxu0
    %v1434 = vadd.f32 0.0, %v1433
    %v1435 = vpop.f32.mrb[0].mxu0
    %v1436 = vpop.f32.mrb[0].mxu0
    %v1437 = vadd.f32 0.0, %v1436
    %v1438 = vpop.f32.mrb[0].mxu0
    %1439 = vmatprep.mubr.bf16.mxu0 0
    %1440 = vmatmul.mubr.bf16.gmra.mrb[0].mxu0 %v858
    %v1441 = vpop.f32.mrb[0].mxu0
    %v1442 = vadd.f32 0.0, %v1441
    %v1443 = vpop.f32.mrb[0].mxu0
    %v1444 = vpop.f32.mrb[0].mxu0
    %v1445 = vadd.f32 0.0, %v1444
    %v1446 = vpop.f32.mrb[0].mxu0
    %1447 = vmatprep.mubr.bf16.mxu0 0
    %1448 = vmatmul.mubr.bf16.gmra.mrb[0].mxu0 %v859
    %v1449 = vpop.f32.mrb[0].mxu0
    %v1450 = vadd.f32 0.0, %v1449
    %v1451 = vpop.f32.mrb[0].mxu0
    %v1452 = vpop.f32.mrb[0].mxu0
    %v1453 = vadd.f32 0.0, %v1452
    %v1454 = vpop.f32.mrb[0].mxu0
    %1455 = vmatprep.mubr.bf16.mxu0 0
    %1456 = vmatmul.mubr.bf16.gmra.mrb[0].mxu0 %v860
    %v1457 = vpop.f32.mrb[0].mxu0
    %v1458 = vadd.f32 0.0, %v1457
    %v1459 = vpop.f32.mrb[0].mxu0
    %v1460 = vpop.f32.mrb[0].mxu0
    %v1461 = vadd.f32 0.0, %v1460
    %v1462 = vpop.f32.mrb[0].mxu0
    %1463 = vmatprep.mubr.bf16.mxu0 0
    %1464 = vmatmul.mubr.bf16.gmra.mrb[0].mxu0 %v861
    %v1465 = vpop.f32.mrb[0].mxu0
    %v1466 = vadd.f32 0.0, %v1465
    %v1467 = vpop.f32.mrb[0].mxu0
    %v1468 = vpop.f32.mrb[0].mxu0
    %v1469 = vadd.f32 0.0, %v1468
    %v1470 = vpop.f32.mrb[0].mxu0
    %1471 = vmatprep.mubr.bf16.mxu0 0
    %1472 = vmatmul.mubr.bf16.gmra.mrb[0].mxu0 %v862
    %v1473 = vpop.f32.mrb[0].mxu0
    %v1474 = vadd.f32 0.0, %v1473
    %v1475 = vpop.f32.mrb[0].mxu0
    %v1476 = vpop.f32.mrb[0].mxu0
    %v1477 = vadd.f32 0.0, %v1476
    %v1478 = vpop.f32.mrb[0].mxu0
    %1479 = vmatprep.mubr.bf16.mxu0 0
    %1480 = vmatmul.mubr.bf16.gmra.mrb[0].mxu0 %v863
    %v1481 = vpop.f32.mrb[0].mxu0
    %v1482 = vadd.f32 0.0, %v1481
    %v1483 = vpop.f32.mrb[0].mxu0
    %v1484 = vpop.f32.mrb[0].mxu0
    %v1485 = vadd.f32 0.0, %v1484
    %v1486 = vpop.f32.mrb[0].mxu0
    %1487 = vmatprep.mubr.bf16.mxu0 0
    %1488 = vmatmul.mubr.bf16.gmra.mrb[0].mxu0 %v864
    %v1489 = vpop.f32.mrb[0].mxu0
    %v1490 = vadd.f32 0.0, %v1489
    %v1491 = vpop.f32.mrb[0].mxu0
    %v1492 = vpop.f32.mrb[0].mxu0
    %v1493 = vadd.f32 0.0, %v1492
    %v1494 = vpop.f32.mrb[0].mxu0
    %1495 = vmatprep.mubr.bf16.mxu0 0
    %1496 = vmatmul.mubr.bf16.gmra.mrb[0].mxu0 %v865
    %v1497 = vpop.f32.mrb[0].mxu0
    %v1498 = vadd.f32 0.0, %v1497
    %v1499 = vpop.f32.mrb[0].mxu0
    %v1500 = vpop.f32.mrb[0].mxu0
    %v1501 = vadd.f32 0.0, %v1500
    %v1502 = vpop.f32.mrb[0].mxu0
    %1503 = vmatprep.mubr.bf16.mxu0 0
    %1504 = vmatmul.mubr.bf16.gmra.mrb[0].mxu0 %v866
    %v1505 = vpop.f32.mrb[0].mxu0
    %v1506 = vadd.f32 0.0, %v1505
    %v1507 = vpop.f32.mrb[0].mxu0
    %v1508 = vpop.f32.mrb[0].mxu0
    %v1509 = vadd.f32 0.0, %v1508
    %v1510 = vpop.f32.mrb[0].mxu0
    %1511 = vmatprep.mubr.bf16.mxu0 0
    %1512 = vmatmul.mubr.bf16.gmra.mrb[0].mxu0 %v867
    %v1513 = vpop.f32.mrb[0].mxu0
    %v1514 = vadd.f32 0.0, %v1513
    %v1515 = vpop.f32.mrb[0].mxu0
    %v1516 = vpop.f32.mrb[0].mxu0
    %v1517 = vadd.f32 0.0, %v1516
    %v1518 = vpop.f32.mrb[0].mxu0
    %1519 = vmatprep.mubr.bf16.mxu0 0
    %1520 = vmatmul.mubr.bf16.gmra.mrb[0].mxu0 %v868
    %v1521 = vpop.f32.mrb[0].mxu0
    %v1522 = vadd.f32 0.0, %v1521
    %v1523 = vpop.f32.mrb[0].mxu0
    %v1524 = vpop.f32.mrb[0].mxu0
    %v1525 = vadd.f32 0.0, %v1524
    %v1526 = vpop.f32.mrb[0].mxu0
    %1527 = vmatprep.mubr.bf16.mxu0 0
    %1528 = vmatmul.mubr.bf16.gmra.mrb[0].mxu0 %v869
    %v1529 = vpop.f32.mrb[0].mxu0
    %v1530 = vadd.f32 0.0, %v1529
    %v1531 = vpop.f32.mrb[0].mxu0
    %v1532 = vpop.f32.mrb[0].mxu0
    %v1533 = vadd.f32 0.0, %v1532
    %v1534 = vpop.f32.mrb[0].mxu0
    %1535 = vmatprep.mubr.bf16.mxu0 0
    %1536 = vmatmul.mubr.bf16.gmra.mrb[0].mxu0 %v870
    %v1537 = vpop.f32.mrb[0].mxu0
    %v1538 = vadd.f32 0.0, %v1537
    %v1539 = vpop.f32.mrb[0].mxu0
    %v1540 = vpop.f32.mrb[0].mxu0
    %v1541 = vadd.f32 0.0, %v1540
    %v1542 = vpop.f32.mrb[0].mxu0
    %1543 = vmatprep.mubr.bf16.mxu0 0
    %1544 = vmatmul.mubr.bf16.gmra.mrb[0].mxu0 %v871
    %v1545 = vpop.f32.mrb[0].mxu0
    %v1546 = vadd.f32 0.0, %v1545
    %v1547 = vpop.f32.mrb[0].mxu0
    %v1548 = vpop.f32.mrb[0].mxu0
    %v1549 = vadd.f32 0.0, %v1548
    %v1550 = vpop.f32.mrb[0].mxu0
    %1551 = vmatprep.mubr.bf16.mxu0 0
    %1552 = vmatmul.mubr.bf16.gmra.mrb[0].mxu0 %v872
    %v1553 = vpop.f32.mrb[0].mxu0
    %v1554 = vadd.f32 0.0, %v1553
    %v1555 = vpop.f32.mrb[0].mxu0
    %v1556 = vpop.f32.mrb[0].mxu0
    %v1557 = vadd.f32 0.0, %v1556
    %v1558 = vpop.f32.mrb[0].mxu0
    %1559 = vmatprep.mubr.bf16.mxu0 0
    %1560 = vmatmul.mubr.bf16.gmra.mrb[0].mxu0 %v873
    %v1561 = vpop.f32.mrb[0].mxu0
    %v1562 = vadd.f32 0.0, %v1561
    %v1563 = vpop.f32.mrb[0].mxu0
    %v1564 = vpop.f32.mrb[0].mxu0
    %v1565 = vadd.f32 0.0, %v1564
    %v1566 = vpop.f32.mrb[0].mxu0
    %1567 = vmatprep.mubr.bf16.mxu0 0
    %1568 = vmatmul.mubr.bf16.gmra.mrb[0].mxu0 %v874
    %v1569 = vpop.f32.mrb[0].mxu0
    %v1570 = vadd.f32 0.0, %v1569
    %v1571 = vpop.f32.mrb[0].mxu0
    %v1572 = vpop.f32.mrb[0].mxu0
    %v1573 = vadd.f32 0.0, %v1572
    %v1574 = vpop.f32.mrb[0].mxu0
    %1575 = vmatprep.mubr.bf16.mxu0 0
    %1576 = vmatmul.mubr.bf16.gmra.mrb[0].mxu0 %v875
    %v1577 = vpop.f32.mrb[0].mxu0
    %v1578 = vadd.f32 0.0, %v1577
    %v1579 = vpop.f32.mrb[0].mxu0
    %v1580 = vpop.f32.mrb[0].mxu0
    %v1581 = vadd.f32 0.0, %v1580
    %v1582 = vpop.f32.mrb[0].mxu0
    %1583 = vmatprep.mubr.bf16.mxu0 0
    %1584 = vmatmul.mubr.bf16.gmra.mrb[0].mxu0 %v876
    %v1585 = vpop.f32.mrb[0].mxu0
    %v1586 = vadd.f32 0.0, %v1585
    %v1587 = vpop.f32.mrb[0].mxu0
    %v1588 = vpop.f32.mrb[0].mxu0
    %v1589 = vadd.f32 0.0, %v1588
    %v1590 = vpop.f32.mrb[0].mxu0
    %1591 = vmatprep.mubr.bf16.mxu0 0
    %1592 = vmatmul.mubr.bf16.gmra.mrb[0].mxu0 %v877
    %v1593 = vpop.f32.mrb[0].mxu0
    %v1594 = vadd.f32 0.0, %v1593
    %v1595 = vpop.f32.mrb[0].mxu0
    %v1596 = vpop.f32.mrb[0].mxu0
    %v1597 = vadd.f32 0.0, %v1596
    %v1598 = vpop.f32.mrb[0].mxu0
    %1599 = vmatprep.mubr.bf16.mxu0 0
    %1600 = vmatmul.mubr.bf16.gmra.mrb[0].mxu0 %v878
    %v1601 = vpop.f32.mrb[0].mxu0
    %v1602 = vadd.f32 0.0, %v1601
    %v1603 = vpop.f32.mrb[0].mxu0
    %v1604 = vpop.f32.mrb[0].mxu0
    %v1605 = vadd.f32 0.0, %v1604
    %v1606 = vpop.f32.mrb[0].mxu0
    %1607 = vmatprep.mubr.bf16.mxu0 0
    %1608 = vmatmul.mubr.bf16.gmra.mrb[0].mxu0 %v879
    %v1609 = vpop.f32.mrb[0].mxu0
    %v1610 = vadd.f32 0.0, %v1609
    %v1611 = vpop.f32.mrb[0].mxu0
    %v1612 = vpop.f32.mrb[0].mxu0
    %v1613 = vadd.f32 0.0, %v1612
    %v1614 = vpop.f32.mrb[0].mxu0
    %1615 = vmatprep.mubr.bf16.mxu0 0
    %1616 = vmatmul.mubr.bf16.gmra.mrb[0].mxu0 %v880
    %v1617 = vpop.f32.mrb[0].mxu0
    %v1618 = vadd.f32 0.0, %v1617
    %v1619 = vpop.f32.mrb[0].mxu0
    %v1620 = vpop.f32.mrb[0].mxu0
    %v1621 = vadd.f32 0.0, %v1620
    %v1622 = vpop.f32.mrb[0].mxu0
    %1623 = vmatprep.mubr.bf16.mxu0 0
    %1624 = vmatmul.mubr.bf16.gmra.mrb[0].mxu0 %v881
    %v1625 = vpop.f32.mrb[0].mxu0
    %v1626 = vadd.f32 0.0, %v1625
    %v1627 = vpop.f32.mrb[0].mxu0
    %v1628 = vpop.f32.mrb[0].mxu0
    %v1629 = vadd.f32 0.0, %v1628
    %v1630 = vpop.f32.mrb[0].mxu0
    %1631 = vmatprep.mubr.bf16.mxu0 0
    %1632 = vmatmul.mubr.bf16.gmra.mrb[0].mxu0 %v882
    %v1633 = vpop.f32.mrb[0].mxu0
    %v1634 = vadd.f32 0.0, %v1633
    %v1635 = vpop.f32.mrb[0].mxu0
    %v1636 = vpop.f32.mrb[0].mxu0
    %v1637 = vadd.f32 0.0, %v1636
    %v1638 = vpop.f32.mrb[0].mxu0
    %1639 = vmatprep.mubr.bf16.mxu0 0
    %1640 = vmatmul.mubr.bf16.gmra.mrb[0].mxu0 %v883
    %v1641 = vpop.f32.mrb[0].mxu0
    %v1642 = vadd.f32 0.0, %v1641
    %v1643 = vpop.f32.mrb[0].mxu0
    %v1644 = vpop.f32.mrb[0].mxu0
    %v1645 = vadd.f32 0.0, %v1644
    %v1646 = vpop.f32.mrb[0].mxu0
    %1647 = vmatprep.mubr.bf16.mxu0 0
    %1648 = vmatmul.mubr.bf16.gmra.mrb[0].mxu0 %v884
    %v1649 = vpop.f32.mrb[0].mxu0
    %v1650 = vadd.f32 0.0, %v1649
    %v1651 = vpop.f32.mrb[0].mxu0
    %v1652 = vpop.f32.mrb[0].mxu0
    %v1653 = vadd.f32 0.0, %v1652
    %v1654 = vpop.f32.mrb[0].mxu0
    %1655 = vmatprep.mubr.bf16.mxu0 0
    %1656 = vmatmul.mubr.bf16.gmra.mrb[0].mxu0 %v885
    %v1657 = vpop.f32.mrb[0].mxu0
    %v1658 = vadd.f32 0.0, %v1657
    %v1659 = vpop.f32.mrb[0].mxu0
    %v1660 = vpop.f32.mrb[0].mxu0
    %v1661 = vadd.f32 0.0, %v1660
    %v1662 = vpop.f32.mrb[0].mxu0
    %1663 = vmatprep.mubr.bf16.mxu0 0
    %1664 = vmatmul.mubr.bf16.gmra.mrb[0].mxu0 %v886
    %v1665 = vpop.f32.mrb[0].mxu0
    %v1666 = vadd.f32 0.0, %v1665
    %v1667 = vpop.f32.mrb[0].mxu0
    %v1668 = vpop.f32.mrb[0].mxu0
    %v1669 = vadd.f32 0.0, %v1668
    %v1670 = vpop.f32.mrb[0].mxu0
    %1671 = vmatprep.mubr.bf16.mxu0 0
    %1672 = vmatmul.mubr.bf16.gmra.mrb[0].mxu0 %v887
    %v1673 = vpop.f32.mrb[0].mxu0
    %v1674 = vadd.f32 0.0, %v1673
    %v1675 = vpop.f32.mrb[0].mxu0
    %v1676 = vpop.f32.mrb[0].mxu0
    %v1677 = vadd.f32 0.0, %v1676
    %v1678 = vpop.f32.mrb[0].mxu0
    %1679 = vmatprep.mubr.bf16.mxu0 0
    %1680 = vmatmul.mubr.bf16.gmra.mrb[0].mxu0 %v888
    %v1681 = vpop.f32.mrb[0].mxu0
    %v1682 = vadd.f32 0.0, %v1681
    %v1683 = vpop.f32.mrb[0].mxu0
    %v1684 = vpop.f32.mrb[0].mxu0
    %v1685 = vadd.f32 0.0, %v1684
    %v1686 = vpop.f32.mrb[0].mxu0
    %1687 = vmatprep.mubr.bf16.mxu0 0
    %1688 = vmatmul.mubr.bf16.gmra.mrb[0].mxu0 %v889
    %v1689 = vpop.f32.mrb[0].mxu0
    %v1690 = vadd.f32 0.0, %v1689
    %v1691 = vpop.f32.mrb[0].mxu0
    %v1692 = vpop.f32.mrb[0].mxu0
    %v1693 = vadd.f32 0.0, %v1692
    %v1694 = vpop.f32.mrb[0].mxu0
    %1695 = vmatprep.mubr.bf16.mxu0 0
    %1696 = vmatmul.mubr.bf16.gmra.mrb[0].mxu0 %v890
    %v1697 = vpop.f32.mrb[0].mxu0
    %v1698 = vadd.f32 0.0, %v1697
    %v1699 = vpop.f32.mrb[0].mxu0
    %v1700 = vpop.f32.mrb[0].mxu0
    %v1701 = vadd.f32 0.0, %v1700
    %v1702 = vpop.f32.mrb[0].mxu0
    %1703 = vmatprep.mubr.bf16.mxu0 0
    %1704 = vmatmul.mubr.bf16.gmra.mrb[0].mxu0 %v891
    %v1705 = vpop.f32.mrb[0].mxu0
    %v1706 = vadd.f32 0.0, %v1705
    %v1707 = vpop.f32.mrb[0].mxu0
    %v1708 = vpop.f32.mrb[0].mxu0
    %v1709 = vadd.f32 0.0, %v1708
    %v1710 = vpop.f32.mrb[0].mxu0
    %1711 = vmatprep.mubr.bf16.mxu0 0
    %1712 = vmatmul.mubr.bf16.gmra.mrb[0].mxu0 %v892
    %v1713 = vpop.f32.mrb[0].mxu0
    %v1714 = vadd.f32 0.0, %v1713
    %v1715 = vpop.f32.mrb[0].mxu0
    %v1716 = vpop.f32.mrb[0].mxu0
    %v1717 = vadd.f32 0.0, %v1716
    %v1718 = vpop.f32.mrb[0].mxu0
    %1719 = vmatprep.mubr.bf16.mxu0 0
    %1720 = vmatmul.mubr.bf16.gmra.mrb[0].mxu0 %v893
    %v1721 = vpop.f32.mrb[0].mxu0
    %v1722 = vadd.f32 0.0, %v1721
    %v1723 = vpop.f32.mrb[0].mxu0
    %v1724 = vpop.f32.mrb[0].mxu0
    %v1725 = vadd.f32 0.0, %v1724
    %v1726 = vpop.f32.mrb[0].mxu0
    %1727 = vmatprep.mubr.bf16.mxu0 0
    %1728 = vmatmul.mubr.bf16.gmra.mrb[0].mxu0 %v894
    %v1729 = vpop.f32.mrb[0].mxu0
    %v1730 = vadd.f32 0.0, %v1729
    %v1731 = vpop.f32.mrb[0].mxu0
    %v1732 = vpop.f32.mrb[0].mxu0
    %v1733 = vadd.f32 0.0, %v1732
    %v1734 = vpop.f32.mrb[0].mxu0
    %1735 = vmatprep.mubr.bf16.mxu0 0
    %1736 = vmatmul.mubr.bf16.gmra.mrb[0].mxu0 %v895
    %v1737 = vpop.f32.mrb[0].mxu0
    %v1738 = vadd.f32 0.0, %v1737
    %v1739 = vpop.f32.mrb[0].mxu0
    %v1740 = vpop.f32.mrb[0].mxu0
    %v1741 = vadd.f32 0.0, %v1740
    %v1742 = vpop.f32.mrb[0].mxu0
    %1743 = vmatprep.mubr.bf16.mxu0 0
    %1744 = vmatmul.mubr.bf16.gmra.mrb[0].mxu0 %v896
    %v1745 = vpop.f32.mrb[0].mxu0
    %v1746 = vadd.f32 0.0, %v1745
    %v1747 = vpop.f32.mrb[0].mxu0
    %v1748 = vpop.f32.mrb[0].mxu0
    %v1749 = vadd.f32 0.0, %v1748
    %v1750 = vpop.f32.mrb[0].mxu0
    %1751 = vmatprep.mubr.bf16.mxu0 0
    %1752 = vmatmul.mubr.bf16.gmra.mrb[0].mxu0 %v897
    %v1753 = vpop.f32.mrb[0].mxu0
    %v1754 = vadd.f32 0.0, %v1753
    %v1755 = vpop.f32.mrb[0].mxu0
    %v1756 = vpop.f32.mrb[0].mxu0
    %v1757 = vadd.f32 0.0, %v1756
    %v1758 = vpop.f32.mrb[0].mxu0
    %1759 = vmatprep.mubr.bf16.mxu0 0
    %1760 = vmatmul.mubr.bf16.gmra.mrb[0].mxu0 %v898
    %v1761 = vpop.f32.mrb[0].mxu0
    %v1762 = vadd.f32 0.0, %v1761
    %v1763 = vpop.f32.mrb[0].mxu0
    %v1764 = vpop.f32.mrb[0].mxu0
    %v1765 = vadd.f32 0.0, %v1764
    %v1766 = vpop.f32.mrb[0].mxu0
    %1767 = vmatprep.mubr.bf16.mxu0 0
    %1768 = vmatmul.mubr.bf16.gmra.mrb[0].mxu0 %v899
    %v1769 = vpop.f32.mrb[0].mxu0
    %v1770 = vadd.f32 0.0, %v1769
    %v1771 = vpop.f32.mrb[0].mxu0
    %v1772 = vpop.f32.mrb[0].mxu0
    %v1773 = vadd.f32 0.0, %v1772
    %v1774 = vpop.f32.mrb[0].mxu0
    %1775 = vmatprep.mubr.bf16.mxu0 0
    %1776 = vmatmul.mubr.bf16.gmra.mrb[0].mxu0 %v900
    %v1777 = vpop.f32.mrb[0].mxu0
    %v1778 = vadd.f32 0.0, %v1777
    %v1779 = vpop.f32.mrb[0].mxu0
    %v1780 = vpop.f32.mrb[0].mxu0
    %v1781 = vadd.f32 0.0, %v1780
    %v1782 = vpop.f32.mrb[0].mxu0
    %1783 = vmatprep.mubr.bf16.mxu0 0
    %1784 = vmatmul.mubr.bf16.gmra.mrb[0].mxu0 %v901
    %v1785 = vpop.f32.mrb[0].mxu0
    %v1786 = vadd.f32 0.0, %v1785
    %v1787 = vpop.f32.mrb[0].mxu0
    %v1788 = vpop.f32.mrb[0].mxu0
    %v1789 = vadd.f32 0.0, %v1788
    %v1790 = vpop.f32.mrb[0].mxu0
    %1791 = vmatprep.mubr.bf16.mxu0 0
    %1792 = vmatmul.mubr.bf16.gmra.mrb[0].mxu0 %v902
    %v1793 = vpop.f32.mrb[0].mxu0
    %v1794 = vadd.f32 0.0, %v1793
    %v1795 = vpop.f32.mrb[0].mxu0
    %v1796 = vpop.f32.mrb[0].mxu0
    %v1797 = vadd.f32 0.0, %v1796
    %v1798 = vpop.f32.mrb[0].mxu0
    %1799 = vmatprep.mubr.bf16.mxu0 0
    %1800 = vmatmul.mubr.bf16.gmra.mrb[0].mxu0 %v903
    %v1801 = vpop.f32.mrb[0].mxu0
    %v1802 = vadd.f32 0.0, %v1801
    %v1803 = vpop.f32.mrb[0].mxu0
    %v1804 = vpop.f32.mrb[0].mxu0
    %v1805 = vadd.f32 0.0, %v1804
    %v1806 = vpop.f32.mrb[0].mxu0
    %1807 = vmatprep.mubr.bf16.mxu0 0
    %1808 = vmatmul.mubr.bf16.gmra.mrb[0].mxu0 %v904
    %v1809 = vpop.f32.mrb[0].mxu0
    %v1810 = vadd.f32 0.0, %v1809
    %v1811 = vpop.f32.mrb[0].mxu0
    %v1812 = vpop.f32.mrb[0].mxu0
    %v1813 = vadd.f32 0.0, %v1812
    %v1814 = vpop.f32.mrb[0].mxu0
    %1815 = vmatprep.mubr.bf16.mxu0 0
    %1816 = vmatmul.mubr.bf16.gmra.mrb[0].mxu0 %v905
    %v1817 = vpop.f32.mrb[0].mxu0
    %v1818 = vadd.f32 0.0, %v1817
    %v1819 = vpop.f32.mrb[0].mxu0
    %v1820 = vpop.f32.mrb[0].mxu0
    %v1821 = vadd.f32 0.0, %v1820
    %v1822 = vpop.f32.mrb[0].mxu0
    %1823 = vmatprep.mubr.bf16.mxu0 0
    %1824 = vmatmul.mubr.bf16.gmra.mrb[0].mxu0 %v906
    %v1825 = vpop.f32.mrb[0].mxu0
    %v1826 = vadd.f32 0.0, %v1825
    %v1827 = vpop.f32.mrb[0].mxu0
    %v1828 = vpop.f32.mrb[0].mxu0
    %v1829 = vadd.f32 0.0, %v1828
    %v1830 = vpop.f32.mrb[0].mxu0
    %1831 = vmatprep.mubr.bf16.mxu0 0
    %1832 = vmatmul.mubr.bf16.gmra.mrb[0].mxu0 %v907
    %v1833 = vpop.f32.mrb[0].mxu0
    %v1834 = vadd.f32 0.0, %v1833
    %v1835 = vpop.f32.mrb[0].mxu0
    %v1836 = vpop.f32.mrb[0].mxu0
    %v1837 = vadd.f32 0.0, %v1836
    %v1838 = vpop.f32.mrb[0].mxu0
    %1839 = vmatprep.mubr.bf16.mxu0 0
    %1840 = vmatmul.mubr.bf16.gmra.mrb[0].mxu0 %v908
    %v1841 = vpop.f32.mrb[0].mxu0
    %v1842 = vadd.f32 0.0, %v1841
    %v1843 = vpop.f32.mrb[0].mxu0
    %v1844 = vpop.f32.mrb[0].mxu0
    %v1845 = vadd.f32 0.0, %v1844
    %v1846 = vpop.f32.mrb[0].mxu0
    %1847 = vmatprep.mubr.bf16.mxu0 0
    %1848 = vmatmul.mubr.bf16.gmra.mrb[0].mxu0 %v909
    %v1849 = vpop.f32.mrb[0].mxu0
    %v1850 = vadd.f32 0.0, %v1849
    %v1851 = vpop.f32.mrb[0].mxu0
    %v1852 = vpop.f32.mrb[0].mxu0
    %v1853 = vadd.f32 0.0, %v1852
    %v1854 = vpop.f32.mrb[0].mxu0
    %1855 = vmatprep.mubr.bf16.mxu0 0
    %1856 = vmatmul.mubr.bf16.gmra.mrb[0].mxu0 %v910
    %v1857 = vpop.f32.mrb[0].mxu0
    %v1858 = vadd.f32 0.0, %v1857
    %v1859 = vpop.f32.mrb[0].mxu0
    %v1860 = vpop.f32.mrb[0].mxu0
    %v1861 = vadd.f32 0.0, %v1860
    %v1862 = vpop.f32.mrb[0].mxu0
    %1863 = vmatprep.mubr.bf16.mxu0 0
    %1864 = vmatmul.mubr.bf16.gmra.mrb[0].mxu0 %v911
    %v1865 = vpop.f32.mrb[0].mxu0
    %v1866 = vadd.f32 0.0, %v1865
    %v1867 = vpop.f32.mrb[0].mxu0
    %v1868 = vpop.f32.mrb[0].mxu0
    %v1869 = vadd.f32 0.0, %v1868
    %v1870 = vpop.f32.mrb[0].mxu0
    %1871 = vmatprep.mubr.bf16.mxu0 0
    %1872 = vmatmul.mubr.bf16.gmra.mrb[0].mxu0 %v912
    %v1873 = vpop.f32.mrb[0].mxu0
    %v1874 = vadd.f32 0.0, %v1873
    %v1875 = vpop.f32.mrb[0].mxu0
    %v1876 = vpop.f32.mrb[0].mxu0
    %v1877 = vadd.f32 0.0, %v1876
    %v1878 = vpop.f32.mrb[0].mxu0
    %1879 = vmatprep.mubr.bf16.mxu0 0
    %1880 = vmatmul.mubr.bf16.gmra.mrb[0].mxu0 %v913
    %v1881 = vpop.f32.mrb[0].mxu0
    %v1882 = vadd.f32 0.0, %v1881
    %v1883 = vpop.f32.mrb[0].mxu0
    %v1884 = vpop.f32.mrb[0].mxu0
    %v1885 = vadd.f32 0.0, %v1884
    %v1886 = vpop.f32.mrb[0].mxu0
    %1887 = vmatprep.mubr.bf16.mxu0 0
    %1888 = vmatmul.mubr.bf16.gmra.mrb[0].mxu0 %v914
    %v1889 = vpop.f32.mrb[0].mxu0
    %v1890 = vadd.f32 0.0, %v1889
    %v1891 = vpop.f32.mrb[0].mxu0
    %v1892 = vpop.f32.mrb[0].mxu0
    %v1893 = vadd.f32 0.0, %v1892
    %v1894 = vpop.f32.mrb[0].mxu0
    %1895 = vmatprep.mubr.bf16.mxu0 0
    %1896 = vmatmul.mubr.bf16.gmra.mrb[0].mxu0 %v915
    %v1897 = vpop.f32.mrb[0].mxu0
    %v1898 = vadd.f32 0.0, %v1897
    %v1899 = vpop.f32.mrb[0].mxu0
    %v1900 = vpop.f32.mrb[0].mxu0
    %v1901 = vadd.f32 0.0, %v1900
    %v1902 = vpop.f32.mrb[0].mxu0
    %1903 = vmatprep.mubr.bf16.mxu0 0
    %1904 = vmatmul.mubr.bf16.gmra.mrb[0].mxu0 %v916
    %v1905 = vpop.f32.mrb[0].mxu0
    %v1906 = vadd.f32 0.0, %v1905
    %v1907 = vpop.f32.mrb[0].mxu0
    %v1908 = vpop.f32.mrb[0].mxu0
    %v1909 = vadd.f32 0.0, %v1908
    %v1910 = vpop.f32.mrb[0].mxu0
    %1911 = vmatprep.mubr.bf16.mxu0 0
    %1912 = vmatmul.mubr.bf16.gmra.mrb[0].mxu0 %v917
    %v1913 = vpop.f32.mrb[0].mxu0
    %v1914 = vadd.f32 0.0, %v1913
    %v1915 = vpop.f32.mrb[0].mxu0
    %v1916 = vpop.f32.mrb[0].mxu0
    %v1917 = vadd.f32 0.0, %v1916
    %v1918 = vpop.f32.mrb[0].mxu0
    %1919 = vmatprep.mubr.bf16.mxu0 0
    %1920 = vmatmul.mubr.bf16.gmra.mrb[0].mxu0 %v918
    %v1921 = vpop.f32.mrb[0].mxu0
    %v1922 = vadd.f32 0.0, %v1921
    %v1923 = vpop.f32.mrb[0].mxu0
    %v1924 = vpop.f32.mrb[0].mxu0
    %v1925 = vadd.f32 0.0, %v1924
    %v1926 = vpop.f32.mrb[0].mxu0
    %1927 = vmatprep.mubr.bf16.mxu0 0
    %1928 = vmatmul.mubr.bf16.gmra.mrb[0].mxu0 %v919
    %v1929 = vpop.f32.mrb[0].mxu0
    %v1930 = vadd.f32 0.0, %v1929
    %v1931 = vpop.f32.mrb[0].mxu0
    %v1932 = vpop.f32.mrb[0].mxu0
    %v1933 = vadd.f32 0.0, %v1932
    %v1934 = vpop.f32.mrb[0].mxu0
    %1935 = vmatprep.mubr.bf16.mxu0 0
    %1936 = vmatmul.mubr.bf16.gmra.mrb[0].mxu0 %v920
    %v1937 = vpop.f32.mrb[0].mxu0
    %v1938 = vadd.f32 0.0, %v1937
    %v1939 = vpop.f32.mrb[0].mxu0
    %v1940 = vpop.f32.mrb[0].mxu0
    %v1941 = vadd.f32 0.0, %v1940
    %v1942 = vpop.f32.mrb[0].mxu0
    %1943 = vmatprep.mubr.bf16.mxu0 0
    %1944 = vmatmul.mubr.bf16.gmra.mrb[0].mxu0 %v921
    %v1945 = vpop.f32.mrb[0].mxu0
    %v1946 = vadd.f32 0.0, %v1945
    %v1947 = vpop.f32.mrb[0].mxu0
    %v1948 = vpop.f32.mrb[0].mxu0
    %v1949 = vadd.f32 0.0, %v1948
    %v1950 = vpop.f32.mrb[0].mxu0
    %1951 = vmatprep.mubr.bf16.mxu0 0
    %1952 = vmatmul.mubr.bf16.gmra.mrb[0].mxu0 %v922
    %v1953 = vpop.f32.mrb[0].mxu0
    %v1954 = vadd.f32 0.0, %v1953
    %v1955 = vpop.f32.mrb[0].mxu0
    %v1956 = vpop.f32.mrb[0].mxu0
    %v1957 = vadd.f32 0.0, %v1956
    %v1958 = vpop.f32.mrb[0].mxu0
    %1959 = vmatprep.mubr.bf16.mxu0 0
    %1960 = vmatmul.mubr.bf16.gmra.mrb[0].mxu0 %v923
    %v1961 = vpop.f32.mrb[0].mxu0
    %v1962 = vadd.f32 0.0, %v1961
    %v1963 = vpop.f32.mrb[0].mxu0
    %v1964 = vpop.f32.mrb[0].mxu0
    %v1965 = vadd.f32 0.0, %v1964
    %v1966 = vpop.f32.mrb[0].mxu0
    %1967 = vmatprep.mubr.bf16.mxu0 0
    %1968 = vmatmul.mubr.bf16.gmra.mrb[0].mxu0 %v924
    %v1969 = vpop.f32.mrb[0].mxu0
    %v1970 = vadd.f32 0.0, %v1969
    %v1971 = vpop.f32.mrb[0].mxu0
    %v1972 = vpop.f32.mrb[0].mxu0
    %v1973 = vadd.f32 0.0, %v1972
    %v1974 = vpop.f32.mrb[0].mxu0
    %1975 = vmatprep.mubr.bf16.mxu0 0
    %1976 = vmatmul.mubr.bf16.gmra.mrb[0].mxu0 %v925
    %v1977 = vpop.f32.mrb[0].mxu0
    %v1978 = vadd.f32 0.0, %v1977
    %v1979 = vpop.f32.mrb[0].mxu0
    %v1980 = vpop.f32.mrb[0].mxu0
    %v1981 = vadd.f32 0.0, %v1980
    %v1982 = vpop.f32.mrb[0].mxu0
    %1983 = vmatprep.mubr.bf16.mxu0 0
    %1984 = vmatmul.mubr.bf16.gmra.mrb[0].mxu0 %v926
    %v1985 = vpop.f32.mrb[0].mxu0
    %v1986 = vadd.f32 0.0, %v1985
    %v1987 = vpop.f32.mrb[0].mxu0
    %v1988 = vpop.f32.mrb[0].mxu0
    %v1989 = vadd.f32 0.0, %v1988
    %v1990 = vpop.f32.mrb[0].mxu0
    %1991 = vmatprep.mubr.bf16.mxu0 0
    %1992 = vmatmul.mubr.bf16.gmra.mrb[0].mxu0 %v927
    %v1993 = vpop.f32.mrb[0].mxu0
    %v1994 = vadd.f32 0.0, %v1993
    %v1995 = vpop.f32.mrb[0].mxu0
    %v1996 = vpop.f32.mrb[0].mxu0
    %v1997 = vadd.f32 0.0, %v1996
    %v1998 = vpop.f32.mrb[0].mxu0
    %1999 = vmatprep.mubr.bf16.mxu0 0
    %2000 = vmatmul.mubr.bf16.gmra.mrb[0].mxu0 %v928
    %v2001 = vpop.f32.mrb[0].mxu0
    %v2002 = vadd.f32 0.0, %v2001
    %v2003 = vpop.f32.mrb[0].mxu0
    %v2004 = vpop.f32.mrb[0].mxu0
    %v2005 = vadd.f32 0.0, %v2004
    %v2006 = vpop.f32.mrb[0].mxu0
    %2007 = vmatprep.mubr.bf16.mxu0 0
    %2008 = vmatmul.mubr.bf16.gmra.mrb[0].mxu0 %v929
    %v2009 = vpop.f32.mrb[0].mxu0
    %v2010 = vadd.f32 0.0, %v2009
    %v2011 = vpop.f32.mrb[0].mxu0
    %v2012 = vpop.f32.mrb[0].mxu0
    %v2013 = vadd.f32 0.0, %v2012
    %v2014 = vpop.f32.mrb[0].mxu0
    %2015 = vmatprep.mubr.bf16.mxu0 0
    %2016 = vmatmul.mubr.bf16.gmra.mrb[0].mxu0 %v930
    %v2017 = vpop.f32.mrb[0].mxu0
    %v2018 = vadd.f32 0.0, %v2017
    %v2019 = vpop.f32.mrb[0].mxu0
    %v2020 = vpop.f32.mrb[0].mxu0
    %v2021 = vadd.f32 0.0, %v2020
    %v2022 = vpop.f32.mrb[0].mxu0
    %2023 = vmatprep.mubr.bf16.mxu0 0
    %2024 = vmatmul.mubr.bf16.gmra.mrb[0].mxu0 %v931
    %v2025 = vpop.f32.mrb[0].mxu0
    %v2026 = vadd.f32 0.0, %v2025
    %v2027 = vpop.f32.mrb[0].mxu0
    %v2028 = vpop.f32.mrb[0].mxu0
    %v2029 = vadd.f32 0.0, %v2028
    %v2030 = vpop.f32.mrb[0].mxu0
    %2031 = vmatprep.mubr.bf16.mxu0 0
    %2032 = vmatmul.mubr.bf16.gmra.mrb[0].mxu0 %v932
    %v2033 = vpop.f32.mrb[0].mxu0
    %v2034 = vadd.f32 0.0, %v2033
    %v2035 = vpop.f32.mrb[0].mxu0
    %v2036 = vpop.f32.mrb[0].mxu0
    %v2037 = vadd.f32 0.0, %v2036
    %v2038 = vpop.f32.mrb[0].mxu0
    %2039 = vmatprep.mubr.bf16.mxu0 0
    %2040 = vmatmul.mubr.bf16.gmra.mrb[0].mxu0 %v933
    %v2041 = vpop.f32.mrb[0].mxu0
    %v2042 = vadd.f32 0.0, %v2041
    %v2043 = vpop.f32.mrb[0].mxu0
    %v2044 = vpop.f32.mrb[0].mxu0
    %v2045 = vadd.f32 0.0, %v2044
    %v2046 = vpop.f32.mrb[0].mxu0
    %2047 = vmatprep.mubr.bf16.mxu0 0
    %2048 = vmatmul.mubr.bf16.gmra.mrb[0].mxu0 %v934
    %v2049 = vpop.f32.mrb[0].mxu0
    %v2050 = vadd.f32 0.0, %v2049
    %v2051 = vpop.f32.mrb[0].mxu0
    %v2052 = vpop.f32.mrb[0].mxu0
    %v2053 = vadd.f32 0.0, %v2052
    %v2054 = vpop.f32.mrb[0].mxu0
    %2055 = vmatprep.mubr.bf16.mxu0 0
    %2056 = vmatmul.mubr.bf16.gmra.mrb[0].mxu0 %v935
    %v2057 = vpop.f32.mrb[0].mxu0
    %v2058 = vadd.f32 0.0, %v2057
    %v2059 = vpop.f32.mrb[0].mxu0
    %v2060 = vpop.f32.mrb[0].mxu0
    %v2061 = vadd.f32 0.0, %v2060
    %v2062 = vpop.f32.mrb[0].mxu0
    %2063 = vmatprep.mubr.bf16.mxu0 0
    %2064 = vmatmul.mubr.bf16.gmra.mrb[0].mxu0 %v936
    %v2065 = vpop.f32.mrb[0].mxu0
    %v2066 = vadd.f32 0.0, %v2065
    %v2067 = vpop.f32.mrb[0].mxu0
    %v2068 = vpop.f32.mrb[0].mxu0
    %v2069 = vadd.f32 0.0, %v2068
    %v2070 = vpop.f32.mrb[0].mxu0
    %2071 = vmatprep.mubr.bf16.mxu0 0
    %2072 = vmatmul.mubr.bf16.gmra.mrb[0].mxu0 %v937
    %v2073 = vpop.f32.mrb[0].mxu0
    %v2074 = vadd.f32 0.0, %v2073
    %v2075 = vpop.f32.mrb[0].mxu0
    %v2076 = vpop.f32.mrb[0].mxu0
    %v2077 = vadd.f32 0.0, %v2076
    %v2078 = vpop.f32.mrb[0].mxu0
    %2079 = vmatprep.mubr.bf16.mxu0 0
    %2080 = vmatmul.mubr.bf16.gmra.mrb[0].mxu0 %v938
    %v2081 = vpop.f32.mrb[0].mxu0
    %v2082 = vadd.f32 0.0, %v2081
    %v2083 = vpop.f32.mrb[0].mxu0
    %v2084 = vpop.f32.mrb[0].mxu0
    %v2085 = vadd.f32 0.0, %v2084
    %v2086 = vpop.f32.mrb[0].mxu0
    %2087 = vmatprep.mubr.bf16.mxu0 0
    %2088 = vmatmul.mubr.bf16.gmra.mrb[0].mxu0 %v939
    %v2089 = vpop.f32.mrb[0].mxu0
    %v2090 = vadd.f32 0.0, %v2089
    %v2091 = vpop.f32.mrb[0].mxu0
    %v2092 = vpop.f32.mrb[0].mxu0
    %v2093 = vadd.f32 0.0, %v2092
    %v2094 = vpop.f32.mrb[0].mxu0
    %2095 = vmatprep.mubr.bf16.mxu0 0
    %2096 = vmatmul.mubr.bf16.gmra.mrb[0].mxu0 %v940
    %v2097 = vpop.f32.mrb[0].mxu0
    %v2098 = vadd.f32 0.0, %v2097
    %v2099 = vpop.f32.mrb[0].mxu0
    %v2100 = vpop.f32.mrb[0].mxu0
    %v2101 = vadd.f32 0.0, %v2100
    %v2102 = vpop.f32.mrb[0].mxu0
    %2103 = vmatprep.mubr.bf16.mxu0 0
    %2104 = vmatmul.mubr.bf16.gmra.mrb[0].mxu0 %v941
    %v2105 = vpop.f32.mrb[0].mxu0
    %v2106 = vadd.f32 0.0, %v2105
    %v2107 = vpop.f32.mrb[0].mxu0
    %v2108 = vpop.f32.mrb[0].mxu0
    %v2109 = vadd.f32 0.0, %v2108
    %v2110 = vpop.f32.mrb[0].mxu0
    %2111 = vmatprep.mubr.bf16.mxu0 0
    %2112 = vmatmul.mubr.bf16.gmra.mrb[0].mxu0 %v942
    %v2113 = vpop.f32.mrb[0].mxu0
    %v2114 = vadd.f32 0.0, %v2113
    %v2115 = vpop.f32.mrb[0].mxu0
    %v2116 = vpop.f32.mrb[0].mxu0
    %v2117 = vadd.f32 0.0, %v2116
    %v2118 = vpop.f32.mrb[0].mxu0
    %2119 = vmatprep.mubr.bf16.mxu0 0
    %2120 = vmatmul.mubr.bf16.gmra.mrb[0].mxu0 %v943
    %v2121 = vpop.f32.mrb[0].mxu0
    %v2122 = vadd.f32 0.0, %v2121
    %v2123 = vpop.f32.mrb[0].mxu0
    %v2124 = vpop.f32.mrb[0].mxu0
    %v2125 = vadd.f32 0.0, %v2124
    %v2126 = vpop.f32.mrb[0].mxu0
    %2127 = vmatprep.mubr.bf16.mxu0 0
    %2128 = vmatmul.mubr.bf16.gmra.mrb[0].mxu0 %v944
    %v2129 = vpop.f32.mrb[0].mxu0
    %v2130 = vadd.f32 0.0, %v2129
    %v2131 = vpop.f32.mrb[0].mxu0
    %v2132 = vpop.f32.mrb[0].mxu0
    %v2133 = vadd.f32 0.0, %v2132
    %v2134 = vpop.f32.mrb[0].mxu0
    %2135 = vmatprep.mubr.bf16.mxu0 0
    %2136 = vmatmul.mubr.bf16.gmra.mrb[0].mxu0 %v945
    %v2137 = vpop.f32.mrb[0].mxu0
    %v2138 = vadd.f32 0.0, %v2137
    %v2139 = vpop.f32.mrb[0].mxu0
    %v2140 = vpop.f32.mrb[0].mxu0
    %v2141 = vadd.f32 0.0, %v2140
    %v2142 = vpop.f32.mrb[0].mxu0
    %2143 = vmatprep.mubr.bf16.mxu0 0
    %2144 = vmatmul.mubr.bf16.gmra.mrb[0].mxu0 %v946
    %v2145 = vpop.f32.mrb[0].mxu0
    %v2146 = vadd.f32 0.0, %v2145
    %v2147 = vpop.f32.mrb[0].mxu0
    %v2148 = vpop.f32.mrb[0].mxu0
    %v2149 = vadd.f32 0.0, %v2148
    %v2150 = vpop.f32.mrb[0].mxu0
    %2151 = vmatprep.mubr.bf16.mxu0 0
    %2152 = vmatmul.mubr.bf16.gmra.mrb[0].mxu0 %v947
    %v2153 = vpop.f32.mrb[0].mxu0
    %v2154 = vadd.f32 0.0, %v2153
    %v2155 = vpop.f32.mrb[0].mxu0
    %v2156 = vpop.f32.mrb[0].mxu0
    %v2157 = vadd.f32 0.0, %v2156
    %v2158 = vpop.f32.mrb[0].mxu0
    %2159 = vmatprep.mubr.bf16.mxu0 0
    %2160 = vmatmul.mubr.bf16.gmra.mrb[0].mxu0 %v948
    %v2161 = vpop.f32.mrb[0].mxu0
    %v2162 = vadd.f32 0.0, %v2161
    %v2163 = vpop.f32.mrb[0].mxu0
    %v2164 = vpop.f32.mrb[0].mxu0
    %v2165 = vadd.f32 0.0, %v2164
    %v2166 = vpop.f32.mrb[0].mxu0
    %2167 = vmatprep.mubr.bf16.mxu0 0
    %2168 = vmatmul.mubr.bf16.gmra.mrb[0].mxu0 %v949
    %v2169 = vpop.f32.mrb[0].mxu0
    %v2170 = vadd.f32 0.0, %v2169
    %v2171 = vpop.f32.mrb[0].mxu0
    %v2172 = vpop.f32.mrb[0].mxu0
    %v2173 = vadd.f32 0.0, %v2172
    %v2174 = vpop.f32.mrb[0].mxu0
    %2175 = vmatprep.mubr.bf16.mxu0 0
    %2176 = vmatmul.mubr.bf16.gmra.mrb[0].mxu0 %v950
    %v2177 = vpop.f32.mrb[0].mxu0
    %v2178 = vadd.f32 0.0, %v2177
    %v2179 = vpop.f32.mrb[0].mxu0
    %v2180 = vpop.f32.mrb[0].mxu0
    %v2181 = vadd.f32 0.0, %v2180
    %v2182 = vpop.f32.mrb[0].mxu0
    %2183 = vdwg.mxu0
    %v2184 = vld [vmem:[%s0] sm:$0xff]
    %v2185 = vld [vmem:[%s0 + $0x8] sm:$0xff]
    %v2188 = vcombine.high %v2184, %v2184
    %v2190 = vunpack.c.l.s4 1966171168
    %v2191 = vunpack.c.0.s8 %v2190
    %v2192 = vlaneseq
    %v2193 = vshrl.u32 %v2192, 7
    %v2194 = vsub.s32 %v2191, %v2193
    %v2195 = vrot.slane %v2184, %v2194
    %v2197 = vunpack.c.l.s4 1966171168
    %v2198 = vunpack.c.0.s8 %v2197
    %v2199 = vlaneseq
    %v2200 = vshrl.u32 %v2199, 7
    %v2201 = vsub.s32 %v2198, %v2200
    %v2202 = vrot.slane %v2188, %v2201
    %v2203 = vcombine.high %v2195, %v2195
    %v2204 = vcombine.high %v2202, %v2202
    %v2206 = vunpack.c.l.s4 1966171168
    %v2207 = vunpack.c.0.s8 %v2206
    %v2208 = vlaneseq
    %v2209 = vshrl.u32 %v2208, 7
    %v2210 = vsub.s32 %v2207, %v2209
    %v2211 = vrot.slane %v2195, %v2210
    %v2213 = vunpack.c.l.s4 1966171168
    %v2214 = vunpack.c.0.s8 %v2213
    %v2215 = vlaneseq
    %v2216 = vshrl.u32 %v2215, 7
    %v2217 = vsub.s32 %v2214, %v2216
    %v2218 = vrot.slane %v2202, %v2217
    %v2220 = vunpack.c.l.s4 1966171168
    %v2221 = vunpack.c.0.s8 %v2220
    %v2222 = vlaneseq
    %v2223 = vshrl.u32 %v2222, 7
    %v2224 = vsub.s32 %v2221, %v2223
    %v2225 = vrot.slane %v2203, %v2224
    %v2227 = vunpack.c.l.s4 1966171168
    %v2228 = vunpack.c.0.s8 %v2227
    %v2229 = vlaneseq
    %v2230 = vshrl.u32 %v2229, 7
    %v2231 = vsub.s32 %v2228, %v2230
    %v2232 = vrot.slane %v2204, %v2231
    %v2233 = vcombine.high %v2211, %v2211
    %v2234 = vcombine.high %v2218, %v2218
    %v2235 = vcombine.high %v2225, %v2225
    %v2236 = vcombine.high %v2232, %v2232
    %v2237 = vcombine.high %v2185, %v2185
    %v2239 = vunpack.c.l.s4 1966171168
    %v2240 = vunpack.c.0.s8 %v2239
    %v2241 = vlaneseq
    %v2242 = vshrl.u32 %v2241, 7
    %v2243 = vsub.s32 %v2240, %v2242
    %v2244 = vrot.slane %v2185, %v2243
    %v2246 = vunpack.c.l.s4 1966171168
    %v2247 = vunpack.c.0.s8 %v2246
    %v2248 = vlaneseq
    %v2249 = vshrl.u32 %v2248, 7
    %v2250 = vsub.s32 %v2247, %v2249
    %v2251 = vrot.slane %v2237, %v2250
    %v2252 = vcombine.high %v2244, %v2244
    %v2253 = vcombine.high %v2251, %v2251
    %v2255 = vunpack.c.l.s4 1966171168
    %v2256 = vunpack.c.0.s8 %v2255
    %v2257 = vlaneseq
    %v2258 = vshrl.u32 %v2257, 7
    %v2259 = vsub.s32 %v2256, %v2258
    %v2260 = vrot.slane %v2244, %v2259
    %v2262 = vunpack.c.l.s4 1966171168
    %v2263 = vunpack.c.0.s8 %v2262
    %v2264 = vlaneseq
    %v2265 = vshrl.u32 %v2264, 7
    %v2266 = vsub.s32 %v2263, %v2265
    %v2267 = vrot.slane %v2251, %v2266
    %v2269 = vunpack.c.l.s4 1966171168
    %v2270 = vunpack.c.0.s8 %v2269
    %v2271 = vlaneseq
    %v2272 = vshrl.u32 %v2271, 7
    %v2273 = vsub.s32 %v2270, %v2272
    %v2274 = vrot.slane %v2252, %v2273
    %v2276 = vunpack.c.l.s4 1966171168
    %v2277 = vunpack.c.0.s8 %v2276
    %v2278 = vlaneseq
    %v2279 = vshrl.u32 %v2278, 7
    %v2280 = vsub.s32 %v2277, %v2279
    %v2281 = vrot.slane %v2253, %v2280
    %v2282 = vcombine.high %v2260, %v2260
    %v2283 = vcombine.high %v2267, %v2267
    %v2284 = vcombine.high %v2274, %v2274
    %v2285 = vcombine.high %v2281, %v2281
    %v2286 = vlaneseq
    %v2287 = vshrl.u32 %v2286, 7
    %v2288 = vsub.s32 0, %v2287
    %v2289 = vrot.slane %v2211, %v2288
    %v2290 = vlaneseq
    %v2291 = vshrl.u32 %v2290, 7
    %v2292 = vsub.s32 0, %v2291
    %v2293 = vrot.slane %v2225, %v2292
    %v2294 = vlaneseq
    %v2295 = vshrl.u32 %v2294, 7
    %v2296 = vsub.s32 0, %v2295
    %v2297 = vrot.slane %v2233, %v2296
    %v2298 = vlaneseq
    %v2299 = vshrl.u32 %v2298, 7
    %v2300 = vsub.s32 0, %v2299
    %v2301 = vrot.slane %v2235, %v2300
    %v2302 = vlaneseq
    %v2303 = vshrl.u32 %v2302, 7
    %v2304 = vsub.s32 0, %v2303
    %v2305 = vrot.slane %v2218, %v2304
    %v2306 = vlaneseq
    %v2307 = vshrl.u32 %v2306, 7
    %v2308 = vsub.s32 0, %v2307
    %v2309 = vrot.slane %v2232, %v2308
    %v2310 = vlaneseq
    %v2311 = vshrl.u32 %v2310, 7
    %v2312 = vsub.s32 0, %v2311
    %v2313 = vrot.slane %v2234, %v2312
    %v2314 = vlaneseq
    %v2315 = vshrl.u32 %v2314, 7
    %v2316 = vsub.s32 0, %v2315
    %v2317 = vrot.slane %v2236, %v2316
    %v2318 = vlaneseq
    %v2319 = vshrl.u32 %v2318, 7
    %v2320 = vsub.s32 0, %v2319
    %v2321 = vrot.slane %v2260, %v2320
    %v2322 = vlaneseq
    %v2323 = vshrl.u32 %v2322, 7
    %v2324 = vsub.s32 0, %v2323
    %v2325 = vrot.slane %v2274, %v2324
    %v2326 = vlaneseq
    %v2327 = vshrl.u32 %v2326, 7
    %v2328 = vsub.s32 0, %v2327
    %v2329 = vrot.slane %v2282, %v2328
    %v2330 = vlaneseq
    %v2331 = vshrl.u32 %v2330, 7
    %v2332 = vsub.s32 0, %v2331
    %v2333 = vrot.slane %v2284, %v2332
    %v2334 = vlaneseq
    %v2335 = vshrl.u32 %v2334, 7
    %v2336 = vsub.s32 0, %v2335
    %v2337 = vrot.slane %v2267, %v2336
    %v2338 = vlaneseq
    %v2339 = vshrl.u32 %v2338, 7
    %v2340 = vsub.s32 0, %v2339
    %v2341 = vrot.slane %v2281, %v2340
    %v2342 = vlaneseq
    %v2343 = vshrl.u32 %v2342, 7
    %v2344 = vsub.s32 0, %v2343
    %v2345 = vrot.slane %v2283, %v2344
    %v2346 = vlaneseq
    %v2347 = vshrl.u32 %v2346, 7
    %v2348 = vsub.s32 0, %v2347
    %v2349 = vrot.slane %v2285, %v2348
    %v2366 = vadd.f32 %v1162, %v2289
    %v2367 = vadd.f32 %v1165, %v2289
    %v2368 = vadd.f32 %v1170, %v2289
    %v2369 = vadd.f32 %v1173, %v2289
    %v2370 = vadd.f32 %v1178, %v2289
    %v2371 = vadd.f32 %v1181, %v2289
    %v2372 = vadd.f32 %v1186, %v2289
    %v2373 = vadd.f32 %v1189, %v2289
    %v2374 = vadd.f32 %v1194, %v2289
    %v2375 = vadd.f32 %v1197, %v2289
    %v2376 = vadd.f32 %v1202, %v2289
    %v2377 = vadd.f32 %v1205, %v2289
    %v2378 = vadd.f32 %v1210, %v2289
    %v2379 = vadd.f32 %v1213, %v2289
    %v2380 = vadd.f32 %v1218, %v2289
    %v2381 = vadd.f32 %v1221, %v2289
    %v2382 = vadd.f32 %v1226, %v2293
    %v2383 = vadd.f32 %v1229, %v2293
    %v2384 = vadd.f32 %v1234, %v2293
    %v2385 = vadd.f32 %v1237, %v2293
    %v2386 = vadd.f32 %v1242, %v2293
    %v2387 = vadd.f32 %v1245, %v2293
    %v2388 = vadd.f32 %v1250, %v2293
    %v2389 = vadd.f32 %v1253, %v2293
    %v2390 = vadd.f32 %v1258, %v2293
    %v2391 = vadd.f32 %v1261, %v2293
    %v2392 = vadd.f32 %v1266, %v2293
    %v2393 = vadd.f32 %v1269, %v2293
    %v2394 = vadd.f32 %v1274, %v2293
    %v2395 = vadd.f32 %v1277, %v2293
    %v2396 = vadd.f32 %v1282, %v2293
    %v2397 = vadd.f32 %v1285, %v2293
    %v2398 = vadd.f32 %v1290, %v2297
    %v2399 = vadd.f32 %v1293, %v2297
    %v2400 = vadd.f32 %v1298, %v2297
    %v2401 = vadd.f32 %v1301, %v2297
    %v2402 = vadd.f32 %v1306, %v2297
    %v2403 = vadd.f32 %v1309, %v2297
    %v2404 = vadd.f32 %v1314, %v2297
    %v2405 = vadd.f32 %v1317, %v2297
    %v2406 = vadd.f32 %v1322, %v2297
    %v2407 = vadd.f32 %v1325, %v2297
    %v2408 = vadd.f32 %v1330, %v2297
    %v2409 = vadd.f32 %v1333, %v2297
    %v2410 = vadd.f32 %v1338, %v2297
    %v2411 = vadd.f32 %v1341, %v2297
    %v2412 = vadd.f32 %v1346, %v2297
    %v2413 = vadd.f32 %v1349, %v2297
    %v2414 = vadd.f32 %v1354, %v2301
    %v2415 = vadd.f32 %v1357, %v2301
    %v2416 = vadd.f32 %v1362, %v2301
    %v2417 = vadd.f32 %v1365, %v2301
    %v2418 = vadd.f32 %v1370, %v2301
    %v2419 = vadd.f32 %v1373, %v2301
    %v2420 = vadd.f32 %v1378, %v2301
    %v2421 = vadd.f32 %v1381, %v2301
    %v2422 = vadd.f32 %v1386, %v2301
    %v2423 = vadd.f32 %v1389, %v2301
    %v2424 = vadd.f32 %v1394, %v2301
    %v2425 = vadd.f32 %v1397, %v2301
    %v2426 = vadd.f32 %v1402, %v2301
    %v2427 = vadd.f32 %v1405, %v2301
    %v2428 = vadd.f32 %v1410, %v2301
    %v2429 = vadd.f32 %v1413, %v2301
    %v2430 = vadd.f32 %v1418, %v2305
    %v2431 = vadd.f32 %v1421, %v2305
    %v2432 = vadd.f32 %v1426, %v2305
    %v2433 = vadd.f32 %v1429, %v2305
    %v2434 = vadd.f32 %v1434, %v2305
    %v2435 = vadd.f32 %v1437, %v2305
    %v2436 = vadd.f32 %v1442, %v2305
    %v2437 = vadd.f32 %v1445, %v2305
    %v2438 = vadd.f32 %v1450, %v2305
    %v2439 = vadd.f32 %v1453, %v2305
    %v2440 = vadd.f32 %v1458, %v2305
    %v2441 = vadd.f32 %v1461, %v2305
    %v2442 = vadd.f32 %v1466, %v2305
    %v2443 = vadd.f32 %v1469, %v2305
    %v2444 = vadd.f32 %v1474, %v2305
    %v2445 = vadd.f32 %v1477, %v2305
    %v2446 = vadd.f32 %v1482, %v2309
    %v2447 = vadd.f32 %v1485, %v2309
    %v2448 = vadd.f32 %v1490, %v2309
    %v2449 = vadd.f32 %v1493, %v2309
    %v2450 = vadd.f32 %v1498, %v2309
    %v2451 = vadd.f32 %v1501, %v2309
    %v2452 = vadd.f32 %v1506, %v2309
    %v2453 = vadd.f32 %v1509, %v2309
    %v2454 = vadd.f32 %v1514, %v2309
    %v2455 = vadd.f32 %v1517, %v2309
    %v2456 = vadd.f32 %v1522, %v2309
    %v2457 = vadd.f32 %v1525, %v2309
    %v2458 = vadd.f32 %v1530, %v2309
    %v2459 = vadd.f32 %v1533, %v2309
    %v2460 = vadd.f32 %v1538, %v2309
    %v2461 = vadd.f32 %v1541, %v2309
    %v2462 = vadd.f32 %v1546, %v2313
    %v2463 = vadd.f32 %v1549, %v2313
    %v2464 = vadd.f32 %v1554, %v2313
    %v2465 = vadd.f32 %v1557, %v2313
    %v2466 = vadd.f32 %v1562, %v2313
    %v2467 = vadd.f32 %v1565, %v2313
    %v2468 = vadd.f32 %v1570, %v2313
    %v2469 = vadd.f32 %v1573, %v2313
    %v2470 = vadd.f32 %v1578, %v2313
    %v2471 = vadd.f32 %v1581, %v2313
    %v2472 = vadd.f32 %v1586, %v2313
    %v2473 = vadd.f32 %v1589, %v2313
    %v2474 = vadd.f32 %v1594, %v2313
    %v2475 = vadd.f32 %v1597, %v2313
    %v2476 = vadd.f32 %v1602, %v2313
    %v2477 = vadd.f32 %v1605, %v2313
    %v2478 = vadd.f32 %v1610, %v2317
    %v2479 = vadd.f32 %v1613, %v2317
    %v2480 = vadd.f32 %v1618, %v2317
    %v2481 = vadd.f32 %v1621, %v2317
    %v2482 = vadd.f32 %v1626, %v2317
    %v2483 = vadd.f32 %v1629, %v2317
    %v2484 = vadd.f32 %v1634, %v2317
    %v2485 = vadd.f32 %v1637, %v2317
    %v2486 = vadd.f32 %v1642, %v2317
    %v2487 = vadd.f32 %v1645, %v2317
    %v2488 = vadd.f32 %v1650, %v2317
    %v2489 = vadd.f32 %v1653, %v2317
    %v2490 = vadd.f32 %v1658, %v2317
    %v2491 = vadd.f32 %v1661, %v2317
    %v2492 = vadd.f32 %v1666, %v2317
    %v2493 = vadd.f32 %v1669, %v2317
    %v2494 = vadd.f32 %v1674, %v2321
    %v2495 = vadd.f32 %v1677, %v2321
    %v2496 = vadd.f32 %v1682, %v2321
    %v2497 = vadd.f32 %v1685, %v2321
    %v2498 = vadd.f32 %v1690, %v2321
    %v2499 = vadd.f32 %v1693, %v2321
    %v2500 = vadd.f32 %v1698, %v2321
    %v2501 = vadd.f32 %v1701, %v2321
    %v2502 = vadd.f32 %v1706, %v2321
    %v2503 = vadd.f32 %v1709, %v2321
    %v2504 = vadd.f32 %v1714, %v2321
    %v2505 = vadd.f32 %v1717, %v2321
    %v2506 = vadd.f32 %v1722, %v2321
    %v2507 = vadd.f32 %v1725, %v2321
    %v2508 = vadd.f32 %v1730, %v2321
    %v2509 = vadd.f32 %v1733, %v2321
    %v2510 = vadd.f32 %v1738, %v2325
    %v2511 = vadd.f32 %v1741, %v2325
    %v2512 = vadd.f32 %v1746, %v2325
    %v2513 = vadd.f32 %v1749, %v2325
    %v2514 = vadd.f32 %v1754, %v2325
    %v2515 = vadd.f32 %v1757, %v2325
    %v2516 = vadd.f32 %v1762, %v2325
    %v2517 = vadd.f32 %v1765, %v2325
    %v2518 = vadd.f32 %v1770, %v2325
    %v2519 = vadd.f32 %v1773, %v2325
    %v2520 = vadd.f32 %v1778, %v2325
    %v2521 = vadd.f32 %v1781, %v2325
    %v2522 = vadd.f32 %v1786, %v2325
    %v2523 = vadd.f32 %v1789, %v2325
    %v2524 = vadd.f32 %v1794, %v2325
    %v2525 = vadd.f32 %v1797, %v2325
    %v2526 = vadd.f32 %v1802, %v2329
    %v2527 = vadd.f32 %v1805, %v2329
    %v2528 = vadd.f32 %v1810, %v2329
    %v2529 = vadd.f32 %v1813, %v2329
    %v2530 = vadd.f32 %v1818, %v2329
    %v2531 = vadd.f32 %v1821, %v2329
    %v2532 = vadd.f32 %v1826, %v2329
    %v2533 = vadd.f32 %v1829, %v2329
    %v2534 = vadd.f32 %v1834, %v2329
    %v2535 = vadd.f32 %v1837, %v2329
    %v2536 = vadd.f32 %v1842, %v2329
    %v2537 = vadd.f32 %v1845, %v2329
    %v2538 = vadd.f32 %v1850, %v2329
    %v2539 = vadd.f32 %v1853, %v2329
    %v2540 = vadd.f32 %v1858, %v2329
    %v2541 = vadd.f32 %v1861, %v2329
    %v2542 = vadd.f32 %v1866, %v2333
    %v2543 = vadd.f32 %v1869, %v2333
    %v2544 = vadd.f32 %v1874, %v2333
    %v2545 = vadd.f32 %v1877, %v2333
    %v2546 = vadd.f32 %v1882, %v2333
    %v2547 = vadd.f32 %v1885, %v2333
    %v2548 = vadd.f32 %v1890, %v2333
    %v2549 = vadd.f32 %v1893, %v2333
    %v2550 = vadd.f32 %v1898, %v2333
    %v2551 = vadd.f32 %v1901, %v2333
    %v2552 = vadd.f32 %v1906, %v2333
    %v2553 = vadd.f32 %v1909, %v2333
    %v2554 = vadd.f32 %v1914, %v2333
    %v2555 = vadd.f32 %v1917, %v2333
    %v2556 = vadd.f32 %v1922, %v2333
    %v2557 = vadd.f32 %v1925, %v2333
    %v2558 = vadd.f32 %v1930, %v2337
    %v2559 = vadd.f32 %v1933, %v2337
    %v2560 = vadd.f32 %v1938, %v2337
    %v2561 = vadd.f32 %v1941, %v2337
    %v2562 = vadd.f32 %v1946, %v2337
    %v2563 = vadd.f32 %v1949, %v2337
    %v2564 = vadd.f32 %v1954, %v2337
    %v2565 = vadd.f32 %v1957, %v2337
    %v2566 = vadd.f32 %v1962, %v2337
    %v2567 = vadd.f32 %v1965, %v2337
    %v2568 = vadd.f32 %v1970, %v2337
    %v2569 = vadd.f32 %v1973, %v2337
    %v2570 = vadd.f32 %v1978, %v2337
    %v2571 = vadd.f32 %v1981, %v2337
    %v2572 = vadd.f32 %v1986, %v2337
    %v2573 = vadd.f32 %v1989, %v2337
    %v2574 = vadd.f32 %v1994, %v2341
    %v2575 = vadd.f32 %v1997, %v2341
    %v2576 = vadd.f32 %v2002, %v2341
    %v2577 = vadd.f32 %v2005, %v2341
    %v2578 = vadd.f32 %v2010, %v2341
    %v2579 = vadd.f32 %v2013, %v2341
    %v2580 = vadd.f32 %v2018, %v2341
    %v2581 = vadd.f32 %v2021, %v2341
    %v2582 = vadd.f32 %v2026, %v2341
    %v2583 = vadd.f32 %v2029, %v2341
    %v2584 = vadd.f32 %v2034, %v2341
    %v2585 = vadd.f32 %v2037, %v2341
    %v2586 = vadd.f32 %v2042, %v2341
    %v2587 = vadd.f32 %v2045, %v2341
    %v2588 = vadd.f32 %v2050, %v2341
    %v2589 = vadd.f32 %v2053, %v2341
    %v2590 = vadd.f32 %v2058, %v2345
    %v2591 = vadd.f32 %v2061, %v2345
    %v2592 = vadd.f32 %v2066, %v2345
    %v2593 = vadd.f32 %v2069, %v2345
    %v2594 = vadd.f32 %v2074, %v2345
    %v2595 = vadd.f32 %v2077, %v2345
    %v2596 = vadd.f32 %v2082, %v2345
    %v2597 = vadd.f32 %v2085, %v2345
    %v2598 = vadd.f32 %v2090, %v2345
    %v2599 = vadd.f32 %v2093, %v2345
    %v2600 = vadd.f32 %v2098, %v2345
    %v2601 = vadd.f32 %v2101, %v2345
    %v2602 = vadd.f32 %v2106, %v2345
    %v2603 = vadd.f32 %v2109, %v2345
    %v2604 = vadd.f32 %v2114, %v2345
    %v2605 = vadd.f32 %v2117, %v2345
    %v2606 = vadd.f32 %v2122, %v2349
    %v2607 = vadd.f32 %v2125, %v2349
    %v2608 = vadd.f32 %v2130, %v2349
    %v2609 = vadd.f32 %v2133, %v2349
    %v2610 = vadd.f32 %v2138, %v2349
    %v2611 = vadd.f32 %v2141, %v2349
    %v2612 = vadd.f32 %v2146, %v2349
    %v2613 = vadd.f32 %v2149, %v2349
    %v2614 = vadd.f32 %v2154, %v2349
    %v2615 = vadd.f32 %v2157, %v2349
    %v2616 = vadd.f32 %v2162, %v2349
    %v2617 = vadd.f32 %v2165, %v2349
    %v2618 = vadd.f32 %v2170, %v2349
    %v2619 = vadd.f32 %v2173, %v2349
    %v2620 = vadd.f32 %v2178, %v2349
    %v2621 = vadd.f32 %v2181, %v2349
    %v2622 = vtanh.pop %v2366
    %v2623 = vtanh.pop %v2367
    %v2624 = vtanh.pop %v2368
    %v2625 = vtanh.pop %v2369
    %v2626 = vtanh.pop %v2370
    %v2627 = vtanh.pop %v2371
    %v2628 = vtanh.pop %v2372
    %v2629 = vtanh.pop %v2373
    %v2630 = vtanh.pop %v2374
    %v2631 = vtanh.pop %v2375
    %v2632 = vtanh.pop %v2376
    %v2633 = vtanh.pop %v2377
    %v2634 = vtanh.pop %v2378
    %v2635 = vtanh.pop %v2379
    %v2636 = vtanh.pop %v2380
    %v2637 = vtanh.pop %v2381
    %v2638 = vtanh.pop %v2382
    %v2639 = vtanh.pop %v2383
    %v2640 = vtanh.pop %v2384
    %v2641 = vtanh.pop %v2385
    %v2642 = vtanh.pop %v2386
    %v2643 = vtanh.pop %v2387
    %v2644 = vtanh.pop %v2388
    %v2645 = vtanh.pop %v2389
    %v2646 = vtanh.pop %v2390
    %v2647 = vtanh.pop %v2391
    %v2648 = vtanh.pop %v2392
    %v2649 = vtanh.pop %v2393
    %v2650 = vtanh.pop %v2394
    %v2651 = vtanh.pop %v2395
    %v2652 = vtanh.pop %v2396
    %v2653 = vtanh.pop %v2397
    %v2654 = vtanh.pop %v2398
    %v2655 = vtanh.pop %v2399
    %v2656 = vtanh.pop %v2400
    %v2657 = vtanh.pop %v2401
    %v2658 = vtanh.pop %v2402
    %v2659 = vtanh.pop %v2403
    %v2660 = vtanh.pop %v2404
    %v2661 = vtanh.pop %v2405
    %v2662 = vtanh.pop %v2406
    %v2663 = vtanh.pop %v2407
    %v2664 = vtanh.pop %v2408
    %v2665 = vtanh.pop %v2409
    %v2666 = vtanh.pop %v2410
    %v2667 = vtanh.pop %v2411
    %v2668 = vtanh.pop %v2412
    %v2669 = vtanh.pop %v2413
    %v2670 = vtanh.pop %v2414
    %v2671 = vtanh.pop %v2415
    %v2672 = vtanh.pop %v2416
    %v2673 = vtanh.pop %v2417
    %v2674 = vtanh.pop %v2418
    %v2675 = vtanh.pop %v2419
    %v2676 = vtanh.pop %v2420
    %v2677 = vtanh.pop %v2421
    %v2678 = vtanh.pop %v2422
    %v2679 = vtanh.pop %v2423
    %v2680 = vtanh.pop %v2424
    %v2681 = vtanh.pop %v2425
    %v2682 = vtanh.pop %v2426
    %v2683 = vtanh.pop %v2427
    %v2684 = vtanh.pop %v2428
    %v2685 = vtanh.pop %v2429
    %v2686 = vtanh.pop %v2430
    %v2687 = vtanh.pop %v2431
    %v2688 = vtanh.pop %v2432
    %v2689 = vtanh.pop %v2433
    %v2690 = vtanh.pop %v2434
    %v2691 = vtanh.pop %v2435
    %v2692 = vtanh.pop %v2436
    %v2693 = vtanh.pop %v2437
    %v2694 = vtanh.pop %v2438
    %v2695 = vtanh.pop %v2439
    %v2696 = vtanh.pop %v2440
    %v2697 = vtanh.pop %v2441
    %v2698 = vtanh.pop %v2442
    %v2699 = vtanh.pop %v2443
    %v2700 = vtanh.pop %v2444
    %v2701 = vtanh.pop %v2445
    %v2702 = vtanh.pop %v2446
    %v2703 = vtanh.pop %v2447
    %v2704 = vtanh.pop %v2448
    %v2705 = vtanh.pop %v2449
    %v2706 = vtanh.pop %v2450
    %v2707 = vtanh.pop %v2451
    %v2708 = vtanh.pop %v2452
    %v2709 = vtanh.pop %v2453
    %v2710 = vtanh.pop %v2454
    %v2711 = vtanh.pop %v2455
    %v2712 = vtanh.pop %v2456
    %v2713 = vtanh.pop %v2457
    %v2714 = vtanh.pop %v2458
    %v2715 = vtanh.pop %v2459
    %v2716 = vtanh.pop %v2460
    %v2717 = vtanh.pop %v2461
    %v2718 = vtanh.pop %v2462
    %v2719 = vtanh.pop %v2463
    %v2720 = vtanh.pop %v2464
    %v2721 = vtanh.pop %v2465
    %v2722 = vtanh.pop %v2466
    %v2723 = vtanh.pop %v2467
    %v2724 = vtanh.pop %v2468
    %v2725 = vtanh.pop %v2469
    %v2726 = vtanh.pop %v2470
    %v2727 = vtanh.pop %v2471
    %v2728 = vtanh.pop %v2472
    %v2729 = vtanh.pop %v2473
    %v2730 = vtanh.pop %v2474
    %v2731 = vtanh.pop %v2475
    %v2732 = vtanh.pop %v2476
    %v2733 = vtanh.pop %v2477
    %v2734 = vtanh.pop %v2478
    %v2735 = vtanh.pop %v2479
    %v2736 = vtanh.pop %v2480
    %v2737 = vtanh.pop %v2481
    %v2738 = vtanh.pop %v2482
    %v2739 = vtanh.pop %v2483
    %v2740 = vtanh.pop %v2484
    %v2741 = vtanh.pop %v2485
    %v2742 = vtanh.pop %v2486
    %v2743 = vtanh.pop %v2487
    %v2744 = vtanh.pop %v2488
    %v2745 = vtanh.pop %v2489
    %v2746 = vtanh.pop %v2490
    %v2747 = vtanh.pop %v2491
    %v2748 = vtanh.pop %v2492
    %v2749 = vtanh.pop %v2493
    %v2750 = vtanh.pop %v2494
    %v2751 = vtanh.pop %v2495
    %v2752 = vtanh.pop %v2496
    %v2753 = vtanh.pop %v2497
    %v2754 = vtanh.pop %v2498
    %v2755 = vtanh.pop %v2499
    %v2756 = vtanh.pop %v2500
    %v2757 = vtanh.pop %v2501
    %v2758 = vtanh.pop %v2502
    %v2759 = vtanh.pop %v2503
    %v2760 = vtanh.pop %v2504
    %v2761 = vtanh.pop %v2505
    %v2762 = vtanh.pop %v2506
    %v2763 = vtanh.pop %v2507
    %v2764 = vtanh.pop %v2508
    %v2765 = vtanh.pop %v2509
    %v2766 = vtanh.pop %v2510
    %v2767 = vtanh.pop %v2511
    %v2768 = vtanh.pop %v2512
    %v2769 = vtanh.pop %v2513
    %v2770 = vtanh.pop %v2514
    %v2771 = vtanh.pop %v2515
    %v2772 = vtanh.pop %v2516
    %v2773 = vtanh.pop %v2517
    %v2774 = vtanh.pop %v2518
    %v2775 = vtanh.pop %v2519
    %v2776 = vtanh.pop %v2520
    %v2777 = vtanh.pop %v2521
    %v2778 = vtanh.pop %v2522
    %v2779 = vtanh.pop %v2523
    %v2780 = vtanh.pop %v2524
    %v2781 = vtanh.pop %v2525
    %v2782 = vtanh.pop %v2526
    %v2783 = vtanh.pop %v2527
    %v2784 = vtanh.pop %v2528
    %v2785 = vtanh.pop %v2529
    %v2786 = vtanh.pop %v2530
    %v2787 = vtanh.pop %v2531
    %v2788 = vtanh.pop %v2532
    %v2789 = vtanh.pop %v2533
    %v2790 = vtanh.pop %v2534
    %v2791 = vtanh.pop %v2535
    %v2792 = vtanh.pop %v2536
    %v2793 = vtanh.pop %v2537
    %v2794 = vtanh.pop %v2538
    %v2795 = vtanh.pop %v2539
    %v2796 = vtanh.pop %v2540
    %v2797 = vtanh.pop %v2541
    %v2798 = vtanh.pop %v2542
    %v2799 = vtanh.pop %v2543
    %v2800 = vtanh.pop %v2544
    %v2801 = vtanh.pop %v2545
    %v2802 = vtanh.pop %v2546
    %v2803 = vtanh.pop %v2547
    %v2804 = vtanh.pop %v2548
    %v2805 = vtanh.pop %v2549
    %v2806 = vtanh.pop %v2550
    %v2807 = vtanh.pop %v2551
    %v2808 = vtanh.pop %v2552
    %v2809 = vtanh.pop %v2553
    %v2810 = vtanh.pop %v2554
    %v2811 = vtanh.pop %v2555
    %v2812 = vtanh.pop %v2556
    %v2813 = vtanh.pop %v2557
    %v2814 = vtanh.pop %v2558
    %v2815 = vtanh.pop %v2559
    %v2816 = vtanh.pop %v2560
    %v2817 = vtanh.pop %v2561
    %v2818 = vtanh.pop %v2562
    %v2819 = vtanh.pop %v2563
    %v2820 = vtanh.pop %v2564
    %v2821 = vtanh.pop %v2565
    %v2822 = vtanh.pop %v2566
    %v2823 = vtanh.pop %v2567
    %v2824 = vtanh.pop %v2568
    %v2825 = vtanh.pop %v2569
    %v2826 = vtanh.pop %v2570
    %v2827 = vtanh.pop %v2571
    %v2828 = vtanh.pop %v2572
    %v2829 = vtanh.pop %v2573
    %v2830 = vtanh.pop %v2574
    %v2831 = vtanh.pop %v2575
    %v2832 = vtanh.pop %v2576
    %v2833 = vtanh.pop %v2577
    %v2834 = vtanh.pop %v2578
    %v2835 = vtanh.pop %v2579
    %v2836 = vtanh.pop %v2580
    %v2837 = vtanh.pop %v2581
    %v2838 = vtanh.pop %v2582
    %v2839 = vtanh.pop %v2583
    %v2840 = vtanh.pop %v2584
    %v2841 = vtanh.pop %v2585
    %v2842 = vtanh.pop %v2586
    %v2843 = vtanh.pop %v2587
    %v2844 = vtanh.pop %v2588
    %v2845 = vtanh.pop %v2589
    %v2846 = vtanh.pop %v2590
    %v2847 = vtanh.pop %v2591
    %v2848 = vtanh.pop %v2592
    %v2849 = vtanh.pop %v2593
    %v2850 = vtanh.pop %v2594
    %v2851 = vtanh.pop %v2595
    %v2852 = vtanh.pop %v2596
    %v2853 = vtanh.pop %v2597
    %v2854 = vtanh.pop %v2598
    %v2855 = vtanh.pop %v2599
    %v2856 = vtanh.pop %v2600
    %v2857 = vtanh.pop %v2601
    %v2858 = vtanh.pop %v2602
    %v2859 = vtanh.pop %v2603
    %v2860 = vtanh.pop %v2604
    %v2861 = vtanh.pop %v2605
    %v2862 = vtanh.pop %v2606
    %v2863 = vtanh.pop %v2607
    %v2864 = vtanh.pop %v2608
    %v2865 = vtanh.pop %v2609
    %v2866 = vtanh.pop %v2610
    %v2867 = vtanh.pop %v2611
    %v2868 = vtanh.pop %v2612
    %v2869 = vtanh.pop %v2613
    %v2870 = vtanh.pop %v2614
    %v2871 = vtanh.pop %v2615
    %v2872 = vtanh.pop %v2616
    %v2873 = vtanh.pop %v2617
    %v2874 = vtanh.pop %v2618
    %v2875 = vtanh.pop %v2619
    %v2876 = vtanh.pop %v2620
    %v2877 = vtanh.pop %v2621
    %v2878 = vld [vmem:[%s4] sm:$0x1]
    %v2880 = vlaneseq
    %v2881 = vshrl.u32 %v2880, 7
    %v2882 = vsub.s32 0, %v2881
    %v2883 = vrot.slane %v2878, %v2882
    %v2885 = vmul.f32 %v2622, %v2883
    %v2886 = vmul.f32 %v2623, %v2883
    %v2887 = vmul.f32 %v2624, %v2883
    %v2888 = vmul.f32 %v2625, %v2883
    %v2889 = vmul.f32 %v2626, %v2883
    %v2890 = vmul.f32 %v2627, %v2883
    %v2891 = vmul.f32 %v2628, %v2883
    %v2892 = vmul.f32 %v2629, %v2883
    %v2893 = vmul.f32 %v2630, %v2883
    %v2894 = vmul.f32 %v2631, %v2883
    %v2895 = vmul.f32 %v2632, %v2883
    %v2896 = vmul.f32 %v2633, %v2883
    %v2897 = vmul.f32 %v2634, %v2883
    %v2898 = vmul.f32 %v2635, %v2883
    %v2899 = vmul.f32 %v2636, %v2883
    %v2900 = vmul.f32 %v2637, %v2883
    %v2901 = vmul.f32 %v2638, %v2883
    %v2902 = vmul.f32 %v2639, %v2883
    %v2903 = vmul.f32 %v2640, %v2883
    %v2904 = vmul.f32 %v2641, %v2883
    %v2905 = vmul.f32 %v2642, %v2883
    %v2906 = vmul.f32 %v2643, %v2883
    %v2907 = vmul.f32 %v2644, %v2883
    %v2908 = vmul.f32 %v2645, %v2883
    %v2909 = vmul.f32 %v2646, %v2883
    %v2910 = vmul.f32 %v2647, %v2883
    %v2911 = vmul.f32 %v2648, %v2883
    %v2912 = vmul.f32 %v2649, %v2883
    %v2913 = vmul.f32 %v2650, %v2883
    %v2914 = vmul.f32 %v2651, %v2883
    %v2915 = vmul.f32 %v2652, %v2883
    %v2916 = vmul.f32 %v2653, %v2883
    %v2917 = vmul.f32 %v2654, %v2883
    %v2918 = vmul.f32 %v2655, %v2883
    %v2919 = vmul.f32 %v2656, %v2883
    %v2920 = vmul.f32 %v2657, %v2883
    %v2921 = vmul.f32 %v2658, %v2883
    %v2922 = vmul.f32 %v2659, %v2883
    %v2923 = vmul.f32 %v2660, %v2883
    %v2924 = vmul.f32 %v2661, %v2883
    %v2925 = vmul.f32 %v2662, %v2883
    %v2926 = vmul.f32 %v2663, %v2883
    %v2927 = vmul.f32 %v2664, %v2883
    %v2928 = vmul.f32 %v2665, %v2883
    %v2929 = vmul.f32 %v2666, %v2883
    %v2930 = vmul.f32 %v2667, %v2883
    %v2931 = vmul.f32 %v2668, %v2883
    %v2932 = vmul.f32 %v2669, %v2883
    %v2933 = vmul.f32 %v2670, %v2883
    %v2934 = vmul.f32 %v2671, %v2883
    %v2935 = vmul.f32 %v2672, %v2883
    %v2936 = vmul.f32 %v2673, %v2883
    %v2937 = vmul.f32 %v2674, %v2883
    %v2938 = vmul.f32 %v2675, %v2883
    %v2939 = vmul.f32 %v2676, %v2883
    %v2940 = vmul.f32 %v2677, %v2883
    %v2941 = vmul.f32 %v2678, %v2883
    %v2942 = vmul.f32 %v2679, %v2883
    %v2943 = vmul.f32 %v2680, %v2883
    %v2944 = vmul.f32 %v2681, %v2883
    %v2945 = vmul.f32 %v2682, %v2883
    %v2946 = vmul.f32 %v2683, %v2883
    %v2947 = vmul.f32 %v2684, %v2883
    %v2948 = vmul.f32 %v2685, %v2883
    %v2949 = vmul.f32 %v2686, %v2883
    %v2950 = vmul.f32 %v2687, %v2883
    %v2951 = vmul.f32 %v2688, %v2883
    %v2952 = vmul.f32 %v2689, %v2883
    %v2953 = vmul.f32 %v2690, %v2883
    %v2954 = vmul.f32 %v2691, %v2883
    %v2955 = vmul.f32 %v2692, %v2883
    %v2956 = vmul.f32 %v2693, %v2883
    %v2957 = vmul.f32 %v2694, %v2883
    %v2958 = vmul.f32 %v2695, %v2883
    %v2959 = vmul.f32 %v2696, %v2883
    %v2960 = vmul.f32 %v2697, %v2883
    %v2961 = vmul.f32 %v2698, %v2883
    %v2962 = vmul.f32 %v2699, %v2883
    %v2963 = vmul.f32 %v2700, %v2883
    %v2964 = vmul.f32 %v2701, %v2883
    %v2965 = vmul.f32 %v2702, %v2883
    %v2966 = vmul.f32 %v2703, %v2883
    %v2967 = vmul.f32 %v2704, %v2883
    %v2968 = vmul.f32 %v2705, %v2883
    %v2969 = vmul.f32 %v2706, %v2883
    %v2970 = vmul.f32 %v2707, %v2883
    %v2971 = vmul.f32 %v2708, %v2883
    %v2972 = vmul.f32 %v2709, %v2883
    %v2973 = vmul.f32 %v2710, %v2883
    %v2974 = vmul.f32 %v2711, %v2883
    %v2975 = vmul.f32 %v2712, %v2883
    %v2976 = vmul.f32 %v2713, %v2883
    %v2977 = vmul.f32 %v2714, %v2883
    %v2978 = vmul.f32 %v2715, %v2883
    %v2979 = vmul.f32 %v2716, %v2883
    %v2980 = vmul.f32 %v2717, %v2883
    %v2981 = vmul.f32 %v2718, %v2883
    %v2982 = vmul.f32 %v2719, %v2883
    %v2983 = vmul.f32 %v2720, %v2883
    %v2984 = vmul.f32 %v2721, %v2883
    %v2985 = vmul.f32 %v2722, %v2883
    %v2986 = vmul.f32 %v2723, %v2883
    %v2987 = vmul.f32 %v2724, %v2883
    %v2988 = vmul.f32 %v2725, %v2883
    %v2989 = vmul.f32 %v2726, %v2883
    %v2990 = vmul.f32 %v2727, %v2883
    %v2991 = vmul.f32 %v2728, %v2883
    %v2992 = vmul.f32 %v2729, %v2883
    %v2993 = vmul.f32 %v2730, %v2883
    %v2994 = vmul.f32 %v2731, %v2883
    %v2995 = vmul.f32 %v2732, %v2883
    %v2996 = vmul.f32 %v2733, %v2883
    %v2997 = vmul.f32 %v2734, %v2883
    %v2998 = vmul.f32 %v2735, %v2883
    %v2999 = vmul.f32 %v2736, %v2883
    %v3000 = vmul.f32 %v2737, %v2883
    %v3001 = vmul.f32 %v2738, %v2883
    %v3002 = vmul.f32 %v2739, %v2883
    %v3003 = vmul.f32 %v2740, %v2883
    %v3004 = vmul.f32 %v2741, %v2883
    %v3005 = vmul.f32 %v2742, %v2883
    %v3006 = vmul.f32 %v2743, %v2883
    %v3007 = vmul.f32 %v2744, %v2883
    %v3008 = vmul.f32 %v2745, %v2883
    %v3009 = vmul.f32 %v2746, %v2883
    %v3010 = vmul.f32 %v2747, %v2883
    %v3011 = vmul.f32 %v2748, %v2883
    %v3012 = vmul.f32 %v2749, %v2883
    %v3013 = vmul.f32 %v2750, %v2883
    %v3014 = vmul.f32 %v2751, %v2883
    %v3015 = vmul.f32 %v2752, %v2883
    %v3016 = vmul.f32 %v2753, %v2883
    %v3017 = vmul.f32 %v2754, %v2883
    %v3018 = vmul.f32 %v2755, %v2883
    %v3019 = vmul.f32 %v2756, %v2883
    %v3020 = vmul.f32 %v2757, %v2883
    %v3021 = vmul.f32 %v2758, %v2883
    %v3022 = vmul.f32 %v2759, %v2883
    %v3023 = vmul.f32 %v2760, %v2883
    %v3024 = vmul.f32 %v2761, %v2883
    %v3025 = vmul.f32 %v2762, %v2883
    %v3026 = vmul.f32 %v2763, %v2883
    %v3027 = vmul.f32 %v2764, %v2883
    %v3028 = vmul.f32 %v2765, %v2883
    %v3029 = vmul.f32 %v2766, %v2883
    %v3030 = vmul.f32 %v2767, %v2883
    %v3031 = vmul.f32 %v2768, %v2883
    %v3032 = vmul.f32 %v2769, %v2883
    %v3033 = vmul.f32 %v2770, %v2883
    %v3034 = vmul.f32 %v2771, %v2883
    %v3035 = vmul.f32 %v2772, %v2883
    %v3036 = vmul.f32 %v2773, %v2883
    %v3037 = vmul.f32 %v2774, %v2883
    %v3038 = vmul.f32 %v2775, %v2883
    %v3039 = vmul.f32 %v2776, %v2883
    %v3040 = vmul.f32 %v2777, %v2883
    %v3041 = vmul.f32 %v2778, %v2883
    %v3042 = vmul.f32 %v2779, %v2883
    %v3043 = vmul.f32 %v2780, %v2883
    %v3044 = vmul.f32 %v2781, %v2883
    %v3045 = vmul.f32 %v2782, %v2883
    %v3046 = vmul.f32 %v2783, %v2883
    %v3047 = vmul.f32 %v2784, %v2883
    %v3048 = vmul.f32 %v2785, %v2883
    %v3049 = vmul.f32 %v2786, %v2883
    %v3050 = vmul.f32 %v2787, %v2883
    %v3051 = vmul.f32 %v2788, %v2883
    %v3052 = vmul.f32 %v2789, %v2883
    %v3053 = vmul.f32 %v2790, %v2883
    %v3054 = vmul.f32 %v2791, %v2883
    %v3055 = vmul.f32 %v2792, %v2883
    %v3056 = vmul.f32 %v2793, %v2883
    %v3057 = vmul.f32 %v2794, %v2883
    %v3058 = vmul.f32 %v2795, %v2883
    %v3059 = vmul.f32 %v2796, %v2883
    %v3060 = vmul.f32 %v2797, %v2883
    %v3061 = vmul.f32 %v2798, %v2883
    %v3062 = vmul.f32 %v2799, %v2883
    %v3063 = vmul.f32 %v2800, %v2883
    %v3064 = vmul.f32 %v2801, %v2883
    %v3065 = vmul.f32 %v2802, %v2883
    %v3066 = vmul.f32 %v2803, %v2883
    %v3067 = vmul.f32 %v2804, %v2883
    %v3068 = vmul.f32 %v2805, %v2883
    %v3069 = vmul.f32 %v2806, %v2883
    %v3070 = vmul.f32 %v2807, %v2883
    %v3071 = vmul.f32 %v2808, %v2883
    %v3072 = vmul.f32 %v2809, %v2883
    %v3073 = vmul.f32 %v2810, %v2883
    %v3074 = vmul.f32 %v2811, %v2883
    %v3075 = vmul.f32 %v2812, %v2883
    %v3076 = vmul.f32 %v2813, %v2883
    %v3077 = vmul.f32 %v2814, %v2883
    %v3078 = vmul.f32 %v2815, %v2883
    %v3079 = vmul.f32 %v2816, %v2883
    %v3080 = vmul.f32 %v2817, %v2883
    %v3081 = vmul.f32 %v2818, %v2883
    %v3082 = vmul.f32 %v2819, %v2883
    %v3083 = vmul.f32 %v2820, %v2883
    %v3084 = vmul.f32 %v2821, %v2883
    %v3085 = vmul.f32 %v2822, %v2883
    %v3086 = vmul.f32 %v2823, %v2883
    %v3087 = vmul.f32 %v2824, %v2883
    %v3088 = vmul.f32 %v2825, %v2883
    %v3089 = vmul.f32 %v2826, %v2883
    %v3090 = vmul.f32 %v2827, %v2883
    %v3091 = vmul.f32 %v2828, %v2883
    %v3092 = vmul.f32 %v2829, %v2883
    %v3093 = vmul.f32 %v2830, %v2883
    %v3094 = vmul.f32 %v2831, %v2883
    %v3095 = vmul.f32 %v2832, %v2883
    %v3096 = vmul.f32 %v2833, %v2883
    %v3097 = vmul.f32 %v2834, %v2883
    %v3098 = vmul.f32 %v2835, %v2883
    %v3099 = vmul.f32 %v2836, %v2883
    %v3100 = vmul.f32 %v2837, %v2883
    %v3101 = vmul.f32 %v2838, %v2883
    %v3102 = vmul.f32 %v2839, %v2883
    %v3103 = vmul.f32 %v2840, %v2883
    %v3104 = vmul.f32 %v2841, %v2883
    %v3105 = vmul.f32 %v2842, %v2883
    %v3106 = vmul.f32 %v2843, %v2883
    %v3107 = vmul.f32 %v2844, %v2883
    %v3108 = vmul.f32 %v2845, %v2883
    %v3109 = vmul.f32 %v2846, %v2883
    %v3110 = vmul.f32 %v2847, %v2883
    %v3111 = vmul.f32 %v2848, %v2883
    %v3112 = vmul.f32 %v2849, %v2883
    %v3113 = vmul.f32 %v2850, %v2883
    %v3114 = vmul.f32 %v2851, %v2883
    %v3115 = vmul.f32 %v2852, %v2883
    %v3116 = vmul.f32 %v2853, %v2883
    %v3117 = vmul.f32 %v2854, %v2883
    %v3118 = vmul.f32 %v2855, %v2883
    %v3119 = vmul.f32 %v2856, %v2883
    %v3120 = vmul.f32 %v2857, %v2883
    %v3121 = vmul.f32 %v2858, %v2883
    %v3122 = vmul.f32 %v2859, %v2883
    %v3123 = vmul.f32 %v2860, %v2883
    %v3124 = vmul.f32 %v2861, %v2883
    %v3125 = vmul.f32 %v2862, %v2883
    %v3126 = vmul.f32 %v2863, %v2883
    %v3127 = vmul.f32 %v2864, %v2883
    %v3128 = vmul.f32 %v2865, %v2883
    %v3129 = vmul.f32 %v2866, %v2883
    %v3130 = vmul.f32 %v2867, %v2883
    %v3131 = vmul.f32 %v2868, %v2883
    %v3132 = vmul.f32 %v2869, %v2883
    %v3133 = vmul.f32 %v2870, %v2883
    %v3134 = vmul.f32 %v2871, %v2883
    %v3135 = vmul.f32 %v2872, %v2883
    %v3136 = vmul.f32 %v2873, %v2883
    %v3137 = vmul.f32 %v2874, %v2883
    %v3138 = vmul.f32 %v2875, %v2883
    %v3139 = vmul.f32 %v2876, %v2883
    %v3140 = vmul.f32 %v2877, %v2883
    %vm3141 = vcmask 261120
    %v3142 = vsel %vm3141, %v2885, 0.0
    %3143 = vadd.xlane.f32.xlu0 %v3142
    %v3144 = vpop.xlane.xlu0 %3143
    %v3145 = vsel %vm3141, %v2886, 0.0
    %3146 = vadd.xlane.f32.xlu0 %v3145
    %v3147 = vpop.xlane.xlu0 %3146
    %v3148 = vsel %vm3141, %v2887, 0.0
    %3149 = vadd.xlane.f32.xlu0 %v3148
    %v3150 = vpop.xlane.xlu0 %3149
    %v3151 = vsel %vm3141, %v2888, 0.0
    %3152 = vadd.xlane.f32.xlu0 %v3151
    %v3153 = vpop.xlane.xlu0 %3152
    %v3154 = vsel %vm3141, %v2889, 0.0
    %3155 = vadd.xlane.f32.xlu0 %v3154
    %v3156 = vpop.xlane.xlu0 %3155
    %v3157 = vsel %vm3141, %v2890, 0.0
    %3158 = vadd.xlane.f32.xlu0 %v3157
    %v3159 = vpop.xlane.xlu0 %3158
    %v3160 = vsel %vm3141, %v2891, 0.0
    %3161 = vadd.xlane.f32.xlu0 %v3160
    %v3162 = vpop.xlane.xlu0 %3161
    %v3163 = vsel %vm3141, %v2892, 0.0
    %3164 = vadd.xlane.f32.xlu0 %v3163
    %v3165 = vpop.xlane.xlu0 %3164
    %v3166 = vsel %vm3141, %v2893, 0.0
    %3167 = vadd.xlane.f32.xlu0 %v3166
    %v3168 = vpop.xlane.xlu0 %3167
    %v3169 = vsel %vm3141, %v2894, 0.0
    %3170 = vadd.xlane.f32.xlu0 %v3169
    %v3171 = vpop.xlane.xlu0 %3170
    %v3172 = vsel %vm3141, %v2895, 0.0
    %3173 = vadd.xlane.f32.xlu0 %v3172
    %v3174 = vpop.xlane.xlu0 %3173
    %v3175 = vsel %vm3141, %v2896, 0.0
    %3176 = vadd.xlane.f32.xlu0 %v3175
    %v3177 = vpop.xlane.xlu0 %3176
    %v3178 = vsel %vm3141, %v2897, 0.0
    %3179 = vadd.xlane.f32.xlu0 %v3178
    %v3180 = vpop.xlane.xlu0 %3179
    %v3181 = vsel %vm3141, %v2898, 0.0
    %3182 = vadd.xlane.f32.xlu0 %v3181
    %v3183 = vpop.xlane.xlu0 %3182
    %v3184 = vsel %vm3141, %v2899, 0.0
    %3185 = vadd.xlane.f32.xlu0 %v3184
    %v3186 = vpop.xlane.xlu0 %3185
    %v3187 = vsel %vm3141, %v2900, 0.0
    %3188 = vadd.xlane.f32.xlu0 %v3187
    %v3189 = vpop.xlane.xlu0 %3188
    %v3190 = vsel %vm3141, %v2901, 0.0
    %3191 = vadd.xlane.f32.xlu0 %v3190
    %v3192 = vpop.xlane.xlu0 %3191
    %v3193 = vsel %vm3141, %v2902, 0.0
    %3194 = vadd.xlane.f32.xlu0 %v3193
    %v3195 = vpop.xlane.xlu0 %3194
    %v3196 = vsel %vm3141, %v2903, 0.0
    %3197 = vadd.xlane.f32.xlu0 %v3196
    %v3198 = vpop.xlane.xlu0 %3197
    %v3199 = vsel %vm3141, %v2904, 0.0
    %3200 = vadd.xlane.f32.xlu0 %v3199
    %v3201 = vpop.xlane.xlu0 %3200
    %v3202 = vsel %vm3141, %v2905, 0.0
    %3203 = vadd.xlane.f32.xlu0 %v3202
    %v3204 = vpop.xlane.xlu0 %3203
    %v3205 = vsel %vm3141, %v2906, 0.0
    %3206 = vadd.xlane.f32.xlu0 %v3205
    %v3207 = vpop.xlane.xlu0 %3206
    %v3208 = vsel %vm3141, %v2907, 0.0
    %3209 = vadd.xlane.f32.xlu0 %v3208
    %v3210 = vpop.xlane.xlu0 %3209
    %v3211 = vsel %vm3141, %v2908, 0.0
    %3212 = vadd.xlane.f32.xlu0 %v3211
    %v3213 = vpop.xlane.xlu0 %3212
    %v3214 = vsel %vm3141, %v2909, 0.0
    %3215 = vadd.xlane.f32.xlu0 %v3214
    %v3216 = vpop.xlane.xlu0 %3215
    %v3217 = vsel %vm3141, %v2910, 0.0
    %3218 = vadd.xlane.f32.xlu0 %v3217
    %v3219 = vpop.xlane.xlu0 %3218
    %v3220 = vsel %vm3141, %v2911, 0.0
    %3221 = vadd.xlane.f32.xlu0 %v3220
    %v3222 = vpop.xlane.xlu0 %3221
    %v3223 = vsel %vm3141, %v2912, 0.0
    %3224 = vadd.xlane.f32.xlu0 %v3223
    %v3225 = vpop.xlane.xlu0 %3224
    %v3226 = vsel %vm3141, %v2913, 0.0
    %3227 = vadd.xlane.f32.xlu0 %v3226
    %v3228 = vpop.xlane.xlu0 %3227
    %v3229 = vsel %vm3141, %v2914, 0.0
    %3230 = vadd.xlane.f32.xlu0 %v3229
    %v3231 = vpop.xlane.xlu0 %3230
    %v3232 = vsel %vm3141, %v2915, 0.0
    %3233 = vadd.xlane.f32.xlu0 %v3232
    %v3234 = vpop.xlane.xlu0 %3233
    %v3235 = vsel %vm3141, %v2916, 0.0
    %3236 = vadd.xlane.f32.xlu0 %v3235
    %v3237 = vpop.xlane.xlu0 %3236
    %v3238 = vsel %vm3141, %v2917, 0.0
    %3239 = vadd.xlane.f32.xlu0 %v3238
    %v3240 = vpop.xlane.xlu0 %3239
    %v3241 = vsel %vm3141, %v2918, 0.0
    %3242 = vadd.xlane.f32.xlu0 %v3241
    %v3243 = vpop.xlane.xlu0 %3242
    %v3244 = vsel %vm3141, %v2919, 0.0
    %3245 = vadd.xlane.f32.xlu0 %v3244
    %v3246 = vpop.xlane.xlu0 %3245
    %v3247 = vsel %vm3141, %v2920, 0.0
    %3248 = vadd.xlane.f32.xlu0 %v3247
    %v3249 = vpop.xlane.xlu0 %3248
    %v3250 = vsel %vm3141, %v2921, 0.0
    %3251 = vadd.xlane.f32.xlu0 %v3250
    %v3252 = vpop.xlane.xlu0 %3251
    %v3253 = vsel %vm3141, %v2922, 0.0
    %3254 = vadd.xlane.f32.xlu0 %v3253
    %v3255 = vpop.xlane.xlu0 %3254
    %v3256 = vsel %vm3141, %v2923, 0.0
    %3257 = vadd.xlane.f32.xlu0 %v3256
    %v3258 = vpop.xlane.xlu0 %3257
    %v3259 = vsel %vm3141, %v2924, 0.0
    %3260 = vadd.xlane.f32.xlu0 %v3259
    %v3261 = vpop.xlane.xlu0 %3260
    %v3262 = vsel %vm3141, %v2925, 0.0
    %3263 = vadd.xlane.f32.xlu0 %v3262
    %v3264 = vpop.xlane.xlu0 %3263
    %v3265 = vsel %vm3141, %v2926, 0.0
    %3266 = vadd.xlane.f32.xlu0 %v3265
    %v3267 = vpop.xlane.xlu0 %3266
    %v3268 = vsel %vm3141, %v2927, 0.0
    %3269 = vadd.xlane.f32.xlu0 %v3268
    %v3270 = vpop.xlane.xlu0 %3269
    %v3271 = vsel %vm3141, %v2928, 0.0
    %3272 = vadd.xlane.f32.xlu0 %v3271
    %v3273 = vpop.xlane.xlu0 %3272
    %v3274 = vsel %vm3141, %v2929, 0.0
    %3275 = vadd.xlane.f32.xlu0 %v3274
    %v3276 = vpop.xlane.xlu0 %3275
    %v3277 = vsel %vm3141, %v2930, 0.0
    %3278 = vadd.xlane.f32.xlu0 %v3277
    %v3279 = vpop.xlane.xlu0 %3278
    %v3280 = vsel %vm3141, %v2931, 0.0
    %3281 = vadd.xlane.f32.xlu0 %v3280
    %v3282 = vpop.xlane.xlu0 %3281
    %v3283 = vsel %vm3141, %v2932, 0.0
    %3284 = vadd.xlane.f32.xlu0 %v3283
    %v3285 = vpop.xlane.xlu0 %3284
    %v3286 = vsel %vm3141, %v2933, 0.0
    %3287 = vadd.xlane.f32.xlu0 %v3286
    %v3288 = vpop.xlane.xlu0 %3287
    %v3289 = vsel %vm3141, %v2934, 0.0
    %3290 = vadd.xlane.f32.xlu0 %v3289
    %v3291 = vpop.xlane.xlu0 %3290
    %v3292 = vsel %vm3141, %v2935, 0.0
    %3293 = vadd.xlane.f32.xlu0 %v3292
    %v3294 = vpop.xlane.xlu0 %3293
    %v3295 = vsel %vm3141, %v2936, 0.0
    %3296 = vadd.xlane.f32.xlu0 %v3295
    %v3297 = vpop.xlane.xlu0 %3296
    %v3298 = vsel %vm3141, %v2937, 0.0
    %3299 = vadd.xlane.f32.xlu0 %v3298
    %v3300 = vpop.xlane.xlu0 %3299
    %v3301 = vsel %vm3141, %v2938, 0.0
    %3302 = vadd.xlane.f32.xlu0 %v3301
    %v3303 = vpop.xlane.xlu0 %3302
    %v3304 = vsel %vm3141, %v2939, 0.0
    %3305 = vadd.xlane.f32.xlu0 %v3304
    %v3306 = vpop.xlane.xlu0 %3305
    %v3307 = vsel %vm3141, %v2940, 0.0
    %3308 = vadd.xlane.f32.xlu0 %v3307
    %v3309 = vpop.xlane.xlu0 %3308
    %v3310 = vsel %vm3141, %v2941, 0.0
    %3311 = vadd.xlane.f32.xlu0 %v3310
    %v3312 = vpop.xlane.xlu0 %3311
    %v3313 = vsel %vm3141, %v2942, 0.0
    %3314 = vadd.xlane.f32.xlu0 %v3313
    %v3315 = vpop.xlane.xlu0 %3314
    %v3316 = vsel %vm3141, %v2943, 0.0
    %3317 = vadd.xlane.f32.xlu0 %v3316
    %v3318 = vpop.xlane.xlu0 %3317
    %v3319 = vsel %vm3141, %v2944, 0.0
    %3320 = vadd.xlane.f32.xlu0 %v3319
    %v3321 = vpop.xlane.xlu0 %3320
    %v3322 = vsel %vm3141, %v2945, 0.0
    %3323 = vadd.xlane.f32.xlu0 %v3322
    %v3324 = vpop.xlane.xlu0 %3323
    %v3325 = vsel %vm3141, %v2946, 0.0
    %3326 = vadd.xlane.f32.xlu0 %v3325
    %v3327 = vpop.xlane.xlu0 %3326
    %v3328 = vsel %vm3141, %v2947, 0.0
    %3329 = vadd.xlane.f32.xlu0 %v3328
    %v3330 = vpop.xlane.xlu0 %3329
    %v3331 = vsel %vm3141, %v2948, 0.0
    %3332 = vadd.xlane.f32.xlu0 %v3331
    %v3333 = vpop.xlane.xlu0 %3332
    %v3334 = vsel %vm3141, %v2949, 0.0
    %3335 = vadd.xlane.f32.xlu0 %v3334
    %v3336 = vpop.xlane.xlu0 %3335
    %v3337 = vsel %vm3141, %v2950, 0.0
    %3338 = vadd.xlane.f32.xlu0 %v3337
    %v3339 = vpop.xlane.xlu0 %3338
    %v3340 = vsel %vm3141, %v2951, 0.0
    %3341 = vadd.xlane.f32.xlu0 %v3340
    %v3342 = vpop.xlane.xlu0 %3341
    %v3343 = vsel %vm3141, %v2952, 0.0
    %3344 = vadd.xlane.f32.xlu0 %v3343
    %v3345 = vpop.xlane.xlu0 %3344
    %v3346 = vsel %vm3141, %v2953, 0.0
    %3347 = vadd.xlane.f32.xlu0 %v3346
    %v3348 = vpop.xlane.xlu0 %3347
    %v3349 = vsel %vm3141, %v2954, 0.0
    %3350 = vadd.xlane.f32.xlu0 %v3349
    %v3351 = vpop.xlane.xlu0 %3350
    %v3352 = vsel %vm3141, %v2955, 0.0
    %3353 = vadd.xlane.f32.xlu0 %v3352
    %v3354 = vpop.xlane.xlu0 %3353
    %v3355 = vsel %vm3141, %v2956, 0.0
    %3356 = vadd.xlane.f32.xlu0 %v3355
    %v3357 = vpop.xlane.xlu0 %3356
    %v3358 = vsel %vm3141, %v2957, 0.0
    %3359 = vadd.xlane.f32.xlu0 %v3358
    %v3360 = vpop.xlane.xlu0 %3359
    %v3361 = vsel %vm3141, %v2958, 0.0
    %3362 = vadd.xlane.f32.xlu0 %v3361
    %v3363 = vpop.xlane.xlu0 %3362
    %v3364 = vsel %vm3141, %v2959, 0.0
    %3365 = vadd.xlane.f32.xlu0 %v3364
    %v3366 = vpop.xlane.xlu0 %3365
    %v3367 = vsel %vm3141, %v2960, 0.0
    %3368 = vadd.xlane.f32.xlu0 %v3367
    %v3369 = vpop.xlane.xlu0 %3368
    %v3370 = vsel %vm3141, %v2961, 0.0
    %3371 = vadd.xlane.f32.xlu0 %v3370
    %v3372 = vpop.xlane.xlu0 %3371
    %v3373 = vsel %vm3141, %v2962, 0.0
    %3374 = vadd.xlane.f32.xlu0 %v3373
    %v3375 = vpop.xlane.xlu0 %3374
    %v3376 = vsel %vm3141, %v2963, 0.0
    %3377 = vadd.xlane.f32.xlu0 %v3376
    %v3378 = vpop.xlane.xlu0 %3377
    %v3379 = vsel %vm3141, %v2964, 0.0
    %3380 = vadd.xlane.f32.xlu0 %v3379
    %v3381 = vpop.xlane.xlu0 %3380
    %v3382 = vsel %vm3141, %v2965, 0.0
    %3383 = vadd.xlane.f32.xlu0 %v3382
    %v3384 = vpop.xlane.xlu0 %3383
    %v3385 = vsel %vm3141, %v2966, 0.0
    %3386 = vadd.xlane.f32.xlu0 %v3385
    %v3387 = vpop.xlane.xlu0 %3386
    %v3388 = vsel %vm3141, %v2967, 0.0
    %3389 = vadd.xlane.f32.xlu0 %v3388
    %v3390 = vpop.xlane.xlu0 %3389
    %v3391 = vsel %vm3141, %v2968, 0.0
    %3392 = vadd.xlane.f32.xlu0 %v3391
    %v3393 = vpop.xlane.xlu0 %3392
    %v3394 = vsel %vm3141, %v2969, 0.0
    %3395 = vadd.xlane.f32.xlu0 %v3394
    %v3396 = vpop.xlane.xlu0 %3395
    %v3397 = vsel %vm3141, %v2970, 0.0
    %3398 = vadd.xlane.f32.xlu0 %v3397
    %v3399 = vpop.xlane.xlu0 %3398
    %v3400 = vsel %vm3141, %v2971, 0.0
    %3401 = vadd.xlane.f32.xlu0 %v3400
    %v3402 = vpop.xlane.xlu0 %3401
    %v3403 = vsel %vm3141, %v2972, 0.0
    %3404 = vadd.xlane.f32.xlu0 %v3403
    %v3405 = vpop.xlane.xlu0 %3404
    %v3406 = vsel %vm3141, %v2973, 0.0
    %3407 = vadd.xlane.f32.xlu0 %v3406
    %v3408 = vpop.xlane.xlu0 %3407
    %v3409 = vsel %vm3141, %v2974, 0.0
    %3410 = vadd.xlane.f32.xlu0 %v3409
    %v3411 = vpop.xlane.xlu0 %3410
    %v3412 = vsel %vm3141, %v2975, 0.0
    %3413 = vadd.xlane.f32.xlu0 %v3412
    %v3414 = vpop.xlane.xlu0 %3413
    %v3415 = vsel %vm3141, %v2976, 0.0
    %3416 = vadd.xlane.f32.xlu0 %v3415
    %v3417 = vpop.xlane.xlu0 %3416
    %v3418 = vsel %vm3141, %v2977, 0.0
    %3419 = vadd.xlane.f32.xlu0 %v3418
    %v3420 = vpop.xlane.xlu0 %3419
    %v3421 = vsel %vm3141, %v2978, 0.0
    %3422 = vadd.xlane.f32.xlu0 %v3421
    %v3423 = vpop.xlane.xlu0 %3422
    %v3424 = vsel %vm3141, %v2979, 0.0
    %3425 = vadd.xlane.f32.xlu0 %v3424
    %v3426 = vpop.xlane.xlu0 %3425
    %v3427 = vsel %vm3141, %v2980, 0.0
    %3428 = vadd.xlane.f32.xlu0 %v3427
    %v3429 = vpop.xlane.xlu0 %3428
    %v3430 = vsel %vm3141, %v2981, 0.0
    %3431 = vadd.xlane.f32.xlu0 %v3430
    %v3432 = vpop.xlane.xlu0 %3431
    %v3433 = vsel %vm3141, %v2982, 0.0
    %3434 = vadd.xlane.f32.xlu0 %v3433
    %v3435 = vpop.xlane.xlu0 %3434
    %v3436 = vsel %vm3141, %v2983, 0.0
    %3437 = vadd.xlane.f32.xlu0 %v3436
    %v3438 = vpop.xlane.xlu0 %3437
    %v3439 = vsel %vm3141, %v2984, 0.0
    %3440 = vadd.xlane.f32.xlu0 %v3439
    %v3441 = vpop.xlane.xlu0 %3440
    %v3442 = vsel %vm3141, %v2985, 0.0
    %3443 = vadd.xlane.f32.xlu0 %v3442
    %v3444 = vpop.xlane.xlu0 %3443
    %v3445 = vsel %vm3141, %v2986, 0.0
    %3446 = vadd.xlane.f32.xlu0 %v3445
    %v3447 = vpop.xlane.xlu0 %3446
    %v3448 = vsel %vm3141, %v2987, 0.0
    %3449 = vadd.xlane.f32.xlu0 %v3448
    %v3450 = vpop.xlane.xlu0 %3449
    %v3451 = vsel %vm3141, %v2988, 0.0
    %3452 = vadd.xlane.f32.xlu0 %v3451
    %v3453 = vpop.xlane.xlu0 %3452
    %v3454 = vsel %vm3141, %v2989, 0.0
    %3455 = vadd.xlane.f32.xlu0 %v3454
    %v3456 = vpop.xlane.xlu0 %3455
    %v3457 = vsel %vm3141, %v2990, 0.0
    %3458 = vadd.xlane.f32.xlu0 %v3457
    %v3459 = vpop.xlane.xlu0 %3458
    %v3460 = vsel %vm3141, %v2991, 0.0
    %3461 = vadd.xlane.f32.xlu0 %v3460
    %v3462 = vpop.xlane.xlu0 %3461
    %v3463 = vsel %vm3141, %v2992, 0.0
    %3464 = vadd.xlane.f32.xlu0 %v3463
    %v3465 = vpop.xlane.xlu0 %3464
    %v3466 = vsel %vm3141, %v2993, 0.0
    %3467 = vadd.xlane.f32.xlu0 %v3466
    %v3468 = vpop.xlane.xlu0 %3467
    %v3469 = vsel %vm3141, %v2994, 0.0
    %3470 = vadd.xlane.f32.xlu0 %v3469
    %v3471 = vpop.xlane.xlu0 %3470
    %v3472 = vsel %vm3141, %v2995, 0.0
    %3473 = vadd.xlane.f32.xlu0 %v3472
    %v3474 = vpop.xlane.xlu0 %3473
    %v3475 = vsel %vm3141, %v2996, 0.0
    %3476 = vadd.xlane.f32.xlu0 %v3475
    %v3477 = vpop.xlane.xlu0 %3476
    %v3478 = vsel %vm3141, %v2997, 0.0
    %3479 = vadd.xlane.f32.xlu0 %v3478
    %v3480 = vpop.xlane.xlu0 %3479
    %v3481 = vsel %vm3141, %v2998, 0.0
    %3482 = vadd.xlane.f32.xlu0 %v3481
    %v3483 = vpop.xlane.xlu0 %3482
    %v3484 = vsel %vm3141, %v2999, 0.0
    %3485 = vadd.xlane.f32.xlu0 %v3484
    %v3486 = vpop.xlane.xlu0 %3485
    %v3487 = vsel %vm3141, %v3000, 0.0
    %3488 = vadd.xlane.f32.xlu0 %v3487
    %v3489 = vpop.xlane.xlu0 %3488
    %v3490 = vsel %vm3141, %v3001, 0.0
    %3491 = vadd.xlane.f32.xlu0 %v3490
    %v3492 = vpop.xlane.xlu0 %3491
    %v3493 = vsel %vm3141, %v3002, 0.0
    %3494 = vadd.xlane.f32.xlu0 %v3493
    %v3495 = vpop.xlane.xlu0 %3494
    %v3496 = vsel %vm3141, %v3003, 0.0
    %3497 = vadd.xlane.f32.xlu0 %v3496
    %v3498 = vpop.xlane.xlu0 %3497
    %v3499 = vsel %vm3141, %v3004, 0.0
    %3500 = vadd.xlane.f32.xlu0 %v3499
    %v3501 = vpop.xlane.xlu0 %3500
    %v3502 = vsel %vm3141, %v3005, 0.0
    %3503 = vadd.xlane.f32.xlu0 %v3502
    %v3504 = vpop.xlane.xlu0 %3503
    %v3505 = vsel %vm3141, %v3006, 0.0
    %3506 = vadd.xlane.f32.xlu0 %v3505
    %v3507 = vpop.xlane.xlu0 %3506
    %v3508 = vsel %vm3141, %v3007, 0.0
    %3509 = vadd.xlane.f32.xlu0 %v3508
    %v3510 = vpop.xlane.xlu0 %3509
    %v3511 = vsel %vm3141, %v3008, 0.0
    %3512 = vadd.xlane.f32.xlu0 %v3511
    %v3513 = vpop.xlane.xlu0 %3512
    %v3514 = vsel %vm3141, %v3009, 0.0
    %3515 = vadd.xlane.f32.xlu0 %v3514
    %v3516 = vpop.xlane.xlu0 %3515
    %v3517 = vsel %vm3141, %v3010, 0.0
    %3518 = vadd.xlane.f32.xlu0 %v3517
    %v3519 = vpop.xlane.xlu0 %3518
    %v3520 = vsel %vm3141, %v3011, 0.0
    %3521 = vadd.xlane.f32.xlu0 %v3520
    %v3522 = vpop.xlane.xlu0 %3521
    %v3523 = vsel %vm3141, %v3012, 0.0
    %3524 = vadd.xlane.f32.xlu0 %v3523
    %v3525 = vpop.xlane.xlu0 %3524
    %v3526 = vsel %vm3141, %v3013, 0.0
    %3527 = vadd.xlane.f32.xlu0 %v3526
    %v3528 = vpop.xlane.xlu0 %3527
    %v3529 = vsel %vm3141, %v3014, 0.0
    %3530 = vadd.xlane.f32.xlu0 %v3529
    %v3531 = vpop.xlane.xlu0 %3530
    %v3532 = vsel %vm3141, %v3015, 0.0
    %3533 = vadd.xlane.f32.xlu0 %v3532
    %v3534 = vpop.xlane.xlu0 %3533
    %v3535 = vsel %vm3141, %v3016, 0.0
    %3536 = vadd.xlane.f32.xlu0 %v3535
    %v3537 = vpop.xlane.xlu0 %3536
    %v3538 = vsel %vm3141, %v3017, 0.0
    %3539 = vadd.xlane.f32.xlu0 %v3538
    %v3540 = vpop.xlane.xlu0 %3539
    %v3541 = vsel %vm3141, %v3018, 0.0
    %3542 = vadd.xlane.f32.xlu0 %v3541
    %v3543 = vpop.xlane.xlu0 %3542
    %v3544 = vsel %vm3141, %v3019, 0.0
    %3545 = vadd.xlane.f32.xlu0 %v3544
    %v3546 = vpop.xlane.xlu0 %3545
    %v3547 = vsel %vm3141, %v3020, 0.0
    %3548 = vadd.xlane.f32.xlu0 %v3547
    %v3549 = vpop.xlane.xlu0 %3548
    %v3550 = vsel %vm3141, %v3021, 0.0
    %3551 = vadd.xlane.f32.xlu0 %v3550
    %v3552 = vpop.xlane.xlu0 %3551
    %v3553 = vsel %vm3141, %v3022, 0.0
    %3554 = vadd.xlane.f32.xlu0 %v3553
    %v3555 = vpop.xlane.xlu0 %3554
    %v3556 = vsel %vm3141, %v3023, 0.0
    %3557 = vadd.xlane.f32.xlu0 %v3556
    %v3558 = vpop.xlane.xlu0 %3557
    %v3559 = vsel %vm3141, %v3024, 0.0
    %3560 = vadd.xlane.f32.xlu0 %v3559
    %v3561 = vpop.xlane.xlu0 %3560
    %v3562 = vsel %vm3141, %v3025, 0.0
    %3563 = vadd.xlane.f32.xlu0 %v3562
    %v3564 = vpop.xlane.xlu0 %3563
    %v3565 = vsel %vm3141, %v3026, 0.0
    %3566 = vadd.xlane.f32.xlu0 %v3565
    %v3567 = vpop.xlane.xlu0 %3566
    %v3568 = vsel %vm3141, %v3027, 0.0
    %3569 = vadd.xlane.f32.xlu0 %v3568
    %v3570 = vpop.xlane.xlu0 %3569
    %v3571 = vsel %vm3141, %v3028, 0.0
    %3572 = vadd.xlane.f32.xlu0 %v3571
    %v3573 = vpop.xlane.xlu0 %3572
    %v3574 = vsel %vm3141, %v3029, 0.0
    %3575 = vadd.xlane.f32.xlu0 %v3574
    %v3576 = vpop.xlane.xlu0 %3575
    %v3577 = vsel %vm3141, %v3030, 0.0
    %3578 = vadd.xlane.f32.xlu0 %v3577
    %v3579 = vpop.xlane.xlu0 %3578
    %v3580 = vsel %vm3141, %v3031, 0.0
    %3581 = vadd.xlane.f32.xlu0 %v3580
    %v3582 = vpop.xlane.xlu0 %3581
    %v3583 = vsel %vm3141, %v3032, 0.0
    %3584 = vadd.xlane.f32.xlu0 %v3583
    %v3585 = vpop.xlane.xlu0 %3584
    %v3586 = vsel %vm3141, %v3033, 0.0
    %3587 = vadd.xlane.f32.xlu0 %v3586
    %v3588 = vpop.xlane.xlu0 %3587
    %v3589 = vsel %vm3141, %v3034, 0.0
    %3590 = vadd.xlane.f32.xlu0 %v3589
    %v3591 = vpop.xlane.xlu0 %3590
    %v3592 = vsel %vm3141, %v3035, 0.0
    %3593 = vadd.xlane.f32.xlu0 %v3592
    %v3594 = vpop.xlane.xlu0 %3593
    %v3595 = vsel %vm3141, %v3036, 0.0
    %3596 = vadd.xlane.f32.xlu0 %v3595
    %v3597 = vpop.xlane.xlu0 %3596
    %v3598 = vsel %vm3141, %v3037, 0.0
    %3599 = vadd.xlane.f32.xlu0 %v3598
    %v3600 = vpop.xlane.xlu0 %3599
    %v3601 = vsel %vm3141, %v3038, 0.0
    %3602 = vadd.xlane.f32.xlu0 %v3601
    %v3603 = vpop.xlane.xlu0 %3602
    %v3604 = vsel %vm3141, %v3039, 0.0
    %3605 = vadd.xlane.f32.xlu0 %v3604
    %v3606 = vpop.xlane.xlu0 %3605
    %v3607 = vsel %vm3141, %v3040, 0.0
    %3608 = vadd.xlane.f32.xlu0 %v3607
    %v3609 = vpop.xlane.xlu0 %3608
    %v3610 = vsel %vm3141, %v3041, 0.0
    %3611 = vadd.xlane.f32.xlu0 %v3610
    %v3612 = vpop.xlane.xlu0 %3611
    %v3613 = vsel %vm3141, %v3042, 0.0
    %3614 = vadd.xlane.f32.xlu0 %v3613
    %v3615 = vpop.xlane.xlu0 %3614
    %v3616 = vsel %vm3141, %v3043, 0.0
    %3617 = vadd.xlane.f32.xlu0 %v3616
    %v3618 = vpop.xlane.xlu0 %3617
    %v3619 = vsel %vm3141, %v3044, 0.0
    %3620 = vadd.xlane.f32.xlu0 %v3619
    %v3621 = vpop.xlane.xlu0 %3620
    %v3622 = vsel %vm3141, %v3045, 0.0
    %3623 = vadd.xlane.f32.xlu0 %v3622
    %v3624 = vpop.xlane.xlu0 %3623
    %v3625 = vsel %vm3141, %v3046, 0.0
    %3626 = vadd.xlane.f32.xlu0 %v3625
    %v3627 = vpop.xlane.xlu0 %3626
    %v3628 = vsel %vm3141, %v3047, 0.0
    %3629 = vadd.xlane.f32.xlu0 %v3628
    %v3630 = vpop.xlane.xlu0 %3629
    %v3631 = vsel %vm3141, %v3048, 0.0
    %3632 = vadd.xlane.f32.xlu0 %v3631
    %v3633 = vpop.xlane.xlu0 %3632
    %v3634 = vsel %vm3141, %v3049, 0.0
    %3635 = vadd.xlane.f32.xlu0 %v3634
    %v3636 = vpop.xlane.xlu0 %3635
    %v3637 = vsel %vm3141, %v3050, 0.0
    %3638 = vadd.xlane.f32.xlu0 %v3637
    %v3639 = vpop.xlane.xlu0 %3638
    %v3640 = vsel %vm3141, %v3051, 0.0
    %3641 = vadd.xlane.f32.xlu0 %v3640
    %v3642 = vpop.xlane.xlu0 %3641
    %v3643 = vsel %vm3141, %v3052, 0.0
    %3644 = vadd.xlane.f32.xlu0 %v3643
    %v3645 = vpop.xlane.xlu0 %3644
    %v3646 = vsel %vm3141, %v3053, 0.0
    %3647 = vadd.xlane.f32.xlu0 %v3646
    %v3648 = vpop.xlane.xlu0 %3647
    %v3649 = vsel %vm3141, %v3054, 0.0
    %3650 = vadd.xlane.f32.xlu0 %v3649
    %v3651 = vpop.xlane.xlu0 %3650
    %v3652 = vsel %vm3141, %v3055, 0.0
    %3653 = vadd.xlane.f32.xlu0 %v3652
    %v3654 = vpop.xlane.xlu0 %3653
    %v3655 = vsel %vm3141, %v3056, 0.0
    %3656 = vadd.xlane.f32.xlu0 %v3655
    %v3657 = vpop.xlane.xlu0 %3656
    %v3658 = vsel %vm3141, %v3057, 0.0
    %3659 = vadd.xlane.f32.xlu0 %v3658
    %v3660 = vpop.xlane.xlu0 %3659
    %v3661 = vsel %vm3141, %v3058, 0.0
    %3662 = vadd.xlane.f32.xlu0 %v3661
    %v3663 = vpop.xlane.xlu0 %3662
    %v3664 = vsel %vm3141, %v3059, 0.0
    %3665 = vadd.xlane.f32.xlu0 %v3664
    %v3666 = vpop.xlane.xlu0 %3665
    %v3667 = vsel %vm3141, %v3060, 0.0
    %3668 = vadd.xlane.f32.xlu0 %v3667
    %v3669 = vpop.xlane.xlu0 %3668
    %v3670 = vsel %vm3141, %v3061, 0.0
    %3671 = vadd.xlane.f32.xlu0 %v3670
    %v3672 = vpop.xlane.xlu0 %3671
    %v3673 = vsel %vm3141, %v3062, 0.0
    %3674 = vadd.xlane.f32.xlu0 %v3673
    %v3675 = vpop.xlane.xlu0 %3674
    %v3676 = vsel %vm3141, %v3063, 0.0
    %3677 = vadd.xlane.f32.xlu0 %v3676
    %v3678 = vpop.xlane.xlu0 %3677
    %v3679 = vsel %vm3141, %v3064, 0.0
    %3680 = vadd.xlane.f32.xlu0 %v3679
    %v3681 = vpop.xlane.xlu0 %3680
    %v3682 = vsel %vm3141, %v3065, 0.0
    %3683 = vadd.xlane.f32.xlu0 %v3682
    %v3684 = vpop.xlane.xlu0 %3683
    %v3685 = vsel %vm3141, %v3066, 0.0
    %3686 = vadd.xlane.f32.xlu0 %v3685
    %v3687 = vpop.xlane.xlu0 %3686
    %v3688 = vsel %vm3141, %v3067, 0.0
    %3689 = vadd.xlane.f32.xlu0 %v3688
    %v3690 = vpop.xlane.xlu0 %3689
    %v3691 = vsel %vm3141, %v3068, 0.0
    %3692 = vadd.xlane.f32.xlu0 %v3691
    %v3693 = vpop.xlane.xlu0 %3692
    %v3694 = vsel %vm3141, %v3069, 0.0
    %3695 = vadd.xlane.f32.xlu0 %v3694
    %v3696 = vpop.xlane.xlu0 %3695
    %v3697 = vsel %vm3141, %v3070, 0.0
    %3698 = vadd.xlane.f32.xlu0 %v3697
    %v3699 = vpop.xlane.xlu0 %3698
    %v3700 = vsel %vm3141, %v3071, 0.0
    %3701 = vadd.xlane.f32.xlu0 %v3700
    %v3702 = vpop.xlane.xlu0 %3701
    %v3703 = vsel %vm3141, %v3072, 0.0
    %3704 = vadd.xlane.f32.xlu0 %v3703
    %v3705 = vpop.xlane.xlu0 %3704
    %v3706 = vsel %vm3141, %v3073, 0.0
    %3707 = vadd.xlane.f32.xlu0 %v3706
    %v3708 = vpop.xlane.xlu0 %3707
    %v3709 = vsel %vm3141, %v3074, 0.0
    %3710 = vadd.xlane.f32.xlu0 %v3709
    %v3711 = vpop.xlane.xlu0 %3710
    %v3712 = vsel %vm3141, %v3075, 0.0
    %3713 = vadd.xlane.f32.xlu0 %v3712
    %v3714 = vpop.xlane.xlu0 %3713
    %v3715 = vsel %vm3141, %v3076, 0.0
    %3716 = vadd.xlane.f32.xlu0 %v3715
    %v3717 = vpop.xlane.xlu0 %3716
    %v3718 = vsel %vm3141, %v3077, 0.0
    %3719 = vadd.xlane.f32.xlu0 %v3718
    %v3720 = vpop.xlane.xlu0 %3719
    %v3721 = vsel %vm3141, %v3078, 0.0
    %3722 = vadd.xlane.f32.xlu0 %v3721
    %v3723 = vpop.xlane.xlu0 %3722
    %v3724 = vsel %vm3141, %v3079, 0.0
    %3725 = vadd.xlane.f32.xlu0 %v3724
    %v3726 = vpop.xlane.xlu0 %3725
    %v3727 = vsel %vm3141, %v3080, 0.0
    %3728 = vadd.xlane.f32.xlu0 %v3727
    %v3729 = vpop.xlane.xlu0 %3728
    %v3730 = vsel %vm3141, %v3081, 0.0
    %3731 = vadd.xlane.f32.xlu0 %v3730
    %v3732 = vpop.xlane.xlu0 %3731
    %v3733 = vsel %vm3141, %v3082, 0.0
    %3734 = vadd.xlane.f32.xlu0 %v3733
    %v3735 = vpop.xlane.xlu0 %3734
    %v3736 = vsel %vm3141, %v3083, 0.0
    %3737 = vadd.xlane.f32.xlu0 %v3736
    %v3738 = vpop.xlane.xlu0 %3737
    %v3739 = vsel %vm3141, %v3084, 0.0
    %3740 = vadd.xlane.f32.xlu0 %v3739
    %v3741 = vpop.xlane.xlu0 %3740
    %v3742 = vsel %vm3141, %v3085, 0.0
    %3743 = vadd.xlane.f32.xlu0 %v3742
    %v3744 = vpop.xlane.xlu0 %3743
    %v3745 = vsel %vm3141, %v3086, 0.0
    %3746 = vadd.xlane.f32.xlu0 %v3745
    %v3747 = vpop.xlane.xlu0 %3746
    %v3748 = vsel %vm3141, %v3087, 0.0
    %3749 = vadd.xlane.f32.xlu0 %v3748
    %v3750 = vpop.xlane.xlu0 %3749
    %v3751 = vsel %vm3141, %v3088, 0.0
    %3752 = vadd.xlane.f32.xlu0 %v3751
    %v3753 = vpop.xlane.xlu0 %3752
    %v3754 = vsel %vm3141, %v3089, 0.0
    %3755 = vadd.xlane.f32.xlu0 %v3754
    %v3756 = vpop.xlane.xlu0 %3755
    %v3757 = vsel %vm3141, %v3090, 0.0
    %3758 = vadd.xlane.f32.xlu0 %v3757
    %v3759 = vpop.xlane.xlu0 %3758
    %v3760 = vsel %vm3141, %v3091, 0.0
    %3761 = vadd.xlane.f32.xlu0 %v3760
    %v3762 = vpop.xlane.xlu0 %3761
    %v3763 = vsel %vm3141, %v3092, 0.0
    %3764 = vadd.xlane.f32.xlu0 %v3763
    %v3765 = vpop.xlane.xlu0 %3764
    %v3766 = vsel %vm3141, %v3093, 0.0
    %3767 = vadd.xlane.f32.xlu0 %v3766
    %v3768 = vpop.xlane.xlu0 %3767
    %v3769 = vsel %vm3141, %v3094, 0.0
    %3770 = vadd.xlane.f32.xlu0 %v3769
    %v3771 = vpop.xlane.xlu0 %3770
    %v3772 = vsel %vm3141, %v3095, 0.0
    %3773 = vadd.xlane.f32.xlu0 %v3772
    %v3774 = vpop.xlane.xlu0 %3773
    %v3775 = vsel %vm3141, %v3096, 0.0
    %3776 = vadd.xlane.f32.xlu0 %v3775
    %v3777 = vpop.xlane.xlu0 %3776
    %v3778 = vsel %vm3141, %v3097, 0.0
    %3779 = vadd.xlane.f32.xlu0 %v3778
    %v3780 = vpop.xlane.xlu0 %3779
    %v3781 = vsel %vm3141, %v3098, 0.0
    %3782 = vadd.xlane.f32.xlu0 %v3781
    %v3783 = vpop.xlane.xlu0 %3782
    %v3784 = vsel %vm3141, %v3099, 0.0
    %3785 = vadd.xlane.f32.xlu0 %v3784
    %v3786 = vpop.xlane.xlu0 %3785
    %v3787 = vsel %vm3141, %v3100, 0.0
    %3788 = vadd.xlane.f32.xlu0 %v3787
    %v3789 = vpop.xlane.xlu0 %3788
    %v3790 = vsel %vm3141, %v3101, 0.0
    %3791 = vadd.xlane.f32.xlu0 %v3790
    %v3792 = vpop.xlane.xlu0 %3791
    %v3793 = vsel %vm3141, %v3102, 0.0
    %3794 = vadd.xlane.f32.xlu0 %v3793
    %v3795 = vpop.xlane.xlu0 %3794
    %v3796 = vsel %vm3141, %v3103, 0.0
    %3797 = vadd.xlane.f32.xlu0 %v3796
    %v3798 = vpop.xlane.xlu0 %3797
    %v3799 = vsel %vm3141, %v3104, 0.0
    %3800 = vadd.xlane.f32.xlu0 %v3799
    %v3801 = vpop.xlane.xlu0 %3800
    %v3802 = vsel %vm3141, %v3105, 0.0
    %3803 = vadd.xlane.f32.xlu0 %v3802
    %v3804 = vpop.xlane.xlu0 %3803
    %v3805 = vsel %vm3141, %v3106, 0.0
    %3806 = vadd.xlane.f32.xlu0 %v3805
    %v3807 = vpop.xlane.xlu0 %3806
    %v3808 = vsel %vm3141, %v3107, 0.0
    %3809 = vadd.xlane.f32.xlu0 %v3808
    %v3810 = vpop.xlane.xlu0 %3809
    %v3811 = vsel %vm3141, %v3108, 0.0
    %3812 = vadd.xlane.f32.xlu0 %v3811
    %v3813 = vpop.xlane.xlu0 %3812
    %v3814 = vsel %vm3141, %v3109, 0.0
    %3815 = vadd.xlane.f32.xlu0 %v3814
    %v3816 = vpop.xlane.xlu0 %3815
    %v3817 = vsel %vm3141, %v3110, 0.0
    %3818 = vadd.xlane.f32.xlu0 %v3817
    %v3819 = vpop.xlane.xlu0 %3818
    %v3820 = vsel %vm3141, %v3111, 0.0
    %3821 = vadd.xlane.f32.xlu0 %v3820
    %v3822 = vpop.xlane.xlu0 %3821
    %v3823 = vsel %vm3141, %v3112, 0.0
    %3824 = vadd.xlane.f32.xlu0 %v3823
    %v3825 = vpop.xlane.xlu0 %3824
    %v3826 = vsel %vm3141, %v3113, 0.0
    %3827 = vadd.xlane.f32.xlu0 %v3826
    %v3828 = vpop.xlane.xlu0 %3827
    %v3829 = vsel %vm3141, %v3114, 0.0
    %3830 = vadd.xlane.f32.xlu0 %v3829
    %v3831 = vpop.xlane.xlu0 %3830
    %v3832 = vsel %vm3141, %v3115, 0.0
    %3833 = vadd.xlane.f32.xlu0 %v3832
    %v3834 = vpop.xlane.xlu0 %3833
    %v3835 = vsel %vm3141, %v3116, 0.0
    %3836 = vadd.xlane.f32.xlu0 %v3835
    %v3837 = vpop.xlane.xlu0 %3836
    %v3838 = vsel %vm3141, %v3117, 0.0
    %3839 = vadd.xlane.f32.xlu0 %v3838
    %v3840 = vpop.xlane.xlu0 %3839
    %v3841 = vsel %vm3141, %v3118, 0.0
    %3842 = vadd.xlane.f32.xlu0 %v3841
    %v3843 = vpop.xlane.xlu0 %3842
    %v3844 = vsel %vm3141, %v3119, 0.0
    %3845 = vadd.xlane.f32.xlu0 %v3844
    %v3846 = vpop.xlane.xlu0 %3845
    %v3847 = vsel %vm3141, %v3120, 0.0
    %3848 = vadd.xlane.f32.xlu0 %v3847
    %v3849 = vpop.xlane.xlu0 %3848
    %v3850 = vsel %vm3141, %v3121, 0.0
    %3851 = vadd.xlane.f32.xlu0 %v3850
    %v3852 = vpop.xlane.xlu0 %3851
    %v3853 = vsel %vm3141, %v3122, 0.0
    %3854 = vadd.xlane.f32.xlu0 %v3853
    %v3855 = vpop.xlane.xlu0 %3854
    %v3856 = vsel %vm3141, %v3123, 0.0
    %3857 = vadd.xlane.f32.xlu0 %v3856
    %v3858 = vpop.xlane.xlu0 %3857
    %v3859 = vsel %vm3141, %v3124, 0.0
    %3860 = vadd.xlane.f32.xlu0 %v3859
    %v3861 = vpop.xlane.xlu0 %3860
    %v3862 = vsel %vm3141, %v3125, 0.0
    %3863 = vadd.xlane.f32.xlu0 %v3862
    %v3864 = vpop.xlane.xlu0 %3863
    %v3865 = vsel %vm3141, %v3126, 0.0
    %3866 = vadd.xlane.f32.xlu0 %v3865
    %v3867 = vpop.xlane.xlu0 %3866
    %v3868 = vsel %vm3141, %v3127, 0.0
    %3869 = vadd.xlane.f32.xlu0 %v3868
    %v3870 = vpop.xlane.xlu0 %3869
    %v3871 = vsel %vm3141, %v3128, 0.0
    %3872 = vadd.xlane.f32.xlu0 %v3871
    %v3873 = vpop.xlane.xlu0 %3872
    %v3874 = vsel %vm3141, %v3129, 0.0
    %3875 = vadd.xlane.f32.xlu0 %v3874
    %v3876 = vpop.xlane.xlu0 %3875
    %v3877 = vsel %vm3141, %v3130, 0.0
    %3878 = vadd.xlane.f32.xlu0 %v3877
    %v3879 = vpop.xlane.xlu0 %3878
    %v3880 = vsel %vm3141, %v3131, 0.0
    %3881 = vadd.xlane.f32.xlu0 %v3880
    %v3882 = vpop.xlane.xlu0 %3881
    %v3883 = vsel %vm3141, %v3132, 0.0
    %3884 = vadd.xlane.f32.xlu0 %v3883
    %v3885 = vpop.xlane.xlu0 %3884
    %v3886 = vsel %vm3141, %v3133, 0.0
    %3887 = vadd.xlane.f32.xlu0 %v3886
    %v3888 = vpop.xlane.xlu0 %3887
    %v3889 = vsel %vm3141, %v3134, 0.0
    %3890 = vadd.xlane.f32.xlu0 %v3889
    %v3891 = vpop.xlane.xlu0 %3890
    %v3892 = vsel %vm3141, %v3135, 0.0
    %3893 = vadd.xlane.f32.xlu0 %v3892
    %v3894 = vpop.xlane.xlu0 %3893
    %v3895 = vsel %vm3141, %v3136, 0.0
    %3896 = vadd.xlane.f32.xlu0 %v3895
    %v3897 = vpop.xlane.xlu0 %3896
    %v3898 = vsel %vm3141, %v3137, 0.0
    %3899 = vadd.xlane.f32.xlu0 %v3898
    %v3900 = vpop.xlane.xlu0 %3899
    %v3901 = vsel %vm3141, %v3138, 0.0
    %3902 = vadd.xlane.f32.xlu0 %v3901
    %v3903 = vpop.xlane.xlu0 %3902
    %v3904 = vsel %vm3141, %v3139, 0.0
    %3905 = vadd.xlane.f32.xlu0 %v3904
    %v3906 = vpop.xlane.xlu0 %3905
    %v3907 = vsel %vm3141, %v3140, 0.0
    %3908 = vadd.xlane.f32.xlu0 %v3907
    %v3909 = vpop.xlane.xlu0 %3908
    %v3910 = vlaneseq
    %v3911 = vand.u32 %v3910, 127
    %v3912 = vld [vmem:[%s2] sm:$0xff]
    %v3913 = vld [vmem:[%s2 + $0x8] sm:$0xff]
    %3914 = vset.pattern.permute.xlu0 0
    %3915 = vperm.xlu0 %3914, %v3912
    %v3916 = vpop.permute.xlu0 %3915
    %3917 = vset.pattern.permute.xlu0 0
    %3918 = vperm.xlu0 %3917, %v3913
    %v3919 = vpop.permute.xlu0 %3918
    %vm3920 = vcmp.lt.s32.totalorder %v3911, %v3916
    %vm3921 = vcmp.lt.s32.totalorder %v3911, %v3919
    %v4178 = vlaneseq
    %v4179 = vshrl.u32 %v4178, 7
    %v4180 = vsub.s32 %v3911, %v4179
    %v4181 = vrot.slane %v3144, %v4180
    %v4182 = vadd.s32 %v3911, 4294967288
    %v4183 = vlaneseq
    %v4184 = vshrl.u32 %v4183, 7
    %v4185 = vsub.s32 %v4182, %v4184
    %v4186 = vrot.slane %v3147, %v4185
    %vm4187 = vcmask 130112
    %v4188 = vsel %vm4187, %v4186, %v4181
    %v4189 = vadd.s32 %v3911, 4294967280
    %v4190 = vlaneseq
    %v4191 = vshrl.u32 %v4190, 7
    %v4192 = vsub.s32 %v4189, %v4191
    %v4193 = vrot.slane %v3150, %v4192
    %vm4194 = vcmask 195712
    %v4195 = vsel %vm4194, %v4193, %v4188
    %v4196 = vadd.s32 %v3911, 4294967272
    %v4197 = vlaneseq
    %v4198 = vshrl.u32 %v4197, 7
    %v4199 = vsub.s32 %v4196, %v4198
    %v4200 = vrot.slane %v3153, %v4199
    %vm4201 = vcmask 261312
    %v4202 = vsel %vm4201, %v4200, %v4195
    %v4203 = vadd.s32 %v3911, 4294967264
    %v4204 = vlaneseq
    %v4205 = vshrl.u32 %v4204, 7
    %v4206 = vsub.s32 %v4203, %v4205
    %v4207 = vrot.slane %v3156, %v4206
    %vm4208 = vcmask 326912
    %v4209 = vsel %vm4208, %v4207, %v4202
    %v4210 = vadd.s32 %v3911, 4294967256
    %v4211 = vlaneseq
    %v4212 = vshrl.u32 %v4211, 7
    %v4213 = vsub.s32 %v4210, %v4212
    %v4214 = vrot.slane %v3159, %v4213
    %vm4215 = vcmask 392512
    %v4216 = vsel %vm4215, %v4214, %v4209
    %v4217 = vadd.s32 %v3911, 4294967248
    %v4218 = vlaneseq
    %v4219 = vshrl.u32 %v4218, 7
    %v4220 = vsub.s32 %v4217, %v4219
    %v4221 = vrot.slane %v3162, %v4220
    %vm4222 = vcmask 458112
    %v4223 = vsel %vm4222, %v4221, %v4216
    %v4224 = vadd.s32 %v3911, 4294967240
    %v4225 = vlaneseq
    %v4226 = vshrl.u32 %v4225, 7
    %v4227 = vsub.s32 %v4224, %v4226
    %v4228 = vrot.slane %v3165, %v4227
    %vm4229 = vcmask 523712
    %v4230 = vsel %vm4229, %v4228, %v4223
    %v4231 = vadd.s32 %v3911, 4294967232
    %v4232 = vlaneseq
    %v4233 = vshrl.u32 %v4232, 7
    %v4234 = vsub.s32 %v4231, %v4233
    %v4235 = vrot.slane %v3168, %v4234
    %vm4236 = vcmask 589312
    %v4237 = vsel %vm4236, %v4235, %v4230
    %v4238 = vadd.s32 %v3911, 4294967224
    %v4239 = vlaneseq
    %v4240 = vshrl.u32 %v4239, 7
    %v4241 = vsub.s32 %v4238, %v4240
    %v4242 = vrot.slane %v3171, %v4241
    %vm4243 = vcmask 654912
    %v4244 = vsel %vm4243, %v4242, %v4237
    %v4245 = vadd.s32 %v3911, 4294967216
    %v4246 = vlaneseq
    %v4247 = vshrl.u32 %v4246, 7
    %v4248 = vsub.s32 %v4245, %v4247
    %v4249 = vrot.slane %v3174, %v4248
    %vm4250 = vcmask 720512
    %v4251 = vsel %vm4250, %v4249, %v4244
    %v4252 = vadd.s32 %v3911, 4294967208
    %v4253 = vlaneseq
    %v4254 = vshrl.u32 %v4253, 7
    %v4255 = vsub.s32 %v4252, %v4254
    %v4256 = vrot.slane %v3177, %v4255
    %vm4257 = vcmask 786112
    %v4258 = vsel %vm4257, %v4256, %v4251
    %v4259 = vadd.s32 %v3911, 4294967200
    %v4260 = vlaneseq
    %v4261 = vshrl.u32 %v4260, 7
    %v4262 = vsub.s32 %v4259, %v4261
    %v4263 = vrot.slane %v3180, %v4262
    %vm4264 = vcmask 851712
    %v4265 = vsel %vm4264, %v4263, %v4258
    %v4266 = vadd.s32 %v3911, 4294967192
    %v4267 = vlaneseq
    %v4268 = vshrl.u32 %v4267, 7
    %v4269 = vsub.s32 %v4266, %v4268
    %v4270 = vrot.slane %v3183, %v4269
    %vm4271 = vcmask 917312
    %v4272 = vsel %vm4271, %v4270, %v4265
    %v4273 = vadd.s32 %v3911, 4294967184
    %v4274 = vlaneseq
    %v4275 = vshrl.u32 %v4274, 7
    %v4276 = vsub.s32 %v4273, %v4275
    %v4277 = vrot.slane %v3186, %v4276
    %vm4278 = vcmask 982912
    %v4279 = vsel %vm4278, %v4277, %v4272
    %v4280 = vadd.s32 %v3911, 4294967176
    %v4281 = vlaneseq
    %v4282 = vshrl.u32 %v4281, 7
    %v4283 = vsub.s32 %v4280, %v4282
    %v4284 = vrot.slane %v3189, %v4283
    %vm4285 = vcmask 1048512
    %v4286 = vsel %vm4285, %v4284, %v4279
    %v4287 = vlaneseq
    %v4288 = vshrl.u32 %v4287, 7
    %v4289 = vsub.s32 %v3911, %v4288
    %v4290 = vrot.slane %v3192, %v4289
    %v4291 = vlaneseq
    %v4292 = vshrl.u32 %v4291, 7
    %v4293 = vsub.s32 %v4182, %v4292
    %v4294 = vrot.slane %v3195, %v4293
    %v4295 = vsel %vm4187, %v4294, %v4290
    %v4296 = vlaneseq
    %v4297 = vshrl.u32 %v4296, 7
    %v4298 = vsub.s32 %v4189, %v4297
    %v4299 = vrot.slane %v3198, %v4298
    %v4300 = vsel %vm4194, %v4299, %v4295
    %v4301 = vlaneseq
    %v4302 = vshrl.u32 %v4301, 7
    %v4303 = vsub.s32 %v4196, %v4302
    %v4304 = vrot.slane %v3201, %v4303
    %v4305 = vsel %vm4201, %v4304, %v4300
    %v4306 = vlaneseq
    %v4307 = vshrl.u32 %v4306, 7
    %v4308 = vsub.s32 %v4203, %v4307
    %v4309 = vrot.slane %v3204, %v4308
    %v4310 = vsel %vm4208, %v4309, %v4305
    %v4311 = vlaneseq
    %v4312 = vshrl.u32 %v4311, 7
    %v4313 = vsub.s32 %v4210, %v4312
    %v4314 = vrot.slane %v3207, %v4313
    %v4315 = vsel %vm4215, %v4314, %v4310
    %v4316 = vlaneseq
    %v4317 = vshrl.u32 %v4316, 7
    %v4318 = vsub.s32 %v4217, %v4317
    %v4319 = vrot.slane %v3210, %v4318
    %v4320 = vsel %vm4222, %v4319, %v4315
    %v4321 = vlaneseq
    %v4322 = vshrl.u32 %v4321, 7
    %v4323 = vsub.s32 %v4224, %v4322
    %v4324 = vrot.slane %v3213, %v4323
    %v4325 = vsel %vm4229, %v4324, %v4320
    %v4326 = vlaneseq
    %v4327 = vshrl.u32 %v4326, 7
    %v4328 = vsub.s32 %v4231, %v4327
    %v4329 = vrot.slane %v3216, %v4328
    %v4330 = vsel %vm4236, %v4329, %v4325
    %v4331 = vlaneseq
    %v4332 = vshrl.u32 %v4331, 7
    %v4333 = vsub.s32 %v4238, %v4332
    %v4334 = vrot.slane %v3219, %v4333
    %v4335 = vsel %vm4243, %v4334, %v4330
    %v4336 = vlaneseq
    %v4337 = vshrl.u32 %v4336, 7
    %v4338 = vsub.s32 %v4245, %v4337
    %v4339 = vrot.slane %v3222, %v4338
    %v4340 = vsel %vm4250, %v4339, %v4335
    %v4341 = vlaneseq
    %v4342 = vshrl.u32 %v4341, 7
    %v4343 = vsub.s32 %v4252, %v4342
    %v4344 = vrot.slane %v3225, %v4343
    %v4345 = vsel %vm4257, %v4344, %v4340
    %v4346 = vlaneseq
    %v4347 = vshrl.u32 %v4346, 7
    %v4348 = vsub.s32 %v4259, %v4347
    %v4349 = vrot.slane %v3228, %v4348
    %v4350 = vsel %vm4264, %v4349, %v4345
    %v4351 = vlaneseq
    %v4352 = vshrl.u32 %v4351, 7
    %v4353 = vsub.s32 %v4266, %v4352
    %v4354 = vrot.slane %v3231, %v4353
    %v4355 = vsel %vm4271, %v4354, %v4350
    %v4356 = vlaneseq
    %v4357 = vshrl.u32 %v4356, 7
    %v4358 = vsub.s32 %v4273, %v4357
    %v4359 = vrot.slane %v3234, %v4358
    %v4360 = vsel %vm4278, %v4359, %v4355
    %v4361 = vlaneseq
    %v4362 = vshrl.u32 %v4361, 7
    %v4363 = vsub.s32 %v4280, %v4362
    %v4364 = vrot.slane %v3237, %v4363
    %v4365 = vsel %vm4285, %v4364, %v4360
    %v4366 = vlaneseq
    %v4367 = vshrl.u32 %v4366, 7
    %v4368 = vsub.s32 %v3911, %v4367
    %v4369 = vrot.slane %v3240, %v4368
    %v4370 = vlaneseq
    %v4371 = vshrl.u32 %v4370, 7
    %v4372 = vsub.s32 %v4182, %v4371
    %v4373 = vrot.slane %v3243, %v4372
    %v4374 = vsel %vm4187, %v4373, %v4369
    %v4375 = vlaneseq
    %v4376 = vshrl.u32 %v4375, 7
    %v4377 = vsub.s32 %v4189, %v4376
    %v4378 = vrot.slane %v3246, %v4377
    %v4379 = vsel %vm4194, %v4378, %v4374
    %v4380 = vlaneseq
    %v4381 = vshrl.u32 %v4380, 7
    %v4382 = vsub.s32 %v4196, %v4381
    %v4383 = vrot.slane %v3249, %v4382
    %v4384 = vsel %vm4201, %v4383, %v4379
    %v4385 = vlaneseq
    %v4386 = vshrl.u32 %v4385, 7
    %v4387 = vsub.s32 %v4203, %v4386
    %v4388 = vrot.slane %v3252, %v4387
    %v4389 = vsel %vm4208, %v4388, %v4384
    %v4390 = vlaneseq
    %v4391 = vshrl.u32 %v4390, 7
    %v4392 = vsub.s32 %v4210, %v4391
    %v4393 = vrot.slane %v3255, %v4392
    %v4394 = vsel %vm4215, %v4393, %v4389
    %v4395 = vlaneseq
    %v4396 = vshrl.u32 %v4395, 7
    %v4397 = vsub.s32 %v4217, %v4396
    %v4398 = vrot.slane %v3258, %v4397
    %v4399 = vsel %vm4222, %v4398, %v4394
    %v4400 = vlaneseq
    %v4401 = vshrl.u32 %v4400, 7
    %v4402 = vsub.s32 %v4224, %v4401
    %v4403 = vrot.slane %v3261, %v4402
    %v4404 = vsel %vm4229, %v4403, %v4399
    %v4405 = vlaneseq
    %v4406 = vshrl.u32 %v4405, 7
    %v4407 = vsub.s32 %v4231, %v4406
    %v4408 = vrot.slane %v3264, %v4407
    %v4409 = vsel %vm4236, %v4408, %v4404
    %v4410 = vlaneseq
    %v4411 = vshrl.u32 %v4410, 7
    %v4412 = vsub.s32 %v4238, %v4411
    %v4413 = vrot.slane %v3267, %v4412
    %v4414 = vsel %vm4243, %v4413, %v4409
    %v4415 = vlaneseq
    %v4416 = vshrl.u32 %v4415, 7
    %v4417 = vsub.s32 %v4245, %v4416
    %v4418 = vrot.slane %v3270, %v4417
    %v4419 = vsel %vm4250, %v4418, %v4414
    %v4420 = vlaneseq
    %v4421 = vshrl.u32 %v4420, 7
    %v4422 = vsub.s32 %v4252, %v4421
    %v4423 = vrot.slane %v3273, %v4422
    %v4424 = vsel %vm4257, %v4423, %v4419
    %v4425 = vlaneseq
    %v4426 = vshrl.u32 %v4425, 7
    %v4427 = vsub.s32 %v4259, %v4426
    %v4428 = vrot.slane %v3276, %v4427
    %v4429 = vsel %vm4264, %v4428, %v4424
    %v4430 = vlaneseq
    %v4431 = vshrl.u32 %v4430, 7
    %v4432 = vsub.s32 %v4266, %v4431
    %v4433 = vrot.slane %v3279, %v4432
    %v4434 = vsel %vm4271, %v4433, %v4429
    %v4435 = vlaneseq
    %v4436 = vshrl.u32 %v4435, 7
    %v4437 = vsub.s32 %v4273, %v4436
    %v4438 = vrot.slane %v3282, %v4437
    %v4439 = vsel %vm4278, %v4438, %v4434
    %v4440 = vlaneseq
    %v4441 = vshrl.u32 %v4440, 7
    %v4442 = vsub.s32 %v4280, %v4441
    %v4443 = vrot.slane %v3285, %v4442
    %v4444 = vsel %vm4285, %v4443, %v4439
    %v4445 = vlaneseq
    %v4446 = vshrl.u32 %v4445, 7
    %v4447 = vsub.s32 %v3911, %v4446
    %v4448 = vrot.slane %v3288, %v4447
    %v4449 = vlaneseq
    %v4450 = vshrl.u32 %v4449, 7
    %v4451 = vsub.s32 %v4182, %v4450
    %v4452 = vrot.slane %v3291, %v4451
    %v4453 = vsel %vm4187, %v4452, %v4448
    %v4454 = vlaneseq
    %v4455 = vshrl.u32 %v4454, 7
    %v4456 = vsub.s32 %v4189, %v4455
    %v4457 = vrot.slane %v3294, %v4456
    %v4458 = vsel %vm4194, %v4457, %v4453
    %v4459 = vlaneseq
    %v4460 = vshrl.u32 %v4459, 7
    %v4461 = vsub.s32 %v4196, %v4460
    %v4462 = vrot.slane %v3297, %v4461
    %v4463 = vsel %vm4201, %v4462, %v4458
    %v4464 = vlaneseq
    %v4465 = vshrl.u32 %v4464, 7
    %v4466 = vsub.s32 %v4203, %v4465
    %v4467 = vrot.slane %v3300, %v4466
    %v4468 = vsel %vm4208, %v4467, %v4463
    %v4469 = vlaneseq
    %v4470 = vshrl.u32 %v4469, 7
    %v4471 = vsub.s32 %v4210, %v4470
    %v4472 = vrot.slane %v3303, %v4471
    %v4473 = vsel %vm4215, %v4472, %v4468
    %v4474 = vlaneseq
    %v4475 = vshrl.u32 %v4474, 7
    %v4476 = vsub.s32 %v4217, %v4475
    %v4477 = vrot.slane %v3306, %v4476
    %v4478 = vsel %vm4222, %v4477, %v4473
    %v4479 = vlaneseq
    %v4480 = vshrl.u32 %v4479, 7
    %v4481 = vsub.s32 %v4224, %v4480
    %v4482 = vrot.slane %v3309, %v4481
    %v4483 = vsel %vm4229, %v4482, %v4478
    %v4484 = vlaneseq
    %v4485 = vshrl.u32 %v4484, 7
    %v4486 = vsub.s32 %v4231, %v4485
    %v4487 = vrot.slane %v3312, %v4486
    %v4488 = vsel %vm4236, %v4487, %v4483
    %v4489 = vlaneseq
    %v4490 = vshrl.u32 %v4489, 7
    %v4491 = vsub.s32 %v4238, %v4490
    %v4492 = vrot.slane %v3315, %v4491
    %v4493 = vsel %vm4243, %v4492, %v4488
    %v4494 = vlaneseq
    %v4495 = vshrl.u32 %v4494, 7
    %v4496 = vsub.s32 %v4245, %v4495
    %v4497 = vrot.slane %v3318, %v4496
    %v4498 = vsel %vm4250, %v4497, %v4493
    %v4499 = vlaneseq
    %v4500 = vshrl.u32 %v4499, 7
    %v4501 = vsub.s32 %v4252, %v4500
    %v4502 = vrot.slane %v3321, %v4501
    %v4503 = vsel %vm4257, %v4502, %v4498
    %v4504 = vlaneseq
    %v4505 = vshrl.u32 %v4504, 7
    %v4506 = vsub.s32 %v4259, %v4505
    %v4507 = vrot.slane %v3324, %v4506
    %v4508 = vsel %vm4264, %v4507, %v4503
    %v4509 = vlaneseq
    %v4510 = vshrl.u32 %v4509, 7
    %v4511 = vsub.s32 %v4266, %v4510
    %v4512 = vrot.slane %v3327, %v4511
    %v4513 = vsel %vm4271, %v4512, %v4508
    %v4514 = vlaneseq
    %v4515 = vshrl.u32 %v4514, 7
    %v4516 = vsub.s32 %v4273, %v4515
    %v4517 = vrot.slane %v3330, %v4516
    %v4518 = vsel %vm4278, %v4517, %v4513
    %v4519 = vlaneseq
    %v4520 = vshrl.u32 %v4519, 7
    %v4521 = vsub.s32 %v4280, %v4520
    %v4522 = vrot.slane %v3333, %v4521
    %v4523 = vsel %vm4285, %v4522, %v4518
    %v4524 = vlaneseq
    %v4525 = vshrl.u32 %v4524, 7
    %v4526 = vsub.s32 %v3911, %v4525
    %v4527 = vrot.slane %v3336, %v4526
    %v4528 = vlaneseq
    %v4529 = vshrl.u32 %v4528, 7
    %v4530 = vsub.s32 %v4182, %v4529
    %v4531 = vrot.slane %v3339, %v4530
    %v4532 = vsel %vm4187, %v4531, %v4527
    %v4533 = vlaneseq
    %v4534 = vshrl.u32 %v4533, 7
    %v4535 = vsub.s32 %v4189, %v4534
    %v4536 = vrot.slane %v3342, %v4535
    %v4537 = vsel %vm4194, %v4536, %v4532
    %v4538 = vlaneseq
    %v4539 = vshrl.u32 %v4538, 7
    %v4540 = vsub.s32 %v4196, %v4539
    %v4541 = vrot.slane %v3345, %v4540
    %v4542 = vsel %vm4201, %v4541, %v4537
    %v4543 = vlaneseq
    %v4544 = vshrl.u32 %v4543, 7
    %v4545 = vsub.s32 %v4203, %v4544
    %v4546 = vrot.slane %v3348, %v4545
    %v4547 = vsel %vm4208, %v4546, %v4542
    %v4548 = vlaneseq
    %v4549 = vshrl.u32 %v4548, 7
    %v4550 = vsub.s32 %v4210, %v4549
    %v4551 = vrot.slane %v3351, %v4550
    %v4552 = vsel %vm4215, %v4551, %v4547
    %v4553 = vlaneseq
    %v4554 = vshrl.u32 %v4553, 7
    %v4555 = vsub.s32 %v4217, %v4554
    %v4556 = vrot.slane %v3354, %v4555
    %v4557 = vsel %vm4222, %v4556, %v4552
    %v4558 = vlaneseq
    %v4559 = vshrl.u32 %v4558, 7
    %v4560 = vsub.s32 %v4224, %v4559
    %v4561 = vrot.slane %v3357, %v4560
    %v4562 = vsel %vm4229, %v4561, %v4557
    %v4563 = vlaneseq
    %v4564 = vshrl.u32 %v4563, 7
    %v4565 = vsub.s32 %v4231, %v4564
    %v4566 = vrot.slane %v3360, %v4565
    %v4567 = vsel %vm4236, %v4566, %v4562
    %v4568 = vlaneseq
    %v4569 = vshrl.u32 %v4568, 7
    %v4570 = vsub.s32 %v4238, %v4569
    %v4571 = vrot.slane %v3363, %v4570
    %v4572 = vsel %vm4243, %v4571, %v4567
    %v4573 = vlaneseq
    %v4574 = vshrl.u32 %v4573, 7
    %v4575 = vsub.s32 %v4245, %v4574
    %v4576 = vrot.slane %v3366, %v4575
    %v4577 = vsel %vm4250, %v4576, %v4572
    %v4578 = vlaneseq
    %v4579 = vshrl.u32 %v4578, 7
    %v4580 = vsub.s32 %v4252, %v4579
    %v4581 = vrot.slane %v3369, %v4580
    %v4582 = vsel %vm4257, %v4581, %v4577
    %v4583 = vlaneseq
    %v4584 = vshrl.u32 %v4583, 7
    %v4585 = vsub.s32 %v4259, %v4584
    %v4586 = vrot.slane %v3372, %v4585
    %v4587 = vsel %vm4264, %v4586, %v4582
    %v4588 = vlaneseq
    %v4589 = vshrl.u32 %v4588, 7
    %v4590 = vsub.s32 %v4266, %v4589
    %v4591 = vrot.slane %v3375, %v4590
    %v4592 = vsel %vm4271, %v4591, %v4587
    %v4593 = vlaneseq
    %v4594 = vshrl.u32 %v4593, 7
    %v4595 = vsub.s32 %v4273, %v4594
    %v4596 = vrot.slane %v3378, %v4595
    %v4597 = vsel %vm4278, %v4596, %v4592
    %v4598 = vlaneseq
    %v4599 = vshrl.u32 %v4598, 7
    %v4600 = vsub.s32 %v4280, %v4599
    %v4601 = vrot.slane %v3381, %v4600
    %v4602 = vsel %vm4285, %v4601, %v4597
    %v4603 = vlaneseq
    %v4604 = vshrl.u32 %v4603, 7
    %v4605 = vsub.s32 %v3911, %v4604
    %v4606 = vrot.slane %v3384, %v4605
    %v4607 = vlaneseq
    %v4608 = vshrl.u32 %v4607, 7
    %v4609 = vsub.s32 %v4182, %v4608
    %v4610 = vrot.slane %v3387, %v4609
    %v4611 = vsel %vm4187, %v4610, %v4606
    %v4612 = vlaneseq
    %v4613 = vshrl.u32 %v4612, 7
    %v4614 = vsub.s32 %v4189, %v4613
    %v4615 = vrot.slane %v3390, %v4614
    %v4616 = vsel %vm4194, %v4615, %v4611
    %v4617 = vlaneseq
    %v4618 = vshrl.u32 %v4617, 7
    %v4619 = vsub.s32 %v4196, %v4618
    %v4620 = vrot.slane %v3393, %v4619
    %v4621 = vsel %vm4201, %v4620, %v4616
    %v4622 = vlaneseq
    %v4623 = vshrl.u32 %v4622, 7
    %v4624 = vsub.s32 %v4203, %v4623
    %v4625 = vrot.slane %v3396, %v4624
    %v4626 = vsel %vm4208, %v4625, %v4621
    %v4627 = vlaneseq
    %v4628 = vshrl.u32 %v4627, 7
    %v4629 = vsub.s32 %v4210, %v4628
    %v4630 = vrot.slane %v3399, %v4629
    %v4631 = vsel %vm4215, %v4630, %v4626
    %v4632 = vlaneseq
    %v4633 = vshrl.u32 %v4632, 7
    %v4634 = vsub.s32 %v4217, %v4633
    %v4635 = vrot.slane %v3402, %v4634
    %v4636 = vsel %vm4222, %v4635, %v4631
    %v4637 = vlaneseq
    %v4638 = vshrl.u32 %v4637, 7
    %v4639 = vsub.s32 %v4224, %v4638
    %v4640 = vrot.slane %v3405, %v4639
    %v4641 = vsel %vm4229, %v4640, %v4636
    %v4642 = vlaneseq
    %v4643 = vshrl.u32 %v4642, 7
    %v4644 = vsub.s32 %v4231, %v4643
    %v4645 = vrot.slane %v3408, %v4644
    %v4646 = vsel %vm4236, %v4645, %v4641
    %v4647 = vlaneseq
    %v4648 = vshrl.u32 %v4647, 7
    %v4649 = vsub.s32 %v4238, %v4648
    %v4650 = vrot.slane %v3411, %v4649
    %v4651 = vsel %vm4243, %v4650, %v4646
    %v4652 = vlaneseq
    %v4653 = vshrl.u32 %v4652, 7
    %v4654 = vsub.s32 %v4245, %v4653
    %v4655 = vrot.slane %v3414, %v4654
    %v4656 = vsel %vm4250, %v4655, %v4651
    %v4657 = vlaneseq
    %v4658 = vshrl.u32 %v4657, 7
    %v4659 = vsub.s32 %v4252, %v4658
    %v4660 = vrot.slane %v3417, %v4659
    %v4661 = vsel %vm4257, %v4660, %v4656
    %v4662 = vlaneseq
    %v4663 = vshrl.u32 %v4662, 7
    %v4664 = vsub.s32 %v4259, %v4663
    %v4665 = vrot.slane %v3420, %v4664
    %v4666 = vsel %vm4264, %v4665, %v4661
    %v4667 = vlaneseq
    %v4668 = vshrl.u32 %v4667, 7
    %v4669 = vsub.s32 %v4266, %v4668
    %v4670 = vrot.slane %v3423, %v4669
    %v4671 = vsel %vm4271, %v4670, %v4666
    %v4672 = vlaneseq
    %v4673 = vshrl.u32 %v4672, 7
    %v4674 = vsub.s32 %v4273, %v4673
    %v4675 = vrot.slane %v3426, %v4674
    %v4676 = vsel %vm4278, %v4675, %v4671
    %v4677 = vlaneseq
    %v4678 = vshrl.u32 %v4677, 7
    %v4679 = vsub.s32 %v4280, %v4678
    %v4680 = vrot.slane %v3429, %v4679
    %v4681 = vsel %vm4285, %v4680, %v4676
    %v4682 = vlaneseq
    %v4683 = vshrl.u32 %v4682, 7
    %v4684 = vsub.s32 %v3911, %v4683
    %v4685 = vrot.slane %v3432, %v4684
    %v4686 = vlaneseq
    %v4687 = vshrl.u32 %v4686, 7
    %v4688 = vsub.s32 %v4182, %v4687
    %v4689 = vrot.slane %v3435, %v4688
    %v4690 = vsel %vm4187, %v4689, %v4685
    %v4691 = vlaneseq
    %v4692 = vshrl.u32 %v4691, 7
    %v4693 = vsub.s32 %v4189, %v4692
    %v4694 = vrot.slane %v3438, %v4693
    %v4695 = vsel %vm4194, %v4694, %v4690
    %v4696 = vlaneseq
    %v4697 = vshrl.u32 %v4696, 7
    %v4698 = vsub.s32 %v4196, %v4697
    %v4699 = vrot.slane %v3441, %v4698
    %v4700 = vsel %vm4201, %v4699, %v4695
    %v4701 = vlaneseq
    %v4702 = vshrl.u32 %v4701, 7
    %v4703 = vsub.s32 %v4203, %v4702
    %v4704 = vrot.slane %v3444, %v4703
    %v4705 = vsel %vm4208, %v4704, %v4700
    %v4706 = vlaneseq
    %v4707 = vshrl.u32 %v4706, 7
    %v4708 = vsub.s32 %v4210, %v4707
    %v4709 = vrot.slane %v3447, %v4708
    %v4710 = vsel %vm4215, %v4709, %v4705
    %v4711 = vlaneseq
    %v4712 = vshrl.u32 %v4711, 7
    %v4713 = vsub.s32 %v4217, %v4712
    %v4714 = vrot.slane %v3450, %v4713
    %v4715 = vsel %vm4222, %v4714, %v4710
    %v4716 = vlaneseq
    %v4717 = vshrl.u32 %v4716, 7
    %v4718 = vsub.s32 %v4224, %v4717
    %v4719 = vrot.slane %v3453, %v4718
    %v4720 = vsel %vm4229, %v4719, %v4715
    %v4721 = vlaneseq
    %v4722 = vshrl.u32 %v4721, 7
    %v4723 = vsub.s32 %v4231, %v4722
    %v4724 = vrot.slane %v3456, %v4723
    %v4725 = vsel %vm4236, %v4724, %v4720
    %v4726 = vlaneseq
    %v4727 = vshrl.u32 %v4726, 7
    %v4728 = vsub.s32 %v4238, %v4727
    %v4729 = vrot.slane %v3459, %v4728
    %v4730 = vsel %vm4243, %v4729, %v4725
    %v4731 = vlaneseq
    %v4732 = vshrl.u32 %v4731, 7
    %v4733 = vsub.s32 %v4245, %v4732
    %v4734 = vrot.slane %v3462, %v4733
    %v4735 = vsel %vm4250, %v4734, %v4730
    %v4736 = vlaneseq
    %v4737 = vshrl.u32 %v4736, 7
    %v4738 = vsub.s32 %v4252, %v4737
    %v4739 = vrot.slane %v3465, %v4738
    %v4740 = vsel %vm4257, %v4739, %v4735
    %v4741 = vlaneseq
    %v4742 = vshrl.u32 %v4741, 7
    %v4743 = vsub.s32 %v4259, %v4742
    %v4744 = vrot.slane %v3468, %v4743
    %v4745 = vsel %vm4264, %v4744, %v4740
    %v4746 = vlaneseq
    %v4747 = vshrl.u32 %v4746, 7
    %v4748 = vsub.s32 %v4266, %v4747
    %v4749 = vrot.slane %v3471, %v4748
    %v4750 = vsel %vm4271, %v4749, %v4745
    %v4751 = vlaneseq
    %v4752 = vshrl.u32 %v4751, 7
    %v4753 = vsub.s32 %v4273, %v4752
    %v4754 = vrot.slane %v3474, %v4753
    %v4755 = vsel %vm4278, %v4754, %v4750
    %v4756 = vlaneseq
    %v4757 = vshrl.u32 %v4756, 7
    %v4758 = vsub.s32 %v4280, %v4757
    %v4759 = vrot.slane %v3477, %v4758
    %v4760 = vsel %vm4285, %v4759, %v4755
    %v4761 = vlaneseq
    %v4762 = vshrl.u32 %v4761, 7
    %v4763 = vsub.s32 %v3911, %v4762
    %v4764 = vrot.slane %v3480, %v4763
    %v4765 = vlaneseq
    %v4766 = vshrl.u32 %v4765, 7
    %v4767 = vsub.s32 %v4182, %v4766
    %v4768 = vrot.slane %v3483, %v4767
    %v4769 = vsel %vm4187, %v4768, %v4764
    %v4770 = vlaneseq
    %v4771 = vshrl.u32 %v4770, 7
    %v4772 = vsub.s32 %v4189, %v4771
    %v4773 = vrot.slane %v3486, %v4772
    %v4774 = vsel %vm4194, %v4773, %v4769
    %v4775 = vlaneseq
    %v4776 = vshrl.u32 %v4775, 7
    %v4777 = vsub.s32 %v4196, %v4776
    %v4778 = vrot.slane %v3489, %v4777
    %v4779 = vsel %vm4201, %v4778, %v4774
    %v4780 = vlaneseq
    %v4781 = vshrl.u32 %v4780, 7
    %v4782 = vsub.s32 %v4203, %v4781
    %v4783 = vrot.slane %v3492, %v4782
    %v4784 = vsel %vm4208, %v4783, %v4779
    %v4785 = vlaneseq
    %v4786 = vshrl.u32 %v4785, 7
    %v4787 = vsub.s32 %v4210, %v4786
    %v4788 = vrot.slane %v3495, %v4787
    %v4789 = vsel %vm4215, %v4788, %v4784
    %v4790 = vlaneseq
    %v4791 = vshrl.u32 %v4790, 7
    %v4792 = vsub.s32 %v4217, %v4791
    %v4793 = vrot.slane %v3498, %v4792
    %v4794 = vsel %vm4222, %v4793, %v4789
    %v4795 = vlaneseq
    %v4796 = vshrl.u32 %v4795, 7
    %v4797 = vsub.s32 %v4224, %v4796
    %v4798 = vrot.slane %v3501, %v4797
    %v4799 = vsel %vm4229, %v4798, %v4794
    %v4800 = vlaneseq
    %v4801 = vshrl.u32 %v4800, 7
    %v4802 = vsub.s32 %v4231, %v4801
    %v4803 = vrot.slane %v3504, %v4802
    %v4804 = vsel %vm4236, %v4803, %v4799
    %v4805 = vlaneseq
    %v4806 = vshrl.u32 %v4805, 7
    %v4807 = vsub.s32 %v4238, %v4806
    %v4808 = vrot.slane %v3507, %v4807
    %v4809 = vsel %vm4243, %v4808, %v4804
    %v4810 = vlaneseq
    %v4811 = vshrl.u32 %v4810, 7
    %v4812 = vsub.s32 %v4245, %v4811
    %v4813 = vrot.slane %v3510, %v4812
    %v4814 = vsel %vm4250, %v4813, %v4809
    %v4815 = vlaneseq
    %v4816 = vshrl.u32 %v4815, 7
    %v4817 = vsub.s32 %v4252, %v4816
    %v4818 = vrot.slane %v3513, %v4817
    %v4819 = vsel %vm4257, %v4818, %v4814
    %v4820 = vlaneseq
    %v4821 = vshrl.u32 %v4820, 7
    %v4822 = vsub.s32 %v4259, %v4821
    %v4823 = vrot.slane %v3516, %v4822
    %v4824 = vsel %vm4264, %v4823, %v4819
    %v4825 = vlaneseq
    %v4826 = vshrl.u32 %v4825, 7
    %v4827 = vsub.s32 %v4266, %v4826
    %v4828 = vrot.slane %v3519, %v4827
    %v4829 = vsel %vm4271, %v4828, %v4824
    %v4830 = vlaneseq
    %v4831 = vshrl.u32 %v4830, 7
    %v4832 = vsub.s32 %v4273, %v4831
    %v4833 = vrot.slane %v3522, %v4832
    %v4834 = vsel %vm4278, %v4833, %v4829
    %v4835 = vlaneseq
    %v4836 = vshrl.u32 %v4835, 7
    %v4837 = vsub.s32 %v4280, %v4836
    %v4838 = vrot.slane %v3525, %v4837
    %v4839 = vsel %vm4285, %v4838, %v4834
    %v4840 = vlaneseq
    %v4841 = vshrl.u32 %v4840, 7
    %v4842 = vsub.s32 %v3911, %v4841
    %v4843 = vrot.slane %v3528, %v4842
    %v4844 = vlaneseq
    %v4845 = vshrl.u32 %v4844, 7
    %v4846 = vsub.s32 %v4182, %v4845
    %v4847 = vrot.slane %v3531, %v4846
    %v4848 = vsel %vm4187, %v4847, %v4843
    %v4849 = vlaneseq
    %v4850 = vshrl.u32 %v4849, 7
    %v4851 = vsub.s32 %v4189, %v4850
    %v4852 = vrot.slane %v3534, %v4851
    %v4853 = vsel %vm4194, %v4852, %v4848
    %v4854 = vlaneseq
    %v4855 = vshrl.u32 %v4854, 7
    %v4856 = vsub.s32 %v4196, %v4855
    %v4857 = vrot.slane %v3537, %v4856
    %v4858 = vsel %vm4201, %v4857, %v4853
    %v4859 = vlaneseq
    %v4860 = vshrl.u32 %v4859, 7
    %v4861 = vsub.s32 %v4203, %v4860
    %v4862 = vrot.slane %v3540, %v4861
    %v4863 = vsel %vm4208, %v4862, %v4858
    %v4864 = vlaneseq
    %v4865 = vshrl.u32 %v4864, 7
    %v4866 = vsub.s32 %v4210, %v4865
    %v4867 = vrot.slane %v3543, %v4866
    %v4868 = vsel %vm4215, %v4867, %v4863
    %v4869 = vlaneseq
    %v4870 = vshrl.u32 %v4869, 7
    %v4871 = vsub.s32 %v4217, %v4870
    %v4872 = vrot.slane %v3546, %v4871
    %v4873 = vsel %vm4222, %v4872, %v4868
    %v4874 = vlaneseq
    %v4875 = vshrl.u32 %v4874, 7
    %v4876 = vsub.s32 %v4224, %v4875
    %v4877 = vrot.slane %v3549, %v4876
    %v4878 = vsel %vm4229, %v4877, %v4873
    %v4879 = vlaneseq
    %v4880 = vshrl.u32 %v4879, 7
    %v4881 = vsub.s32 %v4231, %v4880
    %v4882 = vrot.slane %v3552, %v4881
    %v4883 = vsel %vm4236, %v4882, %v4878
    %v4884 = vlaneseq
    %v4885 = vshrl.u32 %v4884, 7
    %v4886 = vsub.s32 %v4238, %v4885
    %v4887 = vrot.slane %v3555, %v4886
    %v4888 = vsel %vm4243, %v4887, %v4883
    %v4889 = vlaneseq
    %v4890 = vshrl.u32 %v4889, 7
    %v4891 = vsub.s32 %v4245, %v4890
    %v4892 = vrot.slane %v3558, %v4891
    %v4893 = vsel %vm4250, %v4892, %v4888
    %v4894 = vlaneseq
    %v4895 = vshrl.u32 %v4894, 7
    %v4896 = vsub.s32 %v4252, %v4895
    %v4897 = vrot.slane %v3561, %v4896
    %v4898 = vsel %vm4257, %v4897, %v4893
    %v4899 = vlaneseq
    %v4900 = vshrl.u32 %v4899, 7
    %v4901 = vsub.s32 %v4259, %v4900
    %v4902 = vrot.slane %v3564, %v4901
    %v4903 = vsel %vm4264, %v4902, %v4898
    %v4904 = vlaneseq
    %v4905 = vshrl.u32 %v4904, 7
    %v4906 = vsub.s32 %v4266, %v4905
    %v4907 = vrot.slane %v3567, %v4906
    %v4908 = vsel %vm4271, %v4907, %v4903
    %v4909 = vlaneseq
    %v4910 = vshrl.u32 %v4909, 7
    %v4911 = vsub.s32 %v4273, %v4910
    %v4912 = vrot.slane %v3570, %v4911
    %v4913 = vsel %vm4278, %v4912, %v4908
    %v4914 = vlaneseq
    %v4915 = vshrl.u32 %v4914, 7
    %v4916 = vsub.s32 %v4280, %v4915
    %v4917 = vrot.slane %v3573, %v4916
    %v4918 = vsel %vm4285, %v4917, %v4913
    %v4919 = vlaneseq
    %v4920 = vshrl.u32 %v4919, 7
    %v4921 = vsub.s32 %v3911, %v4920
    %v4922 = vrot.slane %v3576, %v4921
    %v4923 = vlaneseq
    %v4924 = vshrl.u32 %v4923, 7
    %v4925 = vsub.s32 %v4182, %v4924
    %v4926 = vrot.slane %v3579, %v4925
    %v4927 = vsel %vm4187, %v4926, %v4922
    %v4928 = vlaneseq
    %v4929 = vshrl.u32 %v4928, 7
    %v4930 = vsub.s32 %v4189, %v4929
    %v4931 = vrot.slane %v3582, %v4930
    %v4932 = vsel %vm4194, %v4931, %v4927
    %v4933 = vlaneseq
    %v4934 = vshrl.u32 %v4933, 7
    %v4935 = vsub.s32 %v4196, %v4934
    %v4936 = vrot.slane %v3585, %v4935
    %v4937 = vsel %vm4201, %v4936, %v4932
    %v4938 = vlaneseq
    %v4939 = vshrl.u32 %v4938, 7
    %v4940 = vsub.s32 %v4203, %v4939
    %v4941 = vrot.slane %v3588, %v4940
    %v4942 = vsel %vm4208, %v4941, %v4937
    %v4943 = vlaneseq
    %v4944 = vshrl.u32 %v4943, 7
    %v4945 = vsub.s32 %v4210, %v4944
    %v4946 = vrot.slane %v3591, %v4945
    %v4947 = vsel %vm4215, %v4946, %v4942
    %v4948 = vlaneseq
    %v4949 = vshrl.u32 %v4948, 7
    %v4950 = vsub.s32 %v4217, %v4949
    %v4951 = vrot.slane %v3594, %v4950
    %v4952 = vsel %vm4222, %v4951, %v4947
    %v4953 = vlaneseq
    %v4954 = vshrl.u32 %v4953, 7
    %v4955 = vsub.s32 %v4224, %v4954
    %v4956 = vrot.slane %v3597, %v4955
    %v4957 = vsel %vm4229, %v4956, %v4952
    %v4958 = vlaneseq
    %v4959 = vshrl.u32 %v4958, 7
    %v4960 = vsub.s32 %v4231, %v4959
    %v4961 = vrot.slane %v3600, %v4960
    %v4962 = vsel %vm4236, %v4961, %v4957
    %v4963 = vlaneseq
    %v4964 = vshrl.u32 %v4963, 7
    %v4965 = vsub.s32 %v4238, %v4964
    %v4966 = vrot.slane %v3603, %v4965
    %v4967 = vsel %vm4243, %v4966, %v4962
    %v4968 = vlaneseq
    %v4969 = vshrl.u32 %v4968, 7
    %v4970 = vsub.s32 %v4245, %v4969
    %v4971 = vrot.slane %v3606, %v4970
    %v4972 = vsel %vm4250, %v4971, %v4967
    %v4973 = vlaneseq
    %v4974 = vshrl.u32 %v4973, 7
    %v4975 = vsub.s32 %v4252, %v4974
    %v4976 = vrot.slane %v3609, %v4975
    %v4977 = vsel %vm4257, %v4976, %v4972
    %v4978 = vlaneseq
    %v4979 = vshrl.u32 %v4978, 7
    %v4980 = vsub.s32 %v4259, %v4979
    %v4981 = vrot.slane %v3612, %v4980
    %v4982 = vsel %vm4264, %v4981, %v4977
    %v4983 = vlaneseq
    %v4984 = vshrl.u32 %v4983, 7
    %v4985 = vsub.s32 %v4266, %v4984
    %v4986 = vrot.slane %v3615, %v4985
    %v4987 = vsel %vm4271, %v4986, %v4982
    %v4988 = vlaneseq
    %v4989 = vshrl.u32 %v4988, 7
    %v4990 = vsub.s32 %v4273, %v4989
    %v4991 = vrot.slane %v3618, %v4990
    %v4992 = vsel %vm4278, %v4991, %v4987
    %v4993 = vlaneseq
    %v4994 = vshrl.u32 %v4993, 7
    %v4995 = vsub.s32 %v4280, %v4994
    %v4996 = vrot.slane %v3621, %v4995
    %v4997 = vsel %vm4285, %v4996, %v4992
    %v4998 = vlaneseq
    %v4999 = vshrl.u32 %v4998, 7
    %v5000 = vsub.s32 %v3911, %v4999
    %v5001 = vrot.slane %v3624, %v5000
    %v5002 = vlaneseq
    %v5003 = vshrl.u32 %v5002, 7
    %v5004 = vsub.s32 %v4182, %v5003
    %v5005 = vrot.slane %v3627, %v5004
    %v5006 = vsel %vm4187, %v5005, %v5001
    %v5007 = vlaneseq
    %v5008 = vshrl.u32 %v5007, 7
    %v5009 = vsub.s32 %v4189, %v5008
    %v5010 = vrot.slane %v3630, %v5009
    %v5011 = vsel %vm4194, %v5010, %v5006
    %v5012 = vlaneseq
    %v5013 = vshrl.u32 %v5012, 7
    %v5014 = vsub.s32 %v4196, %v5013
    %v5015 = vrot.slane %v3633, %v5014
    %v5016 = vsel %vm4201, %v5015, %v5011
    %v5017 = vlaneseq
    %v5018 = vshrl.u32 %v5017, 7
    %v5019 = vsub.s32 %v4203, %v5018
    %v5020 = vrot.slane %v3636, %v5019
    %v5021 = vsel %vm4208, %v5020, %v5016
    %v5022 = vlaneseq
    %v5023 = vshrl.u32 %v5022, 7
    %v5024 = vsub.s32 %v4210, %v5023
    %v5025 = vrot.slane %v3639, %v5024
    %v5026 = vsel %vm4215, %v5025, %v5021
    %v5027 = vlaneseq
    %v5028 = vshrl.u32 %v5027, 7
    %v5029 = vsub.s32 %v4217, %v5028
    %v5030 = vrot.slane %v3642, %v5029
    %v5031 = vsel %vm4222, %v5030, %v5026
    %v5032 = vlaneseq
    %v5033 = vshrl.u32 %v5032, 7
    %v5034 = vsub.s32 %v4224, %v5033
    %v5035 = vrot.slane %v3645, %v5034
    %v5036 = vsel %vm4229, %v5035, %v5031
    %v5037 = vlaneseq
    %v5038 = vshrl.u32 %v5037, 7
    %v5039 = vsub.s32 %v4231, %v5038
    %v5040 = vrot.slane %v3648, %v5039
    %v5041 = vsel %vm4236, %v5040, %v5036
    %v5042 = vlaneseq
    %v5043 = vshrl.u32 %v5042, 7
    %v5044 = vsub.s32 %v4238, %v5043
    %v5045 = vrot.slane %v3651, %v5044
    %v5046 = vsel %vm4243, %v5045, %v5041
    %v5047 = vlaneseq
    %v5048 = vshrl.u32 %v5047, 7
    %v5049 = vsub.s32 %v4245, %v5048
    %v5050 = vrot.slane %v3654, %v5049
    %v5051 = vsel %vm4250, %v5050, %v5046
    %v5052 = vlaneseq
    %v5053 = vshrl.u32 %v5052, 7
    %v5054 = vsub.s32 %v4252, %v5053
    %v5055 = vrot.slane %v3657, %v5054
    %v5056 = vsel %vm4257, %v5055, %v5051
    %v5057 = vlaneseq
    %v5058 = vshrl.u32 %v5057, 7
    %v5059 = vsub.s32 %v4259, %v5058
    %v5060 = vrot.slane %v3660, %v5059
    %v5061 = vsel %vm4264, %v5060, %v5056
    %v5062 = vlaneseq
    %v5063 = vshrl.u32 %v5062, 7
    %v5064 = vsub.s32 %v4266, %v5063
    %v5065 = vrot.slane %v3663, %v5064
    %v5066 = vsel %vm4271, %v5065, %v5061
    %v5067 = vlaneseq
    %v5068 = vshrl.u32 %v5067, 7
    %v5069 = vsub.s32 %v4273, %v5068
    %v5070 = vrot.slane %v3666, %v5069
    %v5071 = vsel %vm4278, %v5070, %v5066
    %v5072 = vlaneseq
    %v5073 = vshrl.u32 %v5072, 7
    %v5074 = vsub.s32 %v4280, %v5073
    %v5075 = vrot.slane %v3669, %v5074
    %v5076 = vsel %vm4285, %v5075, %v5071
    %v5077 = vlaneseq
    %v5078 = vshrl.u32 %v5077, 7
    %v5079 = vsub.s32 %v3911, %v5078
    %v5080 = vrot.slane %v3672, %v5079
    %v5081 = vlaneseq
    %v5082 = vshrl.u32 %v5081, 7
    %v5083 = vsub.s32 %v4182, %v5082
    %v5084 = vrot.slane %v3675, %v5083
    %v5085 = vsel %vm4187, %v5084, %v5080
    %v5086 = vlaneseq
    %v5087 = vshrl.u32 %v5086, 7
    %v5088 = vsub.s32 %v4189, %v5087
    %v5089 = vrot.slane %v3678, %v5088
    %v5090 = vsel %vm4194, %v5089, %v5085
    %v5091 = vlaneseq
    %v5092 = vshrl.u32 %v5091, 7
    %v5093 = vsub.s32 %v4196, %v5092
    %v5094 = vrot.slane %v3681, %v5093
    %v5095 = vsel %vm4201, %v5094, %v5090
    %v5096 = vlaneseq
    %v5097 = vshrl.u32 %v5096, 7
    %v5098 = vsub.s32 %v4203, %v5097
    %v5099 = vrot.slane %v3684, %v5098
    %v5100 = vsel %vm4208, %v5099, %v5095
    %v5101 = vlaneseq
    %v5102 = vshrl.u32 %v5101, 7
    %v5103 = vsub.s32 %v4210, %v5102
    %v5104 = vrot.slane %v3687, %v5103
    %v5105 = vsel %vm4215, %v5104, %v5100
    %v5106 = vlaneseq
    %v5107 = vshrl.u32 %v5106, 7
    %v5108 = vsub.s32 %v4217, %v5107
    %v5109 = vrot.slane %v3690, %v5108
    %v5110 = vsel %vm4222, %v5109, %v5105
    %v5111 = vlaneseq
    %v5112 = vshrl.u32 %v5111, 7
    %v5113 = vsub.s32 %v4224, %v5112
    %v5114 = vrot.slane %v3693, %v5113
    %v5115 = vsel %vm4229, %v5114, %v5110
    %v5116 = vlaneseq
    %v5117 = vshrl.u32 %v5116, 7
    %v5118 = vsub.s32 %v4231, %v5117
    %v5119 = vrot.slane %v3696, %v5118
    %v5120 = vsel %vm4236, %v5119, %v5115
    %v5121 = vlaneseq
    %v5122 = vshrl.u32 %v5121, 7
    %v5123 = vsub.s32 %v4238, %v5122
    %v5124 = vrot.slane %v3699, %v5123
    %v5125 = vsel %vm4243, %v5124, %v5120
    %v5126 = vlaneseq
    %v5127 = vshrl.u32 %v5126, 7
    %v5128 = vsub.s32 %v4245, %v5127
    %v5129 = vrot.slane %v3702, %v5128
    %v5130 = vsel %vm4250, %v5129, %v5125
    %v5131 = vlaneseq
    %v5132 = vshrl.u32 %v5131, 7
    %v5133 = vsub.s32 %v4252, %v5132
    %v5134 = vrot.slane %v3705, %v5133
    %v5135 = vsel %vm4257, %v5134, %v5130
    %v5136 = vlaneseq
    %v5137 = vshrl.u32 %v5136, 7
    %v5138 = vsub.s32 %v4259, %v5137
    %v5139 = vrot.slane %v3708, %v5138
    %v5140 = vsel %vm4264, %v5139, %v5135
    %v5141 = vlaneseq
    %v5142 = vshrl.u32 %v5141, 7
    %v5143 = vsub.s32 %v4266, %v5142
    %v5144 = vrot.slane %v3711, %v5143
    %v5145 = vsel %vm4271, %v5144, %v5140
    %v5146 = vlaneseq
    %v5147 = vshrl.u32 %v5146, 7
    %v5148 = vsub.s32 %v4273, %v5147
    %v5149 = vrot.slane %v3714, %v5148
    %v5150 = vsel %vm4278, %v5149, %v5145
    %v5151 = vlaneseq
    %v5152 = vshrl.u32 %v5151, 7
    %v5153 = vsub.s32 %v4280, %v5152
    %v5154 = vrot.slane %v3717, %v5153
    %v5155 = vsel %vm4285, %v5154, %v5150
    %v5156 = vlaneseq
    %v5157 = vshrl.u32 %v5156, 7
    %v5158 = vsub.s32 %v3911, %v5157
    %v5159 = vrot.slane %v3720, %v5158
    %v5160 = vlaneseq
    %v5161 = vshrl.u32 %v5160, 7
    %v5162 = vsub.s32 %v4182, %v5161
    %v5163 = vrot.slane %v3723, %v5162
    %v5164 = vsel %vm4187, %v5163, %v5159
    %v5165 = vlaneseq
    %v5166 = vshrl.u32 %v5165, 7
    %v5167 = vsub.s32 %v4189, %v5166
    %v5168 = vrot.slane %v3726, %v5167
    %v5169 = vsel %vm4194, %v5168, %v5164
    %v5170 = vlaneseq
    %v5171 = vshrl.u32 %v5170, 7
    %v5172 = vsub.s32 %v4196, %v5171
    %v5173 = vrot.slane %v3729, %v5172
    %v5174 = vsel %vm4201, %v5173, %v5169
    %v5175 = vlaneseq
    %v5176 = vshrl.u32 %v5175, 7
    %v5177 = vsub.s32 %v4203, %v5176
    %v5178 = vrot.slane %v3732, %v5177
    %v5179 = vsel %vm4208, %v5178, %v5174
    %v5180 = vlaneseq
    %v5181 = vshrl.u32 %v5180, 7
    %v5182 = vsub.s32 %v4210, %v5181
    %v5183 = vrot.slane %v3735, %v5182
    %v5184 = vsel %vm4215, %v5183, %v5179
    %v5185 = vlaneseq
    %v5186 = vshrl.u32 %v5185, 7
    %v5187 = vsub.s32 %v4217, %v5186
    %v5188 = vrot.slane %v3738, %v5187
    %v5189 = vsel %vm4222, %v5188, %v5184
    %v5190 = vlaneseq
    %v5191 = vshrl.u32 %v5190, 7
    %v5192 = vsub.s32 %v4224, %v5191
    %v5193 = vrot.slane %v3741, %v5192
    %v5194 = vsel %vm4229, %v5193, %v5189
    %v5195 = vlaneseq
    %v5196 = vshrl.u32 %v5195, 7
    %v5197 = vsub.s32 %v4231, %v5196
    %v5198 = vrot.slane %v3744, %v5197
    %v5199 = vsel %vm4236, %v5198, %v5194
    %v5200 = vlaneseq
    %v5201 = vshrl.u32 %v5200, 7
    %v5202 = vsub.s32 %v4238, %v5201
    %v5203 = vrot.slane %v3747, %v5202
    %v5204 = vsel %vm4243, %v5203, %v5199
    %v5205 = vlaneseq
    %v5206 = vshrl.u32 %v5205, 7
    %v5207 = vsub.s32 %v4245, %v5206
    %v5208 = vrot.slane %v3750, %v5207
    %v5209 = vsel %vm4250, %v5208, %v5204
    %v5210 = vlaneseq
    %v5211 = vshrl.u32 %v5210, 7
    %v5212 = vsub.s32 %v4252, %v5211
    %v5213 = vrot.slane %v3753, %v5212
    %v5214 = vsel %vm4257, %v5213, %v5209
    %v5215 = vlaneseq
    %v5216 = vshrl.u32 %v5215, 7
    %v5217 = vsub.s32 %v4259, %v5216
    %v5218 = vrot.slane %v3756, %v5217
    %v5219 = vsel %vm4264, %v5218, %v5214
    %v5220 = vlaneseq
    %v5221 = vshrl.u32 %v5220, 7
    %v5222 = vsub.s32 %v4266, %v5221
    %v5223 = vrot.slane %v3759, %v5222
    %v5224 = vsel %vm4271, %v5223, %v5219
    %v5225 = vlaneseq
    %v5226 = vshrl.u32 %v5225, 7
    %v5227 = vsub.s32 %v4273, %v5226
    %v5228 = vrot.slane %v3762, %v5227
    %v5229 = vsel %vm4278, %v5228, %v5224
    %v5230 = vlaneseq
    %v5231 = vshrl.u32 %v5230, 7
    %v5232 = vsub.s32 %v4280, %v5231
    %v5233 = vrot.slane %v3765, %v5232
    %v5234 = vsel %vm4285, %v5233, %v5229
    %v5235 = vlaneseq
    %v5236 = vshrl.u32 %v5235, 7
    %v5237 = vsub.s32 %v3911, %v5236
    %v5238 = vrot.slane %v3768, %v5237
    %v5239 = vlaneseq
    %v5240 = vshrl.u32 %v5239, 7
    %v5241 = vsub.s32 %v4182, %v5240
    %v5242 = vrot.slane %v3771, %v5241
    %v5243 = vsel %vm4187, %v5242, %v5238
    %v5244 = vlaneseq
    %v5245 = vshrl.u32 %v5244, 7
    %v5246 = vsub.s32 %v4189, %v5245
    %v5247 = vrot.slane %v3774, %v5246
    %v5248 = vsel %vm4194, %v5247, %v5243
    %v5249 = vlaneseq
    %v5250 = vshrl.u32 %v5249, 7
    %v5251 = vsub.s32 %v4196, %v5250
    %v5252 = vrot.slane %v3777, %v5251
    %v5253 = vsel %vm4201, %v5252, %v5248
    %v5254 = vlaneseq
    %v5255 = vshrl.u32 %v5254, 7
    %v5256 = vsub.s32 %v4203, %v5255
    %v5257 = vrot.slane %v3780, %v5256
    %v5258 = vsel %vm4208, %v5257, %v5253
    %v5259 = vlaneseq
    %v5260 = vshrl.u32 %v5259, 7
    %v5261 = vsub.s32 %v4210, %v5260
    %v5262 = vrot.slane %v3783, %v5261
    %v5263 = vsel %vm4215, %v5262, %v5258
    %v5264 = vlaneseq
    %v5265 = vshrl.u32 %v5264, 7
    %v5266 = vsub.s32 %v4217, %v5265
    %v5267 = vrot.slane %v3786, %v5266
    %v5268 = vsel %vm4222, %v5267, %v5263
    %v5269 = vlaneseq
    %v5270 = vshrl.u32 %v5269, 7
    %v5271 = vsub.s32 %v4224, %v5270
    %v5272 = vrot.slane %v3789, %v5271
    %v5273 = vsel %vm4229, %v5272, %v5268
    %v5274 = vlaneseq
    %v5275 = vshrl.u32 %v5274, 7
    %v5276 = vsub.s32 %v4231, %v5275
    %v5277 = vrot.slane %v3792, %v5276
    %v5278 = vsel %vm4236, %v5277, %v5273
    %v5279 = vlaneseq
    %v5280 = vshrl.u32 %v5279, 7
    %v5281 = vsub.s32 %v4238, %v5280
    %v5282 = vrot.slane %v3795, %v5281
    %v5283 = vsel %vm4243, %v5282, %v5278
    %v5284 = vlaneseq
    %v5285 = vshrl.u32 %v5284, 7
    %v5286 = vsub.s32 %v4245, %v5285
    %v5287 = vrot.slane %v3798, %v5286
    %v5288 = vsel %vm4250, %v5287, %v5283
    %v5289 = vlaneseq
    %v5290 = vshrl.u32 %v5289, 7
    %v5291 = vsub.s32 %v4252, %v5290
    %v5292 = vrot.slane %v3801, %v5291
    %v5293 = vsel %vm4257, %v5292, %v5288
    %v5294 = vlaneseq
    %v5295 = vshrl.u32 %v5294, 7
    %v5296 = vsub.s32 %v4259, %v5295
    %v5297 = vrot.slane %v3804, %v5296
    %v5298 = vsel %vm4264, %v5297, %v5293
    %v5299 = vlaneseq
    %v5300 = vshrl.u32 %v5299, 7
    %v5301 = vsub.s32 %v4266, %v5300
    %v5302 = vrot.slane %v3807, %v5301
    %v5303 = vsel %vm4271, %v5302, %v5298
    %v5304 = vlaneseq
    %v5305 = vshrl.u32 %v5304, 7
    %v5306 = vsub.s32 %v4273, %v5305
    %v5307 = vrot.slane %v3810, %v5306
    %v5308 = vsel %vm4278, %v5307, %v5303
    %v5309 = vlaneseq
    %v5310 = vshrl.u32 %v5309, 7
    %v5311 = vsub.s32 %v4280, %v5310
    %v5312 = vrot.slane %v3813, %v5311
    %v5313 = vsel %vm4285, %v5312, %v5308
    %v5314 = vlaneseq
    %v5315 = vshrl.u32 %v5314, 7
    %v5316 = vsub.s32 %v3911, %v5315
    %v5317 = vrot.slane %v3816, %v5316
    %v5318 = vlaneseq
    %v5319 = vshrl.u32 %v5318, 7
    %v5320 = vsub.s32 %v4182, %v5319
    %v5321 = vrot.slane %v3819, %v5320
    %v5322 = vsel %vm4187, %v5321, %v5317
    %v5323 = vlaneseq
    %v5324 = vshrl.u32 %v5323, 7
    %v5325 = vsub.s32 %v4189, %v5324
    %v5326 = vrot.slane %v3822, %v5325
    %v5327 = vsel %vm4194, %v5326, %v5322
    %v5328 = vlaneseq
    %v5329 = vshrl.u32 %v5328, 7
    %v5330 = vsub.s32 %v4196, %v5329
    %v5331 = vrot.slane %v3825, %v5330
    %v5332 = vsel %vm4201, %v5331, %v5327
    %v5333 = vlaneseq
    %v5334 = vshrl.u32 %v5333, 7
    %v5335 = vsub.s32 %v4203, %v5334
    %v5336 = vrot.slane %v3828, %v5335
    %v5337 = vsel %vm4208, %v5336, %v5332
    %v5338 = vlaneseq
    %v5339 = vshrl.u32 %v5338, 7
    %v5340 = vsub.s32 %v4210, %v5339
    %v5341 = vrot.slane %v3831, %v5340
    %v5342 = vsel %vm4215, %v5341, %v5337
    %v5343 = vlaneseq
    %v5344 = vshrl.u32 %v5343, 7
    %v5345 = vsub.s32 %v4217, %v5344
    %v5346 = vrot.slane %v3834, %v5345
    %v5347 = vsel %vm4222, %v5346, %v5342
    %v5348 = vlaneseq
    %v5349 = vshrl.u32 %v5348, 7
    %v5350 = vsub.s32 %v4224, %v5349
    %v5351 = vrot.slane %v3837, %v5350
    %v5352 = vsel %vm4229, %v5351, %v5347
    %v5353 = vlaneseq
    %v5354 = vshrl.u32 %v5353, 7
    %v5355 = vsub.s32 %v4231, %v5354
    %v5356 = vrot.slane %v3840, %v5355
    %v5357 = vsel %vm4236, %v5356, %v5352
    %v5358 = vlaneseq
    %v5359 = vshrl.u32 %v5358, 7
    %v5360 = vsub.s32 %v4238, %v5359
    %v5361 = vrot.slane %v3843, %v5360
    %v5362 = vsel %vm4243, %v5361, %v5357
    %v5363 = vlaneseq
    %v5364 = vshrl.u32 %v5363, 7
    %v5365 = vsub.s32 %v4245, %v5364
    %v5366 = vrot.slane %v3846, %v5365
    %v5367 = vsel %vm4250, %v5366, %v5362
    %v5368 = vlaneseq
    %v5369 = vshrl.u32 %v5368, 7
    %v5370 = vsub.s32 %v4252, %v5369
    %v5371 = vrot.slane %v3849, %v5370
    %v5372 = vsel %vm4257, %v5371, %v5367
    %v5373 = vlaneseq
    %v5374 = vshrl.u32 %v5373, 7
    %v5375 = vsub.s32 %v4259, %v5374
    %v5376 = vrot.slane %v3852, %v5375
    %v5377 = vsel %vm4264, %v5376, %v5372
    %v5378 = vlaneseq
    %v5379 = vshrl.u32 %v5378, 7
    %v5380 = vsub.s32 %v4266, %v5379
    %v5381 = vrot.slane %v3855, %v5380
    %v5382 = vsel %vm4271, %v5381, %v5377
    %v5383 = vlaneseq
    %v5384 = vshrl.u32 %v5383, 7
    %v5385 = vsub.s32 %v4273, %v5384
    %v5386 = vrot.slane %v3858, %v5385
    %v5387 = vsel %vm4278, %v5386, %v5382
    %v5388 = vlaneseq
    %v5389 = vshrl.u32 %v5388, 7
    %v5390 = vsub.s32 %v4280, %v5389
    %v5391 = vrot.slane %v3861, %v5390
    %v5392 = vsel %vm4285, %v5391, %v5387
    %v5393 = vlaneseq
    %v5394 = vshrl.u32 %v5393, 7
    %v5395 = vsub.s32 %v3911, %v5394
    %v5396 = vrot.slane %v3864, %v5395
    %v5397 = vlaneseq
    %v5398 = vshrl.u32 %v5397, 7
    %v5399 = vsub.s32 %v4182, %v5398
    %v5400 = vrot.slane %v3867, %v5399
    %v5401 = vsel %vm4187, %v5400, %v5396
    %v5402 = vlaneseq
    %v5403 = vshrl.u32 %v5402, 7
    %v5404 = vsub.s32 %v4189, %v5403
    %v5405 = vrot.slane %v3870, %v5404
    %v5406 = vsel %vm4194, %v5405, %v5401
    %v5407 = vlaneseq
    %v5408 = vshrl.u32 %v5407, 7
    %v5409 = vsub.s32 %v4196, %v5408
    %v5410 = vrot.slane %v3873, %v5409
    %v5411 = vsel %vm4201, %v5410, %v5406
    %v5412 = vlaneseq
    %v5413 = vshrl.u32 %v5412, 7
    %v5414 = vsub.s32 %v4203, %v5413
    %v5415 = vrot.slane %v3876, %v5414
    %v5416 = vsel %vm4208, %v5415, %v5411
    %v5417 = vlaneseq
    %v5418 = vshrl.u32 %v5417, 7
    %v5419 = vsub.s32 %v4210, %v5418
    %v5420 = vrot.slane %v3879, %v5419
    %v5421 = vsel %vm4215, %v5420, %v5416
    %v5422 = vlaneseq
    %v5423 = vshrl.u32 %v5422, 7
    %v5424 = vsub.s32 %v4217, %v5423
    %v5425 = vrot.slane %v3882, %v5424
    %v5426 = vsel %vm4222, %v5425, %v5421
    %v5427 = vlaneseq
    %v5428 = vshrl.u32 %v5427, 7
    %v5429 = vsub.s32 %v4224, %v5428
    %v5430 = vrot.slane %v3885, %v5429
    %v5431 = vsel %vm4229, %v5430, %v5426
    %v5432 = vlaneseq
    %v5433 = vshrl.u32 %v5432, 7
    %v5434 = vsub.s32 %v4231, %v5433
    %v5435 = vrot.slane %v3888, %v5434
    %v5436 = vsel %vm4236, %v5435, %v5431
    %v5437 = vlaneseq
    %v5438 = vshrl.u32 %v5437, 7
    %v5439 = vsub.s32 %v4238, %v5438
    %v5440 = vrot.slane %v3891, %v5439
    %v5441 = vsel %vm4243, %v5440, %v5436
    %v5442 = vlaneseq
    %v5443 = vshrl.u32 %v5442, 7
    %v5444 = vsub.s32 %v4245, %v5443
    %v5445 = vrot.slane %v3894, %v5444
    %v5446 = vsel %vm4250, %v5445, %v5441
    %v5447 = vlaneseq
    %v5448 = vshrl.u32 %v5447, 7
    %v5449 = vsub.s32 %v4252, %v5448
    %v5450 = vrot.slane %v3897, %v5449
    %v5451 = vsel %vm4257, %v5450, %v5446
    %v5452 = vlaneseq
    %v5453 = vshrl.u32 %v5452, 7
    %v5454 = vsub.s32 %v4259, %v5453
    %v5455 = vrot.slane %v3900, %v5454
    %v5456 = vsel %vm4264, %v5455, %v5451
    %v5457 = vlaneseq
    %v5458 = vshrl.u32 %v5457, 7
    %v5459 = vsub.s32 %v4266, %v5458
    %v5460 = vrot.slane %v3903, %v5459
    %v5461 = vsel %vm4271, %v5460, %v5456
    %v5462 = vlaneseq
    %v5463 = vshrl.u32 %v5462, 7
    %v5464 = vsub.s32 %v4273, %v5463
    %v5465 = vrot.slane %v3906, %v5464
    %v5466 = vsel %vm4278, %v5465, %v5461
    %v5467 = vlaneseq
    %v5468 = vshrl.u32 %v5467, 7
    %v5469 = vsub.s32 %v4280, %v5468
    %v5470 = vrot.slane %v3909, %v5469
    %v5471 = vsel %vm4285, %v5470, %v5466
    %vm5472 = vcmask 1041409
    %v5473 = vsel %vm5472, %v4365, %v4286
    %vm5474 = vcmask 1042434
    %v5475 = vsel %vm5474, %v4444, %v5473
    %vm5476 = vcmask 1043459
    %v5477 = vsel %vm5476, %v4523, %v5475
    %vm5478 = vcmask 1044484
    %v5479 = vsel %vm5478, %v4602, %v5477
    %vm5480 = vcmask 1045509
    %v5481 = vsel %vm5480, %v4681, %v5479
    %vm5482 = vcmask 1046534
    %v5483 = vsel %vm5482, %v4760, %v5481
    %vm5484 = vcmask 1047559
    %v5485 = vsel %vm5484, %v4839, %v5483
    %v5486 = vsel %vm5472, %v4997, %v4918
    %v5487 = vsel %vm5474, %v5076, %v5486
    %v5488 = vsel %vm5476, %v5155, %v5487
    %v5489 = vsel %vm5478, %v5234, %v5488
    %v5490 = vsel %vm5480, %v5313, %v5489
    %v5491 = vsel %vm5482, %v5392, %v5490
    %v5492 = vsel %vm5484, %v5471, %v5491
    %v5495 = vsel %vm3920, %v5485, -1e+30
    %v5496 = vsel %vm3921, %v5492, -1e+30
    %5497 = vmax.xlane.f32.xlu0 %v5495
    %v5498 = vpop.xlane.xlu0 %5497
    %5499 = vmax.xlane.f32.xlu0 %v5496
    %v5500 = vpop.xlane.xlu0 %5499
    %v5501 = vsub.f32 %v5495, %v5498
    %v5502 = vsub.f32 %v5496, %v5500
    %v5503 = vmul.f32 %v5501, 1.442695
    %v5504 = vpow.pop %v5503
    %v5505 = vmul.f32 %v5502, 1.442695
    %v5506 = vpow.pop %v5505
    %5507 = vadd.xlane.f32.xlu0 %v5504
    %v5508 = vpop.xlane.xlu0 %5507
    %5509 = vadd.xlane.f32.xlu0 %v5506
    %v5510 = vpop.xlane.xlu0 %5509
    %v5511 = vrcp.pop %v5508
    %v5512 = vmul.f32 %v5504, %v5511
    %v5513 = vrcp.pop %v5510
    %v5514 = vmul.f32 %v5506, %v5513
    %5515 = vst [vmem:[#allocation6] sm:$0xff] %v5512
    %5516 = vst [vmem:[#allocation6 + $0x8] sm:$0xff] %v5514
    %v5517 = vlaneseq
    %v5518 = vshrl.u32 %v5517, 7
    %v5519 = vsub.s32 0, %v5518
    %v5520 = vrot.slane %v5512, %v5519
    %5522 = vbcast.lane.b32.xlu0 %v5520, 256
    %v5523 = vpop.permute.xlu0 %5522
    %s5525 = sor.u32 256, 8
    %5526 = vbcast.lane.b32.xlu0 %v5520, %s5525
    %v5527 = vpop.permute.xlu0 %5526
    %s5529 = sor.u32 256, 16
    %5530 = vbcast.lane.b32.xlu0 %v5520, %s5529
    %v5531 = vpop.permute.xlu0 %5530
    %s5533 = sor.u32 256, 24
    %5534 = vbcast.lane.b32.xlu0 %v5520, %s5533
    %v5535 = vpop.permute.xlu0 %5534
    %s5537 = sor.u32 256, 32
    %5538 = vbcast.lane.b32.xlu0 %v5520, %s5537
    %v5539 = vpop.permute.xlu0 %5538
    %s5541 = sor.u32 256, 40
    %5542 = vbcast.lane.b32.xlu0 %v5520, %s5541
    %v5543 = vpop.permute.xlu0 %5542
    %s5545 = sor.u32 256, 48
    %5546 = vbcast.lane.b32.xlu0 %v5520, %s5545
    %v5547 = vpop.permute.xlu0 %5546
    %s5549 = sor.u32 256, 56
    %5550 = vbcast.lane.b32.xlu0 %v5520, %s5549
    %v5551 = vpop.permute.xlu0 %5550
    %s5553 = sor.u32 256, 64
    %5554 = vbcast.lane.b32.xlu0 %v5520, %s5553
    %v5555 = vpop.permute.xlu0 %5554
    %s5557 = sor.u32 256, 72
    %5558 = vbcast.lane.b32.xlu0 %v5520, %s5557
    %v5559 = vpop.permute.xlu0 %5558
    %s5561 = sor.u32 256, 80
    %5562 = vbcast.lane.b32.xlu0 %v5520, %s5561
    %v5563 = vpop.permute.xlu0 %5562
    %s5565 = sor.u32 256, 88
    %5566 = vbcast.lane.b32.xlu0 %v5520, %s5565
    %v5567 = vpop.permute.xlu0 %5566
    %s5569 = sor.u32 256, 96
    %5570 = vbcast.lane.b32.xlu0 %v5520, %s5569
    %v5571 = vpop.permute.xlu0 %5570
    %s5573 = sor.u32 256, 104
    %5574 = vbcast.lane.b32.xlu0 %v5520, %s5573
    %v5575 = vpop.permute.xlu0 %5574
    %s5577 = sor.u32 256, 112
    %5578 = vbcast.lane.b32.xlu0 %v5520, %s5577
    %v5579 = vpop.permute.xlu0 %5578
    %s5581 = sor.u32 256, 120
    %5582 = vbcast.lane.b32.xlu0 %v5520, %s5581
    %v5583 = vpop.permute.xlu0 %5582
    %v5584 = vlaneseq
    %v5585 = vshrl.u32 %v5584, 7
    %v5586 = vsub.s32 1, %v5585
    %v5587 = vrot.slane %v5512, %v5586
    %5589 = vbcast.lane.b32.xlu0 %v5587, 256
    %v5590 = vpop.permute.xlu0 %5589
    %s5592 = sor.u32 256, 8
    %5593 = vbcast.lane.b32.xlu0 %v5587, %s5592
    %v5594 = vpop.permute.xlu0 %5593
    %s5596 = sor.u32 256, 16
    %5597 = vbcast.lane.b32.xlu0 %v5587, %s5596
    %v5598 = vpop.permute.xlu0 %5597
    %s5600 = sor.u32 256, 24
    %5601 = vbcast.lane.b32.xlu0 %v5587, %s5600
    %v5602 = vpop.permute.xlu0 %5601
    %s5604 = sor.u32 256, 32
    %5605 = vbcast.lane.b32.xlu0 %v5587, %s5604
    %v5606 = vpop.permute.xlu0 %5605
    %s5608 = sor.u32 256, 40
    %5609 = vbcast.lane.b32.xlu0 %v5587, %s5608
    %v5610 = vpop.permute.xlu0 %5609
    %s5612 = sor.u32 256, 48
    %5613 = vbcast.lane.b32.xlu0 %v5587, %s5612
    %v5614 = vpop.permute.xlu0 %5613
    %s5616 = sor.u32 256, 56
    %5617 = vbcast.lane.b32.xlu0 %v5587, %s5616
    %v5618 = vpop.permute.xlu0 %5617
    %s5620 = sor.u32 256, 64
    %5621 = vbcast.lane.b32.xlu0 %v5587, %s5620
    %v5622 = vpop.permute.xlu0 %5621
    %s5624 = sor.u32 256, 72
    %5625 = vbcast.lane.b32.xlu0 %v5587, %s5624
    %v5626 = vpop.permute.xlu0 %5625
    %s5628 = sor.u32 256, 80
    %5629 = vbcast.lane.b32.xlu0 %v5587, %s5628
    %v5630 = vpop.permute.xlu0 %5629
    %s5632 = sor.u32 256, 88
    %5633 = vbcast.lane.b32.xlu0 %v5587, %s5632
    %v5634 = vpop.permute.xlu0 %5633
    %s5636 = sor.u32 256, 96
    %5637 = vbcast.lane.b32.xlu0 %v5587, %s5636
    %v5638 = vpop.permute.xlu0 %5637
    %s5640 = sor.u32 256, 104
    %5641 = vbcast.lane.b32.xlu0 %v5587, %s5640
    %v5642 = vpop.permute.xlu0 %5641
    %s5644 = sor.u32 256, 112
    %5645 = vbcast.lane.b32.xlu0 %v5587, %s5644
    %v5646 = vpop.permute.xlu0 %5645
    %s5648 = sor.u32 256, 120
    %5649 = vbcast.lane.b32.xlu0 %v5587, %s5648
    %v5650 = vpop.permute.xlu0 %5649
    %v5651 = vlaneseq
    %v5652 = vshrl.u32 %v5651, 7
    %v5653 = vsub.s32 2, %v5652
    %v5654 = vrot.slane %v5512, %v5653
    %5656 = vbcast.lane.b32.xlu0 %v5654, 256
    %v5657 = vpop.permute.xlu0 %5656
    %s5659 = sor.u32 256, 8
    %5660 = vbcast.lane.b32.xlu0 %v5654, %s5659
    %v5661 = vpop.permute.xlu0 %5660
    %s5663 = sor.u32 256, 16
    %5664 = vbcast.lane.b32.xlu0 %v5654, %s5663
    %v5665 = vpop.permute.xlu0 %5664
    %s5667 = sor.u32 256, 24
    %5668 = vbcast.lane.b32.xlu0 %v5654, %s5667
    %v5669 = vpop.permute.xlu0 %5668
    %s5671 = sor.u32 256, 32
    %5672 = vbcast.lane.b32.xlu0 %v5654, %s5671
    %v5673 = vpop.permute.xlu0 %5672
    %s5675 = sor.u32 256, 40
    %5676 = vbcast.lane.b32.xlu0 %v5654, %s5675
    %v5677 = vpop.permute.xlu0 %5676
    %s5679 = sor.u32 256, 48
    %5680 = vbcast.lane.b32.xlu0 %v5654, %s5679
    %v5681 = vpop.permute.xlu0 %5680
    %s5683 = sor.u32 256, 56
    %5684 = vbcast.lane.b32.xlu0 %v5654, %s5683
    %v5685 = vpop.permute.xlu0 %5684
    %s5687 = sor.u32 256, 64
    %5688 = vbcast.lane.b32.xlu0 %v5654, %s5687
    %v5689 = vpop.permute.xlu0 %5688
    %s5691 = sor.u32 256, 72
    %5692 = vbcast.lane.b32.xlu0 %v5654, %s5691
    %v5693 = vpop.permute.xlu0 %5692
    %s5695 = sor.u32 256, 80
    %5696 = vbcast.lane.b32.xlu0 %v5654, %s5695
    %v5697 = vpop.permute.xlu0 %5696
    %s5699 = sor.u32 256, 88
    %5700 = vbcast.lane.b32.xlu0 %v5654, %s5699
    %v5701 = vpop.permute.xlu0 %5700
    %s5703 = sor.u32 256, 96
    %5704 = vbcast.lane.b32.xlu0 %v5654, %s5703
    %v5705 = vpop.permute.xlu0 %5704
    %s5707 = sor.u32 256, 104
    %5708 = vbcast.lane.b32.xlu0 %v5654, %s5707
    %v5709 = vpop.permute.xlu0 %5708
    %s5711 = sor.u32 256, 112
    %5712 = vbcast.lane.b32.xlu0 %v5654, %s5711
    %v5713 = vpop.permute.xlu0 %5712
    %s5715 = sor.u32 256, 120
    %5716 = vbcast.lane.b32.xlu0 %v5654, %s5715
    %v5717 = vpop.permute.xlu0 %5716
    %v5718 = vlaneseq
    %v5719 = vshrl.u32 %v5718, 7
    %v5720 = vsub.s32 3, %v5719
    %v5721 = vrot.slane %v5512, %v5720
    %5723 = vbcast.lane.b32.xlu0 %v5721, 256
    %v5724 = vpop.permute.xlu0 %5723
    %s5726 = sor.u32 256, 8
    %5727 = vbcast.lane.b32.xlu0 %v5721, %s5726
    %v5728 = vpop.permute.xlu0 %5727
    %s5730 = sor.u32 256, 16
    %5731 = vbcast.lane.b32.xlu0 %v5721, %s5730
    %v5732 = vpop.permute.xlu0 %5731
    %s5734 = sor.u32 256, 24
    %5735 = vbcast.lane.b32.xlu0 %v5721, %s5734
    %v5736 = vpop.permute.xlu0 %5735
    %s5738 = sor.u32 256, 32
    %5739 = vbcast.lane.b32.xlu0 %v5721, %s5738
    %v5740 = vpop.permute.xlu0 %5739
    %s5742 = sor.u32 256, 40
    %5743 = vbcast.lane.b32.xlu0 %v5721, %s5742
    %v5744 = vpop.permute.xlu0 %5743
    %s5746 = sor.u32 256, 48
    %5747 = vbcast.lane.b32.xlu0 %v5721, %s5746
    %v5748 = vpop.permute.xlu0 %5747
    %s5750 = sor.u32 256, 56
    %5751 = vbcast.lane.b32.xlu0 %v5721, %s5750
    %v5752 = vpop.permute.xlu0 %5751
    %s5754 = sor.u32 256, 64
    %5755 = vbcast.lane.b32.xlu0 %v5721, %s5754
    %v5756 = vpop.permute.xlu0 %5755
    %s5758 = sor.u32 256, 72
    %5759 = vbcast.lane.b32.xlu0 %v5721, %s5758
    %v5760 = vpop.permute.xlu0 %5759
    %s5762 = sor.u32 256, 80
    %5763 = vbcast.lane.b32.xlu0 %v5721, %s5762
    %v5764 = vpop.permute.xlu0 %5763
    %s5766 = sor.u32 256, 88
    %5767 = vbcast.lane.b32.xlu0 %v5721, %s5766
    %v5768 = vpop.permute.xlu0 %5767
    %s5770 = sor.u32 256, 96
    %5771 = vbcast.lane.b32.xlu0 %v5721, %s5770
    %v5772 = vpop.permute.xlu0 %5771
    %s5774 = sor.u32 256, 104
    %5775 = vbcast.lane.b32.xlu0 %v5721, %s5774
    %v5776 = vpop.permute.xlu0 %5775
    %s5778 = sor.u32 256, 112
    %5779 = vbcast.lane.b32.xlu0 %v5721, %s5778
    %v5780 = vpop.permute.xlu0 %5779
    %s5782 = sor.u32 256, 120
    %5783 = vbcast.lane.b32.xlu0 %v5721, %s5782
    %v5784 = vpop.permute.xlu0 %5783
    %v5785 = vlaneseq
    %v5786 = vshrl.u32 %v5785, 7
    %v5787 = vsub.s32 4, %v5786
    %v5788 = vrot.slane %v5512, %v5787
    %5790 = vbcast.lane.b32.xlu0 %v5788, 256
    %v5791 = vpop.permute.xlu0 %5790
    %s5793 = sor.u32 256, 8
    %5794 = vbcast.lane.b32.xlu0 %v5788, %s5793
    %v5795 = vpop.permute.xlu0 %5794
    %s5797 = sor.u32 256, 16
    %5798 = vbcast.lane.b32.xlu0 %v5788, %s5797
    %v5799 = vpop.permute.xlu0 %5798
    %s5801 = sor.u32 256, 24
    %5802 = vbcast.lane.b32.xlu0 %v5788, %s5801
    %v5803 = vpop.permute.xlu0 %5802
    %s5805 = sor.u32 256, 32
    %5806 = vbcast.lane.b32.xlu0 %v5788, %s5805
    %v5807 = vpop.permute.xlu0 %5806
    %s5809 = sor.u32 256, 40
    %5810 = vbcast.lane.b32.xlu0 %v5788, %s5809
    %v5811 = vpop.permute.xlu0 %5810
    %s5813 = sor.u32 256, 48
    %5814 = vbcast.lane.b32.xlu0 %v5788, %s5813
    %v5815 = vpop.permute.xlu0 %5814
    %s5817 = sor.u32 256, 56
    %5818 = vbcast.lane.b32.xlu0 %v5788, %s5817
    %v5819 = vpop.permute.xlu0 %5818
    %s5821 = sor.u32 256, 64
    %5822 = vbcast.lane.b32.xlu0 %v5788, %s5821
    %v5823 = vpop.permute.xlu0 %5822
    %s5825 = sor.u32 256, 72
    %5826 = vbcast.lane.b32.xlu0 %v5788, %s5825
    %v5827 = vpop.permute.xlu0 %5826
    %s5829 = sor.u32 256, 80
    %5830 = vbcast.lane.b32.xlu0 %v5788, %s5829
    %v5831 = vpop.permute.xlu0 %5830
    %s5833 = sor.u32 256, 88
    %5834 = vbcast.lane.b32.xlu0 %v5788, %s5833
    %v5835 = vpop.permute.xlu0 %5834
    %s5837 = sor.u32 256, 96
    %5838 = vbcast.lane.b32.xlu0 %v5788, %s5837
    %v5839 = vpop.permute.xlu0 %5838
    %s5841 = sor.u32 256, 104
    %5842 = vbcast.lane.b32.xlu0 %v5788, %s5841
    %v5843 = vpop.permute.xlu0 %5842
    %s5845 = sor.u32 256, 112
    %5846 = vbcast.lane.b32.xlu0 %v5788, %s5845
    %v5847 = vpop.permute.xlu0 %5846
    %s5849 = sor.u32 256, 120
    %5850 = vbcast.lane.b32.xlu0 %v5788, %s5849
    %v5851 = vpop.permute.xlu0 %5850
    %v5852 = vlaneseq
    %v5853 = vshrl.u32 %v5852, 7
    %v5854 = vsub.s32 5, %v5853
    %v5855 = vrot.slane %v5512, %v5854
    %5857 = vbcast.lane.b32.xlu0 %v5855, 256
    %v5858 = vpop.permute.xlu0 %5857
    %s5860 = sor.u32 256, 8
    %5861 = vbcast.lane.b32.xlu0 %v5855, %s5860
    %v5862 = vpop.permute.xlu0 %5861
    %s5864 = sor.u32 256, 16
    %5865 = vbcast.lane.b32.xlu0 %v5855, %s5864
    %v5866 = vpop.permute.xlu0 %5865
    %s5868 = sor.u32 256, 24
    %5869 = vbcast.lane.b32.xlu0 %v5855, %s5868
    %v5870 = vpop.permute.xlu0 %5869
    %s5872 = sor.u32 256, 32
    %5873 = vbcast.lane.b32.xlu0 %v5855, %s5872
    %v5874 = vpop.permute.xlu0 %5873
    %s5876 = sor.u32 256, 40
    %5877 = vbcast.lane.b32.xlu0 %v5855, %s5876
    %v5878 = vpop.permute.xlu0 %5877
    %s5880 = sor.u32 256, 48
    %5881 = vbcast.lane.b32.xlu0 %v5855, %s5880
    %v5882 = vpop.permute.xlu0 %5881
    %s5884 = sor.u32 256, 56
    %5885 = vbcast.lane.b32.xlu0 %v5855, %s5884
    %v5886 = vpop.permute.xlu0 %5885
    %s5888 = sor.u32 256, 64
    %5889 = vbcast.lane.b32.xlu0 %v5855, %s5888
    %v5890 = vpop.permute.xlu0 %5889
    %s5892 = sor.u32 256, 72
    %5893 = vbcast.lane.b32.xlu0 %v5855, %s5892
    %v5894 = vpop.permute.xlu0 %5893
    %s5896 = sor.u32 256, 80
    %5897 = vbcast.lane.b32.xlu0 %v5855, %s5896
    %v5898 = vpop.permute.xlu0 %5897
    %s5900 = sor.u32 256, 88
    %5901 = vbcast.lane.b32.xlu0 %v5855, %s5900
    %v5902 = vpop.permute.xlu0 %5901
    %s5904 = sor.u32 256, 96
    %5905 = vbcast.lane.b32.xlu0 %v5855, %s5904
    %v5906 = vpop.permute.xlu0 %5905
    %s5908 = sor.u32 256, 104
    %5909 = vbcast.lane.b32.xlu0 %v5855, %s5908
    %v5910 = vpop.permute.xlu0 %5909
    %s5912 = sor.u32 256, 112
    %5913 = vbcast.lane.b32.xlu0 %v5855, %s5912
    %v5914 = vpop.permute.xlu0 %5913
    %s5916 = sor.u32 256, 120
    %5917 = vbcast.lane.b32.xlu0 %v5855, %s5916
    %v5918 = vpop.permute.xlu0 %5917
    %v5919 = vlaneseq
    %v5920 = vshrl.u32 %v5919, 7
    %v5921 = vsub.s32 6, %v5920
    %v5922 = vrot.slane %v5512, %v5921
    %5924 = vbcast.lane.b32.xlu0 %v5922, 256
    %v5925 = vpop.permute.xlu0 %5924
    %s5927 = sor.u32 256, 8
    %5928 = vbcast.lane.b32.xlu0 %v5922, %s5927
    %v5929 = vpop.permute.xlu0 %5928
    %s5931 = sor.u32 256, 16
    %5932 = vbcast.lane.b32.xlu0 %v5922, %s5931
    %v5933 = vpop.permute.xlu0 %5932
    %s5935 = sor.u32 256, 24
    %5936 = vbcast.lane.b32.xlu0 %v5922, %s5935
    %v5937 = vpop.permute.xlu0 %5936
    %s5939 = sor.u32 256, 32
    %5940 = vbcast.lane.b32.xlu0 %v5922, %s5939
    %v5941 = vpop.permute.xlu0 %5940
    %s5943 = sor.u32 256, 40
    %5944 = vbcast.lane.b32.xlu0 %v5922, %s5943
    %v5945 = vpop.permute.xlu0 %5944
    %s5947 = sor.u32 256, 48
    %5948 = vbcast.lane.b32.xlu0 %v5922, %s5947
    %v5949 = vpop.permute.xlu0 %5948
    %s5951 = sor.u32 256, 56
    %5952 = vbcast.lane.b32.xlu0 %v5922, %s5951
    %v5953 = vpop.permute.xlu0 %5952
    %s5955 = sor.u32 256, 64
    %5956 = vbcast.lane.b32.xlu0 %v5922, %s5955
    %v5957 = vpop.permute.xlu0 %5956
    %s5959 = sor.u32 256, 72
    %5960 = vbcast.lane.b32.xlu0 %v5922, %s5959
    %v5961 = vpop.permute.xlu0 %5960
    %s5963 = sor.u32 256, 80
    %5964 = vbcast.lane.b32.xlu0 %v5922, %s5963
    %v5965 = vpop.permute.xlu0 %5964
    %s5967 = sor.u32 256, 88
    %5968 = vbcast.lane.b32.xlu0 %v5922, %s5967
    %v5969 = vpop.permute.xlu0 %5968
    %s5971 = sor.u32 256, 96
    %5972 = vbcast.lane.b32.xlu0 %v5922, %s5971
    %v5973 = vpop.permute.xlu0 %5972
    %s5975 = sor.u32 256, 104
    %5976 = vbcast.lane.b32.xlu0 %v5922, %s5975
    %v5977 = vpop.permute.xlu0 %5976
    %s5979 = sor.u32 256, 112
    %5980 = vbcast.lane.b32.xlu0 %v5922, %s5979
    %v5981 = vpop.permute.xlu0 %5980
    %s5983 = sor.u32 256, 120
    %5984 = vbcast.lane.b32.xlu0 %v5922, %s5983
    %v5985 = vpop.permute.xlu0 %5984
    %v5986 = vlaneseq
    %v5987 = vshrl.u32 %v5986, 7
    %v5988 = vsub.s32 7, %v5987
    %v5989 = vrot.slane %v5512, %v5988
    %5991 = vbcast.lane.b32.xlu0 %v5989, 256
    %v5992 = vpop.permute.xlu0 %5991
    %s5994 = sor.u32 256, 8
    %5995 = vbcast.lane.b32.xlu0 %v5989, %s5994
    %v5996 = vpop.permute.xlu0 %5995
    %s5998 = sor.u32 256, 16
    %5999 = vbcast.lane.b32.xlu0 %v5989, %s5998
    %v6000 = vpop.permute.xlu0 %5999
    %s6002 = sor.u32 256, 24
    %6003 = vbcast.lane.b32.xlu0 %v5989, %s6002
    %v6004 = vpop.permute.xlu0 %6003
    %s6006 = sor.u32 256, 32
    %6007 = vbcast.lane.b32.xlu0 %v5989, %s6006
    %v6008 = vpop.permute.xlu0 %6007
    %s6010 = sor.u32 256, 40
    %6011 = vbcast.lane.b32.xlu0 %v5989, %s6010
    %v6012 = vpop.permute.xlu0 %6011
    %s6014 = sor.u32 256, 48
    %6015 = vbcast.lane.b32.xlu0 %v5989, %s6014
    %v6016 = vpop.permute.xlu0 %6015
    %s6018 = sor.u32 256, 56
    %6019 = vbcast.lane.b32.xlu0 %v5989, %s6018
    %v6020 = vpop.permute.xlu0 %6019
    %s6022 = sor.u32 256, 64
    %6023 = vbcast.lane.b32.xlu0 %v5989, %s6022
    %v6024 = vpop.permute.xlu0 %6023
    %s6026 = sor.u32 256, 72
    %6027 = vbcast.lane.b32.xlu0 %v5989, %s6026
    %v6028 = vpop.permute.xlu0 %6027
    %s6030 = sor.u32 256, 80
    %6031 = vbcast.lane.b32.xlu0 %v5989, %s6030
    %v6032 = vpop.permute.xlu0 %6031
    %s6034 = sor.u32 256, 88
    %6035 = vbcast.lane.b32.xlu0 %v5989, %s6034
    %v6036 = vpop.permute.xlu0 %6035
    %s6038 = sor.u32 256, 96
    %6039 = vbcast.lane.b32.xlu0 %v5989, %s6038
    %v6040 = vpop.permute.xlu0 %6039
    %s6042 = sor.u32 256, 104
    %6043 = vbcast.lane.b32.xlu0 %v5989, %s6042
    %v6044 = vpop.permute.xlu0 %6043
    %s6046 = sor.u32 256, 112
    %6047 = vbcast.lane.b32.xlu0 %v5989, %s6046
    %v6048 = vpop.permute.xlu0 %6047
    %s6050 = sor.u32 256, 120
    %6051 = vbcast.lane.b32.xlu0 %v5989, %s6050
    %v6052 = vpop.permute.xlu0 %6051
    %v6053 = vlaneseq
    %v6054 = vshrl.u32 %v6053, 7
    %v6055 = vsub.s32 0, %v6054
    %v6056 = vrot.slane %v5514, %v6055
    %6058 = vbcast.lane.b32.xlu0 %v6056, 256
    %v6059 = vpop.permute.xlu0 %6058
    %s6061 = sor.u32 256, 8
    %6062 = vbcast.lane.b32.xlu0 %v6056, %s6061
    %v6063 = vpop.permute.xlu0 %6062
    %s6065 = sor.u32 256, 16
    %6066 = vbcast.lane.b32.xlu0 %v6056, %s6065
    %v6067 = vpop.permute.xlu0 %6066
    %s6069 = sor.u32 256, 24
    %6070 = vbcast.lane.b32.xlu0 %v6056, %s6069
    %v6071 = vpop.permute.xlu0 %6070
    %s6073 = sor.u32 256, 32
    %6074 = vbcast.lane.b32.xlu0 %v6056, %s6073
    %v6075 = vpop.permute.xlu0 %6074
    %s6077 = sor.u32 256, 40
    %6078 = vbcast.lane.b32.xlu0 %v6056, %s6077
    %v6079 = vpop.permute.xlu0 %6078
    %s6081 = sor.u32 256, 48
    %6082 = vbcast.lane.b32.xlu0 %v6056, %s6081
    %v6083 = vpop.permute.xlu0 %6082
    %s6085 = sor.u32 256, 56
    %6086 = vbcast.lane.b32.xlu0 %v6056, %s6085
    %v6087 = vpop.permute.xlu0 %6086
    %s6089 = sor.u32 256, 64
    %6090 = vbcast.lane.b32.xlu0 %v6056, %s6089
    %v6091 = vpop.permute.xlu0 %6090
    %s6093 = sor.u32 256, 72
    %6094 = vbcast.lane.b32.xlu0 %v6056, %s6093
    %v6095 = vpop.permute.xlu0 %6094
    %s6097 = sor.u32 256, 80
    %6098 = vbcast.lane.b32.xlu0 %v6056, %s6097
    %v6099 = vpop.permute.xlu0 %6098
    %s6101 = sor.u32 256, 88
    %6102 = vbcast.lane.b32.xlu0 %v6056, %s6101
    %v6103 = vpop.permute.xlu0 %6102
    %s6105 = sor.u32 256, 96
    %6106 = vbcast.lane.b32.xlu0 %v6056, %s6105
    %v6107 = vpop.permute.xlu0 %6106
    %s6109 = sor.u32 256, 104
    %6110 = vbcast.lane.b32.xlu0 %v6056, %s6109
    %v6111 = vpop.permute.xlu0 %6110
    %s6113 = sor.u32 256, 112
    %6114 = vbcast.lane.b32.xlu0 %v6056, %s6113
    %v6115 = vpop.permute.xlu0 %6114
    %s6117 = sor.u32 256, 120
    %6118 = vbcast.lane.b32.xlu0 %v6056, %s6117
    %v6119 = vpop.permute.xlu0 %6118
    %v6120 = vlaneseq
    %v6121 = vshrl.u32 %v6120, 7
    %v6122 = vsub.s32 1, %v6121
    %v6123 = vrot.slane %v5514, %v6122
    %6125 = vbcast.lane.b32.xlu0 %v6123, 256
    %v6126 = vpop.permute.xlu0 %6125
    %s6128 = sor.u32 256, 8
    %6129 = vbcast.lane.b32.xlu0 %v6123, %s6128
    %v6130 = vpop.permute.xlu0 %6129
    %s6132 = sor.u32 256, 16
    %6133 = vbcast.lane.b32.xlu0 %v6123, %s6132
    %v6134 = vpop.permute.xlu0 %6133
    %s6136 = sor.u32 256, 24
    %6137 = vbcast.lane.b32.xlu0 %v6123, %s6136
    %v6138 = vpop.permute.xlu0 %6137
    %s6140 = sor.u32 256, 32
    %6141 = vbcast.lane.b32.xlu0 %v6123, %s6140
    %v6142 = vpop.permute.xlu0 %6141
    %s6144 = sor.u32 256, 40
    %6145 = vbcast.lane.b32.xlu0 %v6123, %s6144
    %v6146 = vpop.permute.xlu0 %6145
    %s6148 = sor.u32 256, 48
    %6149 = vbcast.lane.b32.xlu0 %v6123, %s6148
    %v6150 = vpop.permute.xlu0 %6149
    %s6152 = sor.u32 256, 56
    %6153 = vbcast.lane.b32.xlu0 %v6123, %s6152
    %v6154 = vpop.permute.xlu0 %6153
    %s6156 = sor.u32 256, 64
    %6157 = vbcast.lane.b32.xlu0 %v6123, %s6156
    %v6158 = vpop.permute.xlu0 %6157
    %s6160 = sor.u32 256, 72
    %6161 = vbcast.lane.b32.xlu0 %v6123, %s6160
    %v6162 = vpop.permute.xlu0 %6161
    %s6164 = sor.u32 256, 80
    %6165 = vbcast.lane.b32.xlu0 %v6123, %s6164
    %v6166 = vpop.permute.xlu0 %6165
    %s6168 = sor.u32 256, 88
    %6169 = vbcast.lane.b32.xlu0 %v6123, %s6168
    %v6170 = vpop.permute.xlu0 %6169
    %s6172 = sor.u32 256, 96
    %6173 = vbcast.lane.b32.xlu0 %v6123, %s6172
    %v6174 = vpop.permute.xlu0 %6173
    %s6176 = sor.u32 256, 104
    %6177 = vbcast.lane.b32.xlu0 %v6123, %s6176
    %v6178 = vpop.permute.xlu0 %6177
    %s6180 = sor.u32 256, 112
    %6181 = vbcast.lane.b32.xlu0 %v6123, %s6180
    %v6182 = vpop.permute.xlu0 %6181
    %s6184 = sor.u32 256, 120
    %6185 = vbcast.lane.b32.xlu0 %v6123, %s6184
    %v6186 = vpop.permute.xlu0 %6185
    %v6187 = vlaneseq
    %v6188 = vshrl.u32 %v6187, 7
    %v6189 = vsub.s32 2, %v6188
    %v6190 = vrot.slane %v5514, %v6189
    %6192 = vbcast.lane.b32.xlu0 %v6190, 256
    %v6193 = vpop.permute.xlu0 %6192
    %s6195 = sor.u32 256, 8
    %6196 = vbcast.lane.b32.xlu0 %v6190, %s6195
    %v6197 = vpop.permute.xlu0 %6196
    %s6199 = sor.u32 256, 16
    %6200 = vbcast.lane.b32.xlu0 %v6190, %s6199
    %v6201 = vpop.permute.xlu0 %6200
    %s6203 = sor.u32 256, 24
    %6204 = vbcast.lane.b32.xlu0 %v6190, %s6203
    %v6205 = vpop.permute.xlu0 %6204
    %s6207 = sor.u32 256, 32
    %6208 = vbcast.lane.b32.xlu0 %v6190, %s6207
    %v6209 = vpop.permute.xlu0 %6208
    %s6211 = sor.u32 256, 40
    %6212 = vbcast.lane.b32.xlu0 %v6190, %s6211
    %v6213 = vpop.permute.xlu0 %6212
    %s6215 = sor.u32 256, 48
    %6216 = vbcast.lane.b32.xlu0 %v6190, %s6215
    %v6217 = vpop.permute.xlu0 %6216
    %s6219 = sor.u32 256, 56
    %6220 = vbcast.lane.b32.xlu0 %v6190, %s6219
    %v6221 = vpop.permute.xlu0 %6220
    %s6223 = sor.u32 256, 64
    %6224 = vbcast.lane.b32.xlu0 %v6190, %s6223
    %v6225 = vpop.permute.xlu0 %6224
    %s6227 = sor.u32 256, 72
    %6228 = vbcast.lane.b32.xlu0 %v6190, %s6227
    %v6229 = vpop.permute.xlu0 %6228
    %s6231 = sor.u32 256, 80
    %6232 = vbcast.lane.b32.xlu0 %v6190, %s6231
    %v6233 = vpop.permute.xlu0 %6232
    %s6235 = sor.u32 256, 88
    %6236 = vbcast.lane.b32.xlu0 %v6190, %s6235
    %v6237 = vpop.permute.xlu0 %6236
    %s6239 = sor.u32 256, 96
    %6240 = vbcast.lane.b32.xlu0 %v6190, %s6239
    %v6241 = vpop.permute.xlu0 %6240
    %s6243 = sor.u32 256, 104
    %6244 = vbcast.lane.b32.xlu0 %v6190, %s6243
    %v6245 = vpop.permute.xlu0 %6244
    %s6247 = sor.u32 256, 112
    %6248 = vbcast.lane.b32.xlu0 %v6190, %s6247
    %v6249 = vpop.permute.xlu0 %6248
    %s6251 = sor.u32 256, 120
    %6252 = vbcast.lane.b32.xlu0 %v6190, %s6251
    %v6253 = vpop.permute.xlu0 %6252
    %v6254 = vlaneseq
    %v6255 = vshrl.u32 %v6254, 7
    %v6256 = vsub.s32 3, %v6255
    %v6257 = vrot.slane %v5514, %v6256
    %6259 = vbcast.lane.b32.xlu0 %v6257, 256
    %v6260 = vpop.permute.xlu0 %6259
    %s6262 = sor.u32 256, 8
    %6263 = vbcast.lane.b32.xlu0 %v6257, %s6262
    %v6264 = vpop.permute.xlu0 %6263
    %s6266 = sor.u32 256, 16
    %6267 = vbcast.lane.b32.xlu0 %v6257, %s6266
    %v6268 = vpop.permute.xlu0 %6267
    %s6270 = sor.u32 256, 24
    %6271 = vbcast.lane.b32.xlu0 %v6257, %s6270
    %v6272 = vpop.permute.xlu0 %6271
    %s6274 = sor.u32 256, 32
    %6275 = vbcast.lane.b32.xlu0 %v6257, %s6274
    %v6276 = vpop.permute.xlu0 %6275
    %s6278 = sor.u32 256, 40
    %6279 = vbcast.lane.b32.xlu0 %v6257, %s6278
    %v6280 = vpop.permute.xlu0 %6279
    %s6282 = sor.u32 256, 48
    %6283 = vbcast.lane.b32.xlu0 %v6257, %s6282
    %v6284 = vpop.permute.xlu0 %6283
    %s6286 = sor.u32 256, 56
    %6287 = vbcast.lane.b32.xlu0 %v6257, %s6286
    %v6288 = vpop.permute.xlu0 %6287
    %s6290 = sor.u32 256, 64
    %6291 = vbcast.lane.b32.xlu0 %v6257, %s6290
    %v6292 = vpop.permute.xlu0 %6291
    %s6294 = sor.u32 256, 72
    %6295 = vbcast.lane.b32.xlu0 %v6257, %s6294
    %v6296 = vpop.permute.xlu0 %6295
    %s6298 = sor.u32 256, 80
    %6299 = vbcast.lane.b32.xlu0 %v6257, %s6298
    %v6300 = vpop.permute.xlu0 %6299
    %s6302 = sor.u32 256, 88
    %6303 = vbcast.lane.b32.xlu0 %v6257, %s6302
    %v6304 = vpop.permute.xlu0 %6303
    %s6306 = sor.u32 256, 96
    %6307 = vbcast.lane.b32.xlu0 %v6257, %s6306
    %v6308 = vpop.permute.xlu0 %6307
    %s6310 = sor.u32 256, 104
    %6311 = vbcast.lane.b32.xlu0 %v6257, %s6310
    %v6312 = vpop.permute.xlu0 %6311
    %s6314 = sor.u32 256, 112
    %6315 = vbcast.lane.b32.xlu0 %v6257, %s6314
    %v6316 = vpop.permute.xlu0 %6315
    %s6318 = sor.u32 256, 120
    %6319 = vbcast.lane.b32.xlu0 %v6257, %s6318
    %v6320 = vpop.permute.xlu0 %6319
    %v6321 = vlaneseq
    %v6322 = vshrl.u32 %v6321, 7
    %v6323 = vsub.s32 4, %v6322
    %v6324 = vrot.slane %v5514, %v6323
    %6326 = vbcast.lane.b32.xlu0 %v6324, 256
    %v6327 = vpop.permute.xlu0 %6326
    %s6329 = sor.u32 256, 8
    %6330 = vbcast.lane.b32.xlu0 %v6324, %s6329
    %v6331 = vpop.permute.xlu0 %6330
    %s6333 = sor.u32 256, 16
    %6334 = vbcast.lane.b32.xlu0 %v6324, %s6333
    %v6335 = vpop.permute.xlu0 %6334
    %s6337 = sor.u32 256, 24
    %6338 = vbcast.lane.b32.xlu0 %v6324, %s6337
    %v6339 = vpop.permute.xlu0 %6338
    %s6341 = sor.u32 256, 32
    %6342 = vbcast.lane.b32.xlu0 %v6324, %s6341
    %v6343 = vpop.permute.xlu0 %6342
    %s6345 = sor.u32 256, 40
    %6346 = vbcast.lane.b32.xlu0 %v6324, %s6345
    %v6347 = vpop.permute.xlu0 %6346
    %s6349 = sor.u32 256, 48
    %6350 = vbcast.lane.b32.xlu0 %v6324, %s6349
    %v6351 = vpop.permute.xlu0 %6350
    %s6353 = sor.u32 256, 56
    %6354 = vbcast.lane.b32.xlu0 %v6324, %s6353
    %v6355 = vpop.permute.xlu0 %6354
    %s6357 = sor.u32 256, 64
    %6358 = vbcast.lane.b32.xlu0 %v6324, %s6357
    %v6359 = vpop.permute.xlu0 %6358
    %s6361 = sor.u32 256, 72
    %6362 = vbcast.lane.b32.xlu0 %v6324, %s6361
    %v6363 = vpop.permute.xlu0 %6362
    %s6365 = sor.u32 256, 80
    %6366 = vbcast.lane.b32.xlu0 %v6324, %s6365
    %v6367 = vpop.permute.xlu0 %6366
    %s6369 = sor.u32 256, 88
    %6370 = vbcast.lane.b32.xlu0 %v6324, %s6369
    %v6371 = vpop.permute.xlu0 %6370
    %s6373 = sor.u32 256, 96
    %6374 = vbcast.lane.b32.xlu0 %v6324, %s6373
    %v6375 = vpop.permute.xlu0 %6374
    %s6377 = sor.u32 256, 104
    %6378 = vbcast.lane.b32.xlu0 %v6324, %s6377
    %v6379 = vpop.permute.xlu0 %6378
    %s6381 = sor.u32 256, 112
    %6382 = vbcast.lane.b32.xlu0 %v6324, %s6381
    %v6383 = vpop.permute.xlu0 %6382
    %s6385 = sor.u32 256, 120
    %6386 = vbcast.lane.b32.xlu0 %v6324, %s6385
    %v6387 = vpop.permute.xlu0 %6386
    %v6388 = vlaneseq
    %v6389 = vshrl.u32 %v6388, 7
    %v6390 = vsub.s32 5, %v6389
    %v6391 = vrot.slane %v5514, %v6390
    %6393 = vbcast.lane.b32.xlu0 %v6391, 256
    %v6394 = vpop.permute.xlu0 %6393
    %s6396 = sor.u32 256, 8
    %6397 = vbcast.lane.b32.xlu0 %v6391, %s6396
    %v6398 = vpop.permute.xlu0 %6397
    %s6400 = sor.u32 256, 16
    %6401 = vbcast.lane.b32.xlu0 %v6391, %s6400
    %v6402 = vpop.permute.xlu0 %6401
    %s6404 = sor.u32 256, 24
    %6405 = vbcast.lane.b32.xlu0 %v6391, %s6404
    %v6406 = vpop.permute.xlu0 %6405
    %s6408 = sor.u32 256, 32
    %6409 = vbcast.lane.b32.xlu0 %v6391, %s6408
    %v6410 = vpop.permute.xlu0 %6409
    %s6412 = sor.u32 256, 40
    %6413 = vbcast.lane.b32.xlu0 %v6391, %s6412
    %v6414 = vpop.permute.xlu0 %6413
    %s6416 = sor.u32 256, 48
    %6417 = vbcast.lane.b32.xlu0 %v6391, %s6416
    %v6418 = vpop.permute.xlu0 %6417
    %s6420 = sor.u32 256, 56
    %6421 = vbcast.lane.b32.xlu0 %v6391, %s6420
    %v6422 = vpop.permute.xlu0 %6421
    %s6424 = sor.u32 256, 64
    %6425 = vbcast.lane.b32.xlu0 %v6391, %s6424
    %v6426 = vpop.permute.xlu0 %6425
    %s6428 = sor.u32 256, 72
    %6429 = vbcast.lane.b32.xlu0 %v6391, %s6428
    %v6430 = vpop.permute.xlu0 %6429
    %s6432 = sor.u32 256, 80
    %6433 = vbcast.lane.b32.xlu0 %v6391, %s6432
    %v6434 = vpop.permute.xlu0 %6433
    %s6436 = sor.u32 256, 88
    %6437 = vbcast.lane.b32.xlu0 %v6391, %s6436
    %v6438 = vpop.permute.xlu0 %6437
    %s6440 = sor.u32 256, 96
    %6441 = vbcast.lane.b32.xlu0 %v6391, %s6440
    %v6442 = vpop.permute.xlu0 %6441
    %s6444 = sor.u32 256, 104
    %6445 = vbcast.lane.b32.xlu0 %v6391, %s6444
    %v6446 = vpop.permute.xlu0 %6445
    %s6448 = sor.u32 256, 112
    %6449 = vbcast.lane.b32.xlu0 %v6391, %s6448
    %v6450 = vpop.permute.xlu0 %6449
    %s6452 = sor.u32 256, 120
    %6453 = vbcast.lane.b32.xlu0 %v6391, %s6452
    %v6454 = vpop.permute.xlu0 %6453
    %v6455 = vlaneseq
    %v6456 = vshrl.u32 %v6455, 7
    %v6457 = vsub.s32 6, %v6456
    %v6458 = vrot.slane %v5514, %v6457
    %6460 = vbcast.lane.b32.xlu0 %v6458, 256
    %v6461 = vpop.permute.xlu0 %6460
    %s6463 = sor.u32 256, 8
    %6464 = vbcast.lane.b32.xlu0 %v6458, %s6463
    %v6465 = vpop.permute.xlu0 %6464
    %s6467 = sor.u32 256, 16
    %6468 = vbcast.lane.b32.xlu0 %v6458, %s6467
    %v6469 = vpop.permute.xlu0 %6468
    %s6471 = sor.u32 256, 24
    %6472 = vbcast.lane.b32.xlu0 %v6458, %s6471
    %v6473 = vpop.permute.xlu0 %6472
    %s6475 = sor.u32 256, 32
    %6476 = vbcast.lane.b32.xlu0 %v6458, %s6475
    %v6477 = vpop.permute.xlu0 %6476
    %s6479 = sor.u32 256, 40
    %6480 = vbcast.lane.b32.xlu0 %v6458, %s6479
    %v6481 = vpop.permute.xlu0 %6480
    %s6483 = sor.u32 256, 48
    %6484 = vbcast.lane.b32.xlu0 %v6458, %s6483
    %v6485 = vpop.permute.xlu0 %6484
    %s6487 = sor.u32 256, 56
    %6488 = vbcast.lane.b32.xlu0 %v6458, %s6487
    %v6489 = vpop.permute.xlu0 %6488
    %s6491 = sor.u32 256, 64
    %6492 = vbcast.lane.b32.xlu0 %v6458, %s6491
    %v6493 = vpop.permute.xlu0 %6492
    %s6495 = sor.u32 256, 72
    %6496 = vbcast.lane.b32.xlu0 %v6458, %s6495
    %v6497 = vpop.permute.xlu0 %6496
    %s6499 = sor.u32 256, 80
    %6500 = vbcast.lane.b32.xlu0 %v6458, %s6499
    %v6501 = vpop.permute.xlu0 %6500
    %s6503 = sor.u32 256, 88
    %6504 = vbcast.lane.b32.xlu0 %v6458, %s6503
    %v6505 = vpop.permute.xlu0 %6504
    %s6507 = sor.u32 256, 96
    %6508 = vbcast.lane.b32.xlu0 %v6458, %s6507
    %v6509 = vpop.permute.xlu0 %6508
    %s6511 = sor.u32 256, 104
    %6512 = vbcast.lane.b32.xlu0 %v6458, %s6511
    %v6513 = vpop.permute.xlu0 %6512
    %s6515 = sor.u32 256, 112
    %6516 = vbcast.lane.b32.xlu0 %v6458, %s6515
    %v6517 = vpop.permute.xlu0 %6516
    %s6519 = sor.u32 256, 120
    %6520 = vbcast.lane.b32.xlu0 %v6458, %s6519
    %v6521 = vpop.permute.xlu0 %6520
    %v6522 = vlaneseq
    %v6523 = vshrl.u32 %v6522, 7
    %v6524 = vsub.s32 7, %v6523
    %v6525 = vrot.slane %v5514, %v6524
    %6527 = vbcast.lane.b32.xlu0 %v6525, 256
    %v6528 = vpop.permute.xlu0 %6527
    %s6530 = sor.u32 256, 8
    %6531 = vbcast.lane.b32.xlu0 %v6525, %s6530
    %v6532 = vpop.permute.xlu0 %6531
    %s6534 = sor.u32 256, 16
    %6535 = vbcast.lane.b32.xlu0 %v6525, %s6534
    %v6536 = vpop.permute.xlu0 %6535
    %s6538 = sor.u32 256, 24
    %6539 = vbcast.lane.b32.xlu0 %v6525, %s6538
    %v6540 = vpop.permute.xlu0 %6539
    %s6542 = sor.u32 256, 32
    %6543 = vbcast.lane.b32.xlu0 %v6525, %s6542
    %v6544 = vpop.permute.xlu0 %6543
    %s6546 = sor.u32 256, 40
    %6547 = vbcast.lane.b32.xlu0 %v6525, %s6546
    %v6548 = vpop.permute.xlu0 %6547
    %s6550 = sor.u32 256, 48
    %6551 = vbcast.lane.b32.xlu0 %v6525, %s6550
    %v6552 = vpop.permute.xlu0 %6551
    %s6554 = sor.u32 256, 56
    %6555 = vbcast.lane.b32.xlu0 %v6525, %s6554
    %v6556 = vpop.permute.xlu0 %6555
    %s6558 = sor.u32 256, 64
    %6559 = vbcast.lane.b32.xlu0 %v6525, %s6558
    %v6560 = vpop.permute.xlu0 %6559
    %s6562 = sor.u32 256, 72
    %6563 = vbcast.lane.b32.xlu0 %v6525, %s6562
    %v6564 = vpop.permute.xlu0 %6563
    %s6566 = sor.u32 256, 80
    %6567 = vbcast.lane.b32.xlu0 %v6525, %s6566
    %v6568 = vpop.permute.xlu0 %6567
    %s6570 = sor.u32 256, 88
    %6571 = vbcast.lane.b32.xlu0 %v6525, %s6570
    %v6572 = vpop.permute.xlu0 %6571
    %s6574 = sor.u32 256, 96
    %6575 = vbcast.lane.b32.xlu0 %v6525, %s6574
    %v6576 = vpop.permute.xlu0 %6575
    %s6578 = sor.u32 256, 104
    %6579 = vbcast.lane.b32.xlu0 %v6525, %s6578
    %v6580 = vpop.permute.xlu0 %6579
    %s6582 = sor.u32 256, 112
    %6583 = vbcast.lane.b32.xlu0 %v6525, %s6582
    %v6584 = vpop.permute.xlu0 %6583
    %s6586 = sor.u32 256, 120
    %6587 = vbcast.lane.b32.xlu0 %v6525, %s6586
    %v6588 = vpop.permute.xlu0 %6587
    %v6589 = vunpack.c.l.bf16 %v39
    %v6590 = vunpack.c.l.bf16 %v40
    %v6591 = vunpack.c.l.bf16 %v41
    %v6592 = vunpack.c.l.bf16 %v42
    %v6593 = vunpack.c.l.bf16 %v43
    %v6594 = vunpack.c.l.bf16 %v44
    %v6595 = vunpack.c.l.bf16 %v45
    %v6596 = vunpack.c.l.bf16 %v46
    %v6597 = vunpack.c.l.bf16 %v47
    %v6598 = vunpack.c.l.bf16 %v48
    %v6599 = vunpack.c.l.bf16 %v49
    %v6600 = vunpack.c.l.bf16 %v50
    %v6601 = vunpack.c.l.bf16 %v51
    %v6602 = vunpack.c.l.bf16 %v52
    %v6603 = vunpack.c.l.bf16 %v53
    %v6604 = vunpack.c.l.bf16 %v54
    %v6605 = vunpack.c.l.bf16 %v55
    %v6606 = vunpack.c.l.bf16 %v56
    %v6607 = vunpack.c.l.bf16 %v57
    %v6608 = vunpack.c.l.bf16 %v58
    %v6609 = vunpack.c.l.bf16 %v59
    %v6610 = vunpack.c.l.bf16 %v60
    %v6611 = vunpack.c.l.bf16 %v61
    %v6612 = vunpack.c.l.bf16 %v62
    %v6613 = vunpack.c.l.bf16 %v63
    %v6614 = vunpack.c.l.bf16 %v64
    %v6615 = vunpack.c.l.bf16 %v65
    %v6616 = vunpack.c.l.bf16 %v66
    %v6617 = vunpack.c.l.bf16 %v67
    %v6618 = vunpack.c.l.bf16 %v68
    %v6619 = vunpack.c.l.bf16 %v69
    %v6620 = vunpack.c.l.bf16 %v70
    %v6621 = vunpack.c.l.bf16 %v71
    %v6622 = vunpack.c.l.bf16 %v72
    %v6623 = vunpack.c.l.bf16 %v73
    %v6624 = vunpack.c.l.bf16 %v74
    %v6625 = vunpack.c.l.bf16 %v75
    %v6626 = vunpack.c.l.bf16 %v76
    %v6627 = vunpack.c.l.bf16 %v77
    %v6628 = vunpack.c.l.bf16 %v78
    %v6629 = vunpack.c.l.bf16 %v79
    %v6630 = vunpack.c.l.bf16 %v80
    %v6631 = vunpack.c.l.bf16 %v81
    %v6632 = vunpack.c.l.bf16 %v82
    %v6633 = vunpack.c.l.bf16 %v83
    %v6634 = vunpack.c.l.bf16 %v84
    %v6635 = vunpack.c.l.bf16 %v85
    %v6636 = vunpack.c.l.bf16 %v86
    %v6637 = vunpack.c.l.bf16 %v87
    %v6638 = vunpack.c.l.bf16 %v88
    %v6639 = vunpack.c.l.bf16 %v89
    %v6640 = vunpack.c.l.bf16 %v90
    %v6641 = vunpack.c.l.bf16 %v91
    %v6642 = vunpack.c.l.bf16 %v92
    %v6643 = vunpack.c.l.bf16 %v93
    %v6644 = vunpack.c.l.bf16 %v94
    %v6645 = vunpack.c.l.bf16 %v95
    %v6646 = vunpack.c.l.bf16 %v96
    %v6647 = vunpack.c.l.bf16 %v97
    %v6648 = vunpack.c.l.bf16 %v98
    %v6649 = vunpack.c.l.bf16 %v99
    %v6650 = vunpack.c.l.bf16 %v100
    %v6651 = vunpack.c.l.bf16 %v101
    %v6652 = vunpack.c.l.bf16 %v102
    %v6653 = vunpack.c.l.bf16 %v103
    %v6654 = vunpack.c.l.bf16 %v104
    %v6655 = vunpack.c.l.bf16 %v105
    %v6656 = vunpack.c.l.bf16 %v106
    %v6657 = vunpack.c.l.bf16 %v107
    %v6658 = vunpack.c.l.bf16 %v108
    %v6659 = vunpack.c.l.bf16 %v109
    %v6660 = vunpack.c.l.bf16 %v110
    %v6661 = vunpack.c.l.bf16 %v111
    %v6662 = vunpack.c.l.bf16 %v112
    %v6663 = vunpack.c.l.bf16 %v113
    %v6664 = vunpack.c.l.bf16 %v114
    %v6665 = vunpack.c.l.bf16 %v115
    %v6666 = vunpack.c.l.bf16 %v116
    %v6667 = vunpack.c.l.bf16 %v117
    %v6668 = vunpack.c.l.bf16 %v118
    %v6669 = vunpack.c.l.bf16 %v119
    %v6670 = vunpack.c.l.bf16 %v120
    %v6671 = vunpack.c.l.bf16 %v121
    %v6672 = vunpack.c.l.bf16 %v122
    %v6673 = vunpack.c.l.bf16 %v123
    %v6674 = vunpack.c.l.bf16 %v124
    %v6675 = vunpack.c.l.bf16 %v125
    %v6676 = vunpack.c.l.bf16 %v126
    %v6677 = vunpack.c.l.bf16 %v127
    %v6678 = vunpack.c.l.bf16 %v128
    %v6679 = vunpack.c.l.bf16 %v129
    %v6680 = vunpack.c.l.bf16 %v130
    %v6681 = vunpack.c.l.bf16 %v131
    %v6682 = vunpack.c.l.bf16 %v132
    %v6683 = vunpack.c.l.bf16 %v133
    %v6684 = vunpack.c.l.bf16 %v134
    %v6685 = vunpack.c.l.bf16 %v135
    %v6686 = vunpack.c.l.bf16 %v136
    %v6687 = vunpack.c.l.bf16 %v137
    %v6688 = vunpack.c.l.bf16 %v138
    %v6689 = vunpack.c.l.bf16 %v139
    %v6690 = vunpack.c.l.bf16 %v140
    %v6691 = vunpack.c.l.bf16 %v141
    %v6692 = vunpack.c.l.bf16 %v142
    %v6693 = vunpack.c.l.bf16 %v143
    %v6694 = vunpack.c.l.bf16 %v144
    %v6695 = vunpack.c.l.bf16 %v145
    %v6696 = vunpack.c.l.bf16 %v146
    %v6697 = vunpack.c.l.bf16 %v147
    %v6698 = vunpack.c.l.bf16 %v148
    %v6699 = vunpack.c.l.bf16 %v149
    %v6700 = vunpack.c.l.bf16 %v150
    %v6701 = vunpack.c.l.bf16 %v151
    %v6702 = vunpack.c.l.bf16 %v152
    %v6703 = vunpack.c.l.bf16 %v153
    %v6704 = vunpack.c.l.bf16 %v154
    %v6705 = vunpack.c.l.bf16 %v155
    %v6706 = vunpack.c.l.bf16 %v156
    %v6707 = vunpack.c.l.bf16 %v157
    %v6708 = vunpack.c.l.bf16 %v158
    %v6709 = vunpack.c.l.bf16 %v159
    %v6710 = vunpack.c.l.bf16 %v160
    %v6711 = vunpack.c.l.bf16 %v161
    %v6712 = vunpack.c.l.bf16 %v162
    %v6713 = vunpack.c.l.bf16 %v163
    %v6714 = vunpack.c.l.bf16 %v164
    %v6715 = vunpack.c.l.bf16 %v165
    %v6716 = vunpack.c.l.bf16 %v166
    %v6717 = vunpack.c.l.bf16 %v167
    %v6718 = vunpack.c.l.bf16 %v168
    %v6719 = vunpack.c.l.bf16 %v169
    %v6720 = vunpack.c.l.bf16 %v170
    %v6721 = vunpack.c.l.bf16 %v171
    %v6722 = vunpack.c.l.bf16 %v172
    %v6723 = vunpack.c.l.bf16 %v173
    %v6724 = vunpack.c.l.bf16 %v174
    %v6725 = vunpack.c.l.bf16 %v175
    %v6726 = vunpack.c.l.bf16 %v176
    %v6727 = vunpack.c.l.bf16 %v177
    %v6728 = vunpack.c.l.bf16 %v178
    %v6729 = vunpack.c.l.bf16 %v179
    %v6730 = vunpack.c.l.bf16 %v180
    %v6731 = vunpack.c.l.bf16 %v181
    %v6732 = vunpack.c.l.bf16 %v182
    %v6733 = vunpack.c.l.bf16 %v183
    %v6734 = vunpack.c.l.bf16 %v184
    %v6735 = vunpack.c.l.bf16 %v185
    %v6736 = vunpack.c.l.bf16 %v186
    %v6737 = vunpack.c.l.bf16 %v187
    %v6738 = vunpack.c.l.bf16 %v188
    %v6739 = vunpack.c.l.bf16 %v189
    %v6740 = vunpack.c.l.bf16 %v190
    %v6741 = vunpack.c.l.bf16 %v191
    %v6742 = vunpack.c.l.bf16 %v192
    %v6743 = vunpack.c.l.bf16 %v193
    %v6744 = vunpack.c.l.bf16 %v194
    %v6745 = vunpack.c.l.bf16 %v195
    %v6746 = vunpack.c.l.bf16 %v196
    %v6747 = vunpack.c.l.bf16 %v197
    %v6748 = vunpack.c.l.bf16 %v198
    %v6749 = vunpack.c.l.bf16 %v199
    %v6750 = vunpack.c.l.bf16 %v200
    %v6751 = vunpack.c.l.bf16 %v201
    %v6752 = vunpack.c.l.bf16 %v202
    %v6753 = vunpack.c.l.bf16 %v203
    %v6754 = vunpack.c.l.bf16 %v204
    %v6755 = vunpack.c.l.bf16 %v205
    %v6756 = vunpack.c.l.bf16 %v206
    %v6757 = vunpack.c.l.bf16 %v207
    %v6758 = vunpack.c.l.bf16 %v208
    %v6759 = vunpack.c.l.bf16 %v209
    %v6760 = vunpack.c.l.bf16 %v210
    %v6761 = vunpack.c.l.bf16 %v211
    %v6762 = vunpack.c.l.bf16 %v212
    %v6763 = vunpack.c.l.bf16 %v213
    %v6764 = vunpack.c.l.bf16 %v214
    %v6765 = vunpack.c.l.bf16 %v215
    %v6766 = vunpack.c.l.bf16 %v216
    %v6767 = vunpack.c.l.bf16 %v217
    %v6768 = vunpack.c.l.bf16 %v218
    %v6769 = vunpack.c.l.bf16 %v219
    %v6770 = vunpack.c.l.bf16 %v220
    %v6771 = vunpack.c.l.bf16 %v221
    %v6772 = vunpack.c.l.bf16 %v222
    %v6773 = vunpack.c.l.bf16 %v223
    %v6774 = vunpack.c.l.bf16 %v224
    %v6775 = vunpack.c.l.bf16 %v225
    %v6776 = vunpack.c.l.bf16 %v226
    %v6777 = vunpack.c.l.bf16 %v227
    %v6778 = vunpack.c.l.bf16 %v228
    %v6779 = vunpack.c.l.bf16 %v229
    %v6780 = vunpack.c.l.bf16 %v230
    %v6781 = vunpack.c.l.bf16 %v231
    %v6782 = vunpack.c.l.bf16 %v232
    %v6783 = vunpack.c.l.bf16 %v233
    %v6784 = vunpack.c.l.bf16 %v234
    %v6785 = vunpack.c.l.bf16 %v235
    %v6786 = vunpack.c.l.bf16 %v236
    %v6787 = vunpack.c.l.bf16 %v237
    %v6788 = vunpack.c.l.bf16 %v238
    %v6789 = vunpack.c.l.bf16 %v239
    %v6790 = vunpack.c.l.bf16 %v240
    %v6791 = vunpack.c.l.bf16 %v241
    %v6792 = vunpack.c.l.bf16 %v242
    %v6793 = vunpack.c.l.bf16 %v243
    %v6794 = vunpack.c.l.bf16 %v244
    %v6795 = vunpack.c.l.bf16 %v245
    %v6796 = vunpack.c.l.bf16 %v246
    %v6797 = vunpack.c.l.bf16 %v247
    %v6798 = vunpack.c.l.bf16 %v248
    %v6799 = vunpack.c.l.bf16 %v249
    %v6800 = vunpack.c.l.bf16 %v250
    %v6801 = vunpack.c.l.bf16 %v251
    %v6802 = vunpack.c.l.bf16 %v252
    %v6803 = vunpack.c.l.bf16 %v253
    %v6804 = vunpack.c.l.bf16 %v254
    %v6805 = vunpack.c.l.bf16 %v255
    %v6806 = vunpack.c.l.bf16 %v256
    %v6807 = vunpack.c.l.bf16 %v257
    %v6808 = vunpack.c.l.bf16 %v258
    %v6809 = vunpack.c.l.bf16 %v259
    %v6810 = vunpack.c.l.bf16 %v260
    %v6811 = vunpack.c.l.bf16 %v261
    %v6812 = vunpack.c.l.bf16 %v262
    %v6813 = vunpack.c.l.bf16 %v263
    %v6814 = vunpack.c.l.bf16 %v264
    %v6815 = vunpack.c.l.bf16 %v265
    %v6816 = vunpack.c.l.bf16 %v266
    %v6817 = vunpack.c.l.bf16 %v267
    %v6818 = vunpack.c.l.bf16 %v268
    %v6819 = vunpack.c.l.bf16 %v269
    %v6820 = vunpack.c.l.bf16 %v270
    %v6821 = vunpack.c.l.bf16 %v271
    %v6822 = vunpack.c.l.bf16 %v272
    %v6823 = vunpack.c.l.bf16 %v273
    %v6824 = vunpack.c.l.bf16 %v274
    %v6825 = vunpack.c.l.bf16 %v275
    %v6826 = vunpack.c.l.bf16 %v276
    %v6827 = vunpack.c.l.bf16 %v277
    %v6828 = vunpack.c.l.bf16 %v278
    %v6829 = vunpack.c.l.bf16 %v279
    %v6830 = vunpack.c.l.bf16 %v280
    %v6831 = vunpack.c.l.bf16 %v281
    %v6832 = vunpack.c.l.bf16 %v282
    %v6833 = vunpack.c.l.bf16 %v283
    %v6834 = vunpack.c.l.bf16 %v284
    %v6835 = vunpack.c.l.bf16 %v285
    %v6836 = vunpack.c.l.bf16 %v286
    %v6837 = vunpack.c.l.bf16 %v287
    %v6838 = vunpack.c.l.bf16 %v288
    %v6839 = vunpack.c.l.bf16 %v289
    %v6840 = vunpack.c.l.bf16 %v290
    %v6841 = vunpack.c.l.bf16 %v291
    %v6842 = vunpack.c.l.bf16 %v292
    %v6843 = vunpack.c.l.bf16 %v293
    %v6844 = vunpack.c.l.bf16 %v294
    %v6845 = vmul.f32 %v5523, %v6589
    %v6846 = vmul.f32 %v5527, %v6590
    %v6847 = vmul.f32 %v5531, %v6591
    %v6848 = vmul.f32 %v5535, %v6592
    %v6849 = vmul.f32 %v5539, %v6593
    %v6850 = vmul.f32 %v5543, %v6594
    %v6851 = vmul.f32 %v5547, %v6595
    %v6852 = vmul.f32 %v5551, %v6596
    %v6853 = vmul.f32 %v5555, %v6597
    %v6854 = vmul.f32 %v5559, %v6598
    %v6855 = vmul.f32 %v5563, %v6599
    %v6856 = vmul.f32 %v5567, %v6600
    %v6857 = vmul.f32 %v5571, %v6601
    %v6858 = vmul.f32 %v5575, %v6602
    %v6859 = vmul.f32 %v5579, %v6603
    %v6860 = vmul.f32 %v5583, %v6604
    %v6861 = vmul.f32 %v5590, %v6605
    %v6862 = vmul.f32 %v5594, %v6606
    %v6863 = vmul.f32 %v5598, %v6607
    %v6864 = vmul.f32 %v5602, %v6608
    %v6865 = vmul.f32 %v5606, %v6609
    %v6866 = vmul.f32 %v5610, %v6610
    %v6867 = vmul.f32 %v5614, %v6611
    %v6868 = vmul.f32 %v5618, %v6612
    %v6869 = vmul.f32 %v5622, %v6613
    %v6870 = vmul.f32 %v5626, %v6614
    %v6871 = vmul.f32 %v5630, %v6615
    %v6872 = vmul.f32 %v5634, %v6616
    %v6873 = vmul.f32 %v5638, %v6617
    %v6874 = vmul.f32 %v5642, %v6618
    %v6875 = vmul.f32 %v5646, %v6619
    %v6876 = vmul.f32 %v5650, %v6620
    %v6877 = vmul.f32 %v5657, %v6621
    %v6878 = vmul.f32 %v5661, %v6622
    %v6879 = vmul.f32 %v5665, %v6623
    %v6880 = vmul.f32 %v5669, %v6624
    %v6881 = vmul.f32 %v5673, %v6625
    %v6882 = vmul.f32 %v5677, %v6626
    %v6883 = vmul.f32 %v5681, %v6627
    %v6884 = vmul.f32 %v5685, %v6628
    %v6885 = vmul.f32 %v5689, %v6629
    %v6886 = vmul.f32 %v5693, %v6630
    %v6887 = vmul.f32 %v5697, %v6631
    %v6888 = vmul.f32 %v5701, %v6632
    %v6889 = vmul.f32 %v5705, %v6633
    %v6890 = vmul.f32 %v5709, %v6634
    %v6891 = vmul.f32 %v5713, %v6635
    %v6892 = vmul.f32 %v5717, %v6636
    %v6893 = vmul.f32 %v5724, %v6637
    %v6894 = vmul.f32 %v5728, %v6638
    %v6895 = vmul.f32 %v5732, %v6639
    %v6896 = vmul.f32 %v5736, %v6640
    %v6897 = vmul.f32 %v5740, %v6641
    %v6898 = vmul.f32 %v5744, %v6642
    %v6899 = vmul.f32 %v5748, %v6643
    %v6900 = vmul.f32 %v5752, %v6644
    %v6901 = vmul.f32 %v5756, %v6645
    %v6902 = vmul.f32 %v5760, %v6646
    %v6903 = vmul.f32 %v5764, %v6647
    %v6904 = vmul.f32 %v5768, %v6648
    %v6905 = vmul.f32 %v5772, %v6649
    %v6906 = vmul.f32 %v5776, %v6650
    %v6907 = vmul.f32 %v5780, %v6651
    %v6908 = vmul.f32 %v5784, %v6652
    %v6909 = vmul.f32 %v5791, %v6653
    %v6910 = vmul.f32 %v5795, %v6654
    %v6911 = vmul.f32 %v5799, %v6655
    %v6912 = vmul.f32 %v5803, %v6656
    %v6913 = vmul.f32 %v5807, %v6657
    %v6914 = vmul.f32 %v5811, %v6658
    %v6915 = vmul.f32 %v5815, %v6659
    %v6916 = vmul.f32 %v5819, %v6660
    %v6917 = vmul.f32 %v5823, %v6661
    %v6918 = vmul.f32 %v5827, %v6662
    %v6919 = vmul.f32 %v5831, %v6663
    %v6920 = vmul.f32 %v5835, %v6664
    %v6921 = vmul.f32 %v5839, %v6665
    %v6922 = vmul.f32 %v5843, %v6666
    %v6923 = vmul.f32 %v5847, %v6667
    %v6924 = vmul.f32 %v5851, %v6668
    %v6925 = vmul.f32 %v5858, %v6669
    %v6926 = vmul.f32 %v5862, %v6670
    %v6927 = vmul.f32 %v5866, %v6671
    %v6928 = vmul.f32 %v5870, %v6672
    %v6929 = vmul.f32 %v5874, %v6673
    %v6930 = vmul.f32 %v5878, %v6674
    %v6931 = vmul.f32 %v5882, %v6675
    %v6932 = vmul.f32 %v5886, %v6676
    %v6933 = vmul.f32 %v5890, %v6677
    %v6934 = vmul.f32 %v5894, %v6678
    %v6935 = vmul.f32 %v5898, %v6679
    %v6936 = vmul.f32 %v5902, %v6680
    %v6937 = vmul.f32 %v5906, %v6681
    %v6938 = vmul.f32 %v5910, %v6682
    %v6939 = vmul.f32 %v5914, %v6683
    %v6940 = vmul.f32 %v5918, %v6684
    %v6941 = vmul.f32 %v5925, %v6685
    %v6942 = vmul.f32 %v5929, %v6686
    %v6943 = vmul.f32 %v5933, %v6687
    %v6944 = vmul.f32 %v5937, %v6688
    %v6945 = vmul.f32 %v5941, %v6689
    %v6946 = vmul.f32 %v5945, %v6690
    %v6947 = vmul.f32 %v5949, %v6691
    %v6948 = vmul.f32 %v5953, %v6692
    %v6949 = vmul.f32 %v5957, %v6693
    %v6950 = vmul.f32 %v5961, %v6694
    %v6951 = vmul.f32 %v5965, %v6695
    %v6952 = vmul.f32 %v5969, %v6696
    %v6953 = vmul.f32 %v5973, %v6697
    %v6954 = vmul.f32 %v5977, %v6698
    %v6955 = vmul.f32 %v5981, %v6699
    %v6956 = vmul.f32 %v5985, %v6700
    %v6957 = vmul.f32 %v5992, %v6701
    %v6958 = vmul.f32 %v5996, %v6702
    %v6959 = vmul.f32 %v6000, %v6703
    %v6960 = vmul.f32 %v6004, %v6704
    %v6961 = vmul.f32 %v6008, %v6705
    %v6962 = vmul.f32 %v6012, %v6706
    %v6963 = vmul.f32 %v6016, %v6707
    %v6964 = vmul.f32 %v6020, %v6708
    %v6965 = vmul.f32 %v6024, %v6709
    %v6966 = vmul.f32 %v6028, %v6710
    %v6967 = vmul.f32 %v6032, %v6711
    %v6968 = vmul.f32 %v6036, %v6712
    %v6969 = vmul.f32 %v6040, %v6713
    %v6970 = vmul.f32 %v6044, %v6714
    %v6971 = vmul.f32 %v6048, %v6715
    %v6972 = vmul.f32 %v6052, %v6716
    %v6973 = vmul.f32 %v6059, %v6717
    %v6974 = vmul.f32 %v6063, %v6718
    %v6975 = vmul.f32 %v6067, %v6719
    %v6976 = vmul.f32 %v6071, %v6720
    %v6977 = vmul.f32 %v6075, %v6721
    %v6978 = vmul.f32 %v6079, %v6722
    %v6979 = vmul.f32 %v6083, %v6723
    %v6980 = vmul.f32 %v6087, %v6724
    %v6981 = vmul.f32 %v6091, %v6725
    %v6982 = vmul.f32 %v6095, %v6726
    %v6983 = vmul.f32 %v6099, %v6727
    %v6984 = vmul.f32 %v6103, %v6728
    %v6985 = vmul.f32 %v6107, %v6729
    %v6986 = vmul.f32 %v6111, %v6730
    %v6987 = vmul.f32 %v6115, %v6731
    %v6988 = vmul.f32 %v6119, %v6732
    %v6989 = vmul.f32 %v6126, %v6733
    %v6990 = vmul.f32 %v6130, %v6734
    %v6991 = vmul.f32 %v6134, %v6735
    %v6992 = vmul.f32 %v6138, %v6736
    %v6993 = vmul.f32 %v6142, %v6737
    %v6994 = vmul.f32 %v6146, %v6738
    %v6995 = vmul.f32 %v6150, %v6739
    %v6996 = vmul.f32 %v6154, %v6740
    %v6997 = vmul.f32 %v6158, %v6741
    %v6998 = vmul.f32 %v6162, %v6742
    %v6999 = vmul.f32 %v6166, %v6743
    %v7000 = vmul.f32 %v6170, %v6744
    %v7001 = vmul.f32 %v6174, %v6745
    %v7002 = vmul.f32 %v6178, %v6746
    %v7003 = vmul.f32 %v6182, %v6747
    %v7004 = vmul.f32 %v6186, %v6748
    %v7005 = vmul.f32 %v6193, %v6749
    %v7006 = vmul.f32 %v6197, %v6750
    %v7007 = vmul.f32 %v6201, %v6751
    %v7008 = vmul.f32 %v6205, %v6752
    %v7009 = vmul.f32 %v6209, %v6753
    %v7010 = vmul.f32 %v6213, %v6754
    %v7011 = vmul.f32 %v6217, %v6755
    %v7012 = vmul.f32 %v6221, %v6756
    %v7013 = vmul.f32 %v6225, %v6757
    %v7014 = vmul.f32 %v6229, %v6758
    %v7015 = vmul.f32 %v6233, %v6759
    %v7016 = vmul.f32 %v6237, %v6760
    %v7017 = vmul.f32 %v6241, %v6761
    %v7018 = vmul.f32 %v6245, %v6762
    %v7019 = vmul.f32 %v6249, %v6763
    %v7020 = vmul.f32 %v6253, %v6764
    %v7021 = vmul.f32 %v6260, %v6765
    %v7022 = vmul.f32 %v6264, %v6766
    %v7023 = vmul.f32 %v6268, %v6767
    %v7024 = vmul.f32 %v6272, %v6768
    %v7025 = vmul.f32 %v6276, %v6769
    %v7026 = vmul.f32 %v6280, %v6770
    %v7027 = vmul.f32 %v6284, %v6771
    %v7028 = vmul.f32 %v6288, %v6772
    %v7029 = vmul.f32 %v6292, %v6773
    %v7030 = vmul.f32 %v6296, %v6774
    %v7031 = vmul.f32 %v6300, %v6775
    %v7032 = vmul.f32 %v6304, %v6776
    %v7033 = vmul.f32 %v6308, %v6777
    %v7034 = vmul.f32 %v6312, %v6778
    %v7035 = vmul.f32 %v6316, %v6779
    %v7036 = vmul.f32 %v6320, %v6780
    %v7037 = vmul.f32 %v6327, %v6781
    %v7038 = vmul.f32 %v6331, %v6782
    %v7039 = vmul.f32 %v6335, %v6783
    %v7040 = vmul.f32 %v6339, %v6784
    %v7041 = vmul.f32 %v6343, %v6785
    %v7042 = vmul.f32 %v6347, %v6786
    %v7043 = vmul.f32 %v6351, %v6787
    %v7044 = vmul.f32 %v6355, %v6788
    %v7045 = vmul.f32 %v6359, %v6789
    %v7046 = vmul.f32 %v6363, %v6790
    %v7047 = vmul.f32 %v6367, %v6791
    %v7048 = vmul.f32 %v6371, %v6792
    %v7049 = vmul.f32 %v6375, %v6793
    %v7050 = vmul.f32 %v6379, %v6794
    %v7051 = vmul.f32 %v6383, %v6795
    %v7052 = vmul.f32 %v6387, %v6796
    %v7053 = vmul.f32 %v6394, %v6797
    %v7054 = vmul.f32 %v6398, %v6798
    %v7055 = vmul.f32 %v6402, %v6799
    %v7056 = vmul.f32 %v6406, %v6800
    %v7057 = vmul.f32 %v6410, %v6801
    %v7058 = vmul.f32 %v6414, %v6802
    %v7059 = vmul.f32 %v6418, %v6803
    %v7060 = vmul.f32 %v6422, %v6804
    %v7061 = vmul.f32 %v6426, %v6805
    %v7062 = vmul.f32 %v6430, %v6806
    %v7063 = vmul.f32 %v6434, %v6807
    %v7064 = vmul.f32 %v6438, %v6808
    %v7065 = vmul.f32 %v6442, %v6809
    %v7066 = vmul.f32 %v6446, %v6810
    %v7067 = vmul.f32 %v6450, %v6811
    %v7068 = vmul.f32 %v6454, %v6812
    %v7069 = vmul.f32 %v6461, %v6813
    %v7070 = vmul.f32 %v6465, %v6814
    %v7071 = vmul.f32 %v6469, %v6815
    %v7072 = vmul.f32 %v6473, %v6816
    %v7073 = vmul.f32 %v6477, %v6817
    %v7074 = vmul.f32 %v6481, %v6818
    %v7075 = vmul.f32 %v6485, %v6819
    %v7076 = vmul.f32 %v6489, %v6820
    %v7077 = vmul.f32 %v6493, %v6821
    %v7078 = vmul.f32 %v6497, %v6822
    %v7079 = vmul.f32 %v6501, %v6823
    %v7080 = vmul.f32 %v6505, %v6824
    %v7081 = vmul.f32 %v6509, %v6825
    %v7082 = vmul.f32 %v6513, %v6826
    %v7083 = vmul.f32 %v6517, %v6827
    %v7084 = vmul.f32 %v6521, %v6828
    %v7085 = vmul.f32 %v6528, %v6829
    %v7086 = vmul.f32 %v6532, %v6830
    %v7087 = vmul.f32 %v6536, %v6831
    %v7088 = vmul.f32 %v6540, %v6832
    %v7089 = vmul.f32 %v6544, %v6833
    %v7090 = vmul.f32 %v6548, %v6834
    %v7091 = vmul.f32 %v6552, %v6835
    %v7092 = vmul.f32 %v6556, %v6836
    %v7093 = vmul.f32 %v6560, %v6837
    %v7094 = vmul.f32 %v6564, %v6838
    %v7095 = vmul.f32 %v6568, %v6839
    %v7096 = vmul.f32 %v6572, %v6840
    %v7097 = vmul.f32 %v6576, %v6841
    %v7098 = vmul.f32 %v6580, %v6842
    %v7099 = vmul.f32 %v6584, %v6843
    %v7100 = vmul.f32 %v6588, %v6844
    %v7101 = vadd.f32 %v6845, %v6846
    %v7102 = vadd.f32 %v7101, %v6847
    %v7103 = vadd.f32 %v7102, %v6848
    %v7104 = vadd.f32 %v7103, %v6849
    %v7105 = vadd.f32 %v7104, %v6850
    %v7106 = vadd.f32 %v7105, %v6851
    %v7107 = vadd.f32 %v7106, %v6852
    %v7108 = vadd.f32 %v7107, %v6853
    %v7109 = vadd.f32 %v7108, %v6854
    %v7110 = vadd.f32 %v7109, %v6855
    %v7111 = vadd.f32 %v7110, %v6856
    %v7112 = vadd.f32 %v7111, %v6857
    %v7113 = vadd.f32 %v7112, %v6858
    %v7114 = vadd.f32 %v7113, %v6859
    %v7115 = vadd.f32 %v7114, %v6860
    %v7116 = vrot.slane %v7115, 4
    %v7117 = vadd.f32 %v7115, %v7116
    %v7118 = vrot.slane %v7117, 2
    %v7119 = vadd.f32 %v7117, %v7118
    %v7120 = vrot.slane %v7119, 1
    %v7121 = vadd.f32 %v7119, %v7120
    %v7122 = vadd.f32 %v6861, %v6862
    %v7123 = vadd.f32 %v7122, %v6863
    %v7124 = vadd.f32 %v7123, %v6864
    %v7125 = vadd.f32 %v7124, %v6865
    %v7126 = vadd.f32 %v7125, %v6866
    %v7127 = vadd.f32 %v7126, %v6867
    %v7128 = vadd.f32 %v7127, %v6868
    %v7129 = vadd.f32 %v7128, %v6869
    %v7130 = vadd.f32 %v7129, %v6870
    %v7131 = vadd.f32 %v7130, %v6871
    %v7132 = vadd.f32 %v7131, %v6872
    %v7133 = vadd.f32 %v7132, %v6873
    %v7134 = vadd.f32 %v7133, %v6874
    %v7135 = vadd.f32 %v7134, %v6875
    %v7136 = vadd.f32 %v7135, %v6876
    %v7137 = vrot.slane %v7136, 4
    %v7138 = vadd.f32 %v7136, %v7137
    %v7139 = vrot.slane %v7138, 2
    %v7140 = vadd.f32 %v7138, %v7139
    %v7141 = vrot.slane %v7140, 1
    %v7142 = vadd.f32 %v7140, %v7141
    %v7143 = vadd.f32 %v6877, %v6878
    %v7144 = vadd.f32 %v7143, %v6879
    %v7145 = vadd.f32 %v7144, %v6880
    %v7146 = vadd.f32 %v7145, %v6881
    %v7147 = vadd.f32 %v7146, %v6882
    %v7148 = vadd.f32 %v7147, %v6883
    %v7149 = vadd.f32 %v7148, %v6884
    %v7150 = vadd.f32 %v7149, %v6885
    %v7151 = vadd.f32 %v7150, %v6886
    %v7152 = vadd.f32 %v7151, %v6887
    %v7153 = vadd.f32 %v7152, %v6888
    %v7154 = vadd.f32 %v7153, %v6889
    %v7155 = vadd.f32 %v7154, %v6890
    %v7156 = vadd.f32 %v7155, %v6891
    %v7157 = vadd.f32 %v7156, %v6892
    %v7158 = vrot.slane %v7157, 4
    %v7159 = vadd.f32 %v7157, %v7158
    %v7160 = vrot.slane %v7159, 2
    %v7161 = vadd.f32 %v7159, %v7160
    %v7162 = vrot.slane %v7161, 1
    %v7163 = vadd.f32 %v7161, %v7162
    %v7164 = vadd.f32 %v6893, %v6894
    %v7165 = vadd.f32 %v7164, %v6895
    %v7166 = vadd.f32 %v7165, %v6896
    %v7167 = vadd.f32 %v7166, %v6897
    %v7168 = vadd.f32 %v7167, %v6898
    %v7169 = vadd.f32 %v7168, %v6899
    %v7170 = vadd.f32 %v7169, %v6900
    %v7171 = vadd.f32 %v7170, %v6901
    %v7172 = vadd.f32 %v7171, %v6902
    %v7173 = vadd.f32 %v7172, %v6903
    %v7174 = vadd.f32 %v7173, %v6904
    %v7175 = vadd.f32 %v7174, %v6905
    %v7176 = vadd.f32 %v7175, %v6906
    %v7177 = vadd.f32 %v7176, %v6907
    %v7178 = vadd.f32 %v7177, %v6908
    %v7179 = vrot.slane %v7178, 4
    %v7180 = vadd.f32 %v7178, %v7179
    %v7181 = vrot.slane %v7180, 2
    %v7182 = vadd.f32 %v7180, %v7181
    %v7183 = vrot.slane %v7182, 1
    %v7184 = vadd.f32 %v7182, %v7183
    %v7185 = vadd.f32 %v6909, %v6910
    %v7186 = vadd.f32 %v7185, %v6911
    %v7187 = vadd.f32 %v7186, %v6912
    %v7188 = vadd.f32 %v7187, %v6913
    %v7189 = vadd.f32 %v7188, %v6914
    %v7190 = vadd.f32 %v7189, %v6915
    %v7191 = vadd.f32 %v7190, %v6916
    %v7192 = vadd.f32 %v7191, %v6917
    %v7193 = vadd.f32 %v7192, %v6918
    %v7194 = vadd.f32 %v7193, %v6919
    %v7195 = vadd.f32 %v7194, %v6920
    %v7196 = vadd.f32 %v7195, %v6921
    %v7197 = vadd.f32 %v7196, %v6922
    %v7198 = vadd.f32 %v7197, %v6923
    %v7199 = vadd.f32 %v7198, %v6924
    %v7200 = vrot.slane %v7199, 4
    %v7201 = vadd.f32 %v7199, %v7200
    %v7202 = vrot.slane %v7201, 2
    %v7203 = vadd.f32 %v7201, %v7202
    %v7204 = vrot.slane %v7203, 1
    %v7205 = vadd.f32 %v7203, %v7204
    %v7206 = vadd.f32 %v6925, %v6926
    %v7207 = vadd.f32 %v7206, %v6927
    %v7208 = vadd.f32 %v7207, %v6928
    %v7209 = vadd.f32 %v7208, %v6929
    %v7210 = vadd.f32 %v7209, %v6930
    %v7211 = vadd.f32 %v7210, %v6931
    %v7212 = vadd.f32 %v7211, %v6932
    %v7213 = vadd.f32 %v7212, %v6933
    %v7214 = vadd.f32 %v7213, %v6934
    %v7215 = vadd.f32 %v7214, %v6935
    %v7216 = vadd.f32 %v7215, %v6936
    %v7217 = vadd.f32 %v7216, %v6937
    %v7218 = vadd.f32 %v7217, %v6938
    %v7219 = vadd.f32 %v7218, %v6939
    %v7220 = vadd.f32 %v7219, %v6940
    %v7221 = vrot.slane %v7220, 4
    %v7222 = vadd.f32 %v7220, %v7221
    %v7223 = vrot.slane %v7222, 2
    %v7224 = vadd.f32 %v7222, %v7223
    %v7225 = vrot.slane %v7224, 1
    %v7226 = vadd.f32 %v7224, %v7225
    %v7227 = vadd.f32 %v6941, %v6942
    %v7228 = vadd.f32 %v7227, %v6943
    %v7229 = vadd.f32 %v7228, %v6944
    %v7230 = vadd.f32 %v7229, %v6945
    %v7231 = vadd.f32 %v7230, %v6946
    %v7232 = vadd.f32 %v7231, %v6947
    %v7233 = vadd.f32 %v7232, %v6948
    %v7234 = vadd.f32 %v7233, %v6949
    %v7235 = vadd.f32 %v7234, %v6950
    %v7236 = vadd.f32 %v7235, %v6951
    %v7237 = vadd.f32 %v7236, %v6952
    %v7238 = vadd.f32 %v7237, %v6953
    %v7239 = vadd.f32 %v7238, %v6954
    %v7240 = vadd.f32 %v7239, %v6955
    %v7241 = vadd.f32 %v7240, %v6956
    %v7242 = vrot.slane %v7241, 4
    %v7243 = vadd.f32 %v7241, %v7242
    %v7244 = vrot.slane %v7243, 2
    %v7245 = vadd.f32 %v7243, %v7244
    %v7246 = vrot.slane %v7245, 1
    %v7247 = vadd.f32 %v7245, %v7246
    %v7248 = vadd.f32 %v6957, %v6958
    %v7249 = vadd.f32 %v7248, %v6959
    %v7250 = vadd.f32 %v7249, %v6960
    %v7251 = vadd.f32 %v7250, %v6961
    %v7252 = vadd.f32 %v7251, %v6962
    %v7253 = vadd.f32 %v7252, %v6963
    %v7254 = vadd.f32 %v7253, %v6964
    %v7255 = vadd.f32 %v7254, %v6965
    %v7256 = vadd.f32 %v7255, %v6966
    %v7257 = vadd.f32 %v7256, %v6967
    %v7258 = vadd.f32 %v7257, %v6968
    %v7259 = vadd.f32 %v7258, %v6969
    %v7260 = vadd.f32 %v7259, %v6970
    %v7261 = vadd.f32 %v7260, %v6971
    %v7262 = vadd.f32 %v7261, %v6972
    %v7263 = vrot.slane %v7262, 4
    %v7264 = vadd.f32 %v7262, %v7263
    %v7265 = vrot.slane %v7264, 2
    %v7266 = vadd.f32 %v7264, %v7265
    %v7267 = vrot.slane %v7266, 1
    %v7268 = vadd.f32 %v7266, %v7267
    %v7269 = vadd.f32 %v6973, %v6974
    %v7270 = vadd.f32 %v7269, %v6975
    %v7271 = vadd.f32 %v7270, %v6976
    %v7272 = vadd.f32 %v7271, %v6977
    %v7273 = vadd.f32 %v7272, %v6978
    %v7274 = vadd.f32 %v7273, %v6979
    %v7275 = vadd.f32 %v7274, %v6980
    %v7276 = vadd.f32 %v7275, %v6981
    %v7277 = vadd.f32 %v7276, %v6982
    %v7278 = vadd.f32 %v7277, %v6983
    %v7279 = vadd.f32 %v7278, %v6984
    %v7280 = vadd.f32 %v7279, %v6985
    %v7281 = vadd.f32 %v7280, %v6986
    %v7282 = vadd.f32 %v7281, %v6987
    %v7283 = vadd.f32 %v7282, %v6988
    %v7284 = vrot.slane %v7283, 4
    %v7285 = vadd.f32 %v7283, %v7284
    %v7286 = vrot.slane %v7285, 2
    %v7287 = vadd.f32 %v7285, %v7286
    %v7288 = vrot.slane %v7287, 1
    %v7289 = vadd.f32 %v7287, %v7288
    %v7290 = vadd.f32 %v6989, %v6990
    %v7291 = vadd.f32 %v7290, %v6991
    %v7292 = vadd.f32 %v7291, %v6992
    %v7293 = vadd.f32 %v7292, %v6993
    %v7294 = vadd.f32 %v7293, %v6994
    %v7295 = vadd.f32 %v7294, %v6995
    %v7296 = vadd.f32 %v7295, %v6996
    %v7297 = vadd.f32 %v7296, %v6997
    %v7298 = vadd.f32 %v7297, %v6998
    %v7299 = vadd.f32 %v7298, %v6999
    %v7300 = vadd.f32 %v7299, %v7000
    %v7301 = vadd.f32 %v7300, %v7001
    %v7302 = vadd.f32 %v7301, %v7002
    %v7303 = vadd.f32 %v7302, %v7003
    %v7304 = vadd.f32 %v7303, %v7004
    %v7305 = vrot.slane %v7304, 4
    %v7306 = vadd.f32 %v7304, %v7305
    %v7307 = vrot.slane %v7306, 2
    %v7308 = vadd.f32 %v7306, %v7307
    %v7309 = vrot.slane %v7308, 1
    %v7310 = vadd.f32 %v7308, %v7309
    %v7311 = vadd.f32 %v7005, %v7006
    %v7312 = vadd.f32 %v7311, %v7007
    %v7313 = vadd.f32 %v7312, %v7008
    %v7314 = vadd.f32 %v7313, %v7009
    %v7315 = vadd.f32 %v7314, %v7010
    %v7316 = vadd.f32 %v7315, %v7011
    %v7317 = vadd.f32 %v7316, %v7012
    %v7318 = vadd.f32 %v7317, %v7013
    %v7319 = vadd.f32 %v7318, %v7014
    %v7320 = vadd.f32 %v7319, %v7015
    %v7321 = vadd.f32 %v7320, %v7016
    %v7322 = vadd.f32 %v7321, %v7017
    %v7323 = vadd.f32 %v7322, %v7018
    %v7324 = vadd.f32 %v7323, %v7019
    %v7325 = vadd.f32 %v7324, %v7020
    %v7326 = vrot.slane %v7325, 4
    %v7327 = vadd.f32 %v7325, %v7326
    %v7328 = vrot.slane %v7327, 2
    %v7329 = vadd.f32 %v7327, %v7328
    %v7330 = vrot.slane %v7329, 1
    %v7331 = vadd.f32 %v7329, %v7330
    %v7332 = vadd.f32 %v7021, %v7022
    %v7333 = vadd.f32 %v7332, %v7023
    %v7334 = vadd.f32 %v7333, %v7024
    %v7335 = vadd.f32 %v7334, %v7025
    %v7336 = vadd.f32 %v7335, %v7026
    %v7337 = vadd.f32 %v7336, %v7027
    %v7338 = vadd.f32 %v7337, %v7028
    %v7339 = vadd.f32 %v7338, %v7029
    %v7340 = vadd.f32 %v7339, %v7030
    %v7341 = vadd.f32 %v7340, %v7031
    %v7342 = vadd.f32 %v7341, %v7032
    %v7343 = vadd.f32 %v7342, %v7033
    %v7344 = vadd.f32 %v7343, %v7034
    %v7345 = vadd.f32 %v7344, %v7035
    %v7346 = vadd.f32 %v7345, %v7036
    %v7347 = vrot.slane %v7346, 4
    %v7348 = vadd.f32 %v7346, %v7347
    %v7349 = vrot.slane %v7348, 2
    %v7350 = vadd.f32 %v7348, %v7349
    %v7351 = vrot.slane %v7350, 1
    %v7352 = vadd.f32 %v7350, %v7351
    %v7353 = vadd.f32 %v7037, %v7038
    %v7354 = vadd.f32 %v7353, %v7039
    %v7355 = vadd.f32 %v7354, %v7040
    %v7356 = vadd.f32 %v7355, %v7041
    %v7357 = vadd.f32 %v7356, %v7042
    %v7358 = vadd.f32 %v7357, %v7043
    %v7359 = vadd.f32 %v7358, %v7044
    %v7360 = vadd.f32 %v7359, %v7045
    %v7361 = vadd.f32 %v7360, %v7046
    %v7362 = vadd.f32 %v7361, %v7047
    %v7363 = vadd.f32 %v7362, %v7048
    %v7364 = vadd.f32 %v7363, %v7049
    %v7365 = vadd.f32 %v7364, %v7050
    %v7366 = vadd.f32 %v7365, %v7051
    %v7367 = vadd.f32 %v7366, %v7052
    %v7368 = vrot.slane %v7367, 4
    %v7369 = vadd.f32 %v7367, %v7368
    %v7370 = vrot.slane %v7369, 2
    %v7371 = vadd.f32 %v7369, %v7370
    %v7372 = vrot.slane %v7371, 1
    %v7373 = vadd.f32 %v7371, %v7372
    %v7374 = vadd.f32 %v7053, %v7054
    %v7375 = vadd.f32 %v7374, %v7055
    %v7376 = vadd.f32 %v7375, %v7056
    %v7377 = vadd.f32 %v7376, %v7057
    %v7378 = vadd.f32 %v7377, %v7058
    %v7379 = vadd.f32 %v7378, %v7059
    %v7380 = vadd.f32 %v7379, %v7060
    %v7381 = vadd.f32 %v7380, %v7061
    %v7382 = vadd.f32 %v7381, %v7062
    %v7383 = vadd.f32 %v7382, %v7063
    %v7384 = vadd.f32 %v7383, %v7064
    %v7385 = vadd.f32 %v7384, %v7065
    %v7386 = vadd.f32 %v7385, %v7066
    %v7387 = vadd.f32 %v7386, %v7067
    %v7388 = vadd.f32 %v7387, %v7068
    %v7389 = vrot.slane %v7388, 4
    %v7390 = vadd.f32 %v7388, %v7389
    %v7391 = vrot.slane %v7390, 2
    %v7392 = vadd.f32 %v7390, %v7391
    %v7393 = vrot.slane %v7392, 1
    %v7394 = vadd.f32 %v7392, %v7393
    %v7395 = vadd.f32 %v7069, %v7070
    %v7396 = vadd.f32 %v7395, %v7071
    %v7397 = vadd.f32 %v7396, %v7072
    %v7398 = vadd.f32 %v7397, %v7073
    %v7399 = vadd.f32 %v7398, %v7074
    %v7400 = vadd.f32 %v7399, %v7075
    %v7401 = vadd.f32 %v7400, %v7076
    %v7402 = vadd.f32 %v7401, %v7077
    %v7403 = vadd.f32 %v7402, %v7078
    %v7404 = vadd.f32 %v7403, %v7079
    %v7405 = vadd.f32 %v7404, %v7080
    %v7406 = vadd.f32 %v7405, %v7081
    %v7407 = vadd.f32 %v7406, %v7082
    %v7408 = vadd.f32 %v7407, %v7083
    %v7409 = vadd.f32 %v7408, %v7084
    %v7410 = vrot.slane %v7409, 4
    %v7411 = vadd.f32 %v7409, %v7410
    %v7412 = vrot.slane %v7411, 2
    %v7413 = vadd.f32 %v7411, %v7412
    %v7414 = vrot.slane %v7413, 1
    %v7415 = vadd.f32 %v7413, %v7414
    %v7416 = vadd.f32 %v7085, %v7086
    %v7417 = vadd.f32 %v7416, %v7087
    %v7418 = vadd.f32 %v7417, %v7088
    %v7419 = vadd.f32 %v7418, %v7089
    %v7420 = vadd.f32 %v7419, %v7090
    %v7421 = vadd.f32 %v7420, %v7091
    %v7422 = vadd.f32 %v7421, %v7092
    %v7423 = vadd.f32 %v7422, %v7093
    %v7424 = vadd.f32 %v7423, %v7094
    %v7425 = vadd.f32 %v7424, %v7095
    %v7426 = vadd.f32 %v7425, %v7096
    %v7427 = vadd.f32 %v7426, %v7097
    %v7428 = vadd.f32 %v7427, %v7098
    %v7429 = vadd.f32 %v7428, %v7099
    %v7430 = vadd.f32 %v7429, %v7100
    %v7431 = vrot.slane %v7430, 4
    %v7432 = vadd.f32 %v7430, %v7431
    %v7433 = vrot.slane %v7432, 2
    %v7434 = vadd.f32 %v7432, %v7433
    %v7435 = vrot.slane %v7434, 1
    %v7436 = vadd.f32 %v7434, %v7435
    %v7453 = vsel %vm5472, %v7142, %v7121
    %v7454 = vsel %vm5474, %v7163, %v7453
    %v7455 = vsel %vm5476, %v7184, %v7454
    %v7456 = vsel %vm5478, %v7205, %v7455
    %v7457 = vsel %vm5480, %v7226, %v7456
    %v7458 = vsel %vm5482, %v7247, %v7457
    %v7459 = vsel %vm5484, %v7268, %v7458
    %v7460 = vsel %vm5472, %v7310, %v7289
    %v7461 = vsel %vm5474, %v7331, %v7460
    %v7462 = vsel %vm5476, %v7352, %v7461
    %v7463 = vsel %vm5478, %v7373, %v7462
    %v7464 = vsel %vm5480, %v7394, %v7463
    %v7465 = vsel %vm5482, %v7415, %v7464
    %v7466 = vsel %vm5484, %v7436, %v7465
    %7469 = vst [vmem:[#allocation5] sm:$0xff] %v7459
    %7470 = vst [vmem:[#allocation5 + $0x8] sm:$0xff] %v7466
    // Predicated region
    $region26: #{tpu_custom_call.1} parent=1 // pred_check
      _
    $region27: #{tpu_custom_call.1} parent=1 // pred_check_branch
      %7472 = sbr.rel (0) target = $region29
    $region28: #{tpu_custom_call.1} parent=1 // pred_region
      %s7474 = ssub.s32 256, 256
      %7475 = vsyncadd [#allocation4], %s7474
      %s7476 = sshll.u32 [#allocation5], 4
      %s7477 = int_to_ptr.vmem [resolvable:$true] %s7476
      %7482 = dma.vmem_to_hbm [thread:$0]  %s7477, 256, %s5, [#allocation4], 128, 128, 8
    $region29: #{tpu_custom_call.1} parent=1 // pred_fallthru
      _
    // Predicated region
    $region30: #{tpu_custom_call.1} parent=1 // pred_check
      _
    $region31: #{tpu_custom_call.1} parent=1 // pred_check_branch
      %7484 = sbr.rel (0) target = $region33
    $region32: #{tpu_custom_call.1} parent=1 // pred_region
      %s7486 = ssub.s32 256, 256
      %7487 = vsyncadd [#allocation7], %s7486
      %s7488 = sshll.u32 [#allocation6], 4
      %s7489 = int_to_ptr.vmem [resolvable:$true] %s7488
      %7494 = dma.vmem_to_hbm [thread:$0]  %s7489, 256, %s6, [#allocation7], 128, 128, 8
    $region33: #{tpu_custom_call.1} parent=1 // pred_fallthru
      _
    // Predicated region
    $region34: #{tpu_custom_call.1} parent=1 // pred_check
      _
    $region35: #{tpu_custom_call.1} parent=1 // pred_check_branch
      %7496 = sbr.rel (0) target = $region37
    $region36: #{tpu_custom_call.1} parent=1 // pred_region
      %7497 = dma.done [#allocation4], 256
    $region37: #{tpu_custom_call.1} parent=1 // pred_fallthru
      _
    // Predicated region
    $region38: #{tpu_custom_call.1} parent=1 // pred_check
      _
    $region39: #{tpu_custom_call.1} parent=1 // pred_check_branch
      %7499 = sbr.rel (0) target = $region41
    $region40: #{tpu_custom_call.1} parent=1 // pred_region
      %7500 = dma.done [#allocation7], 256
    $region41: #{tpu_custom_call.1} parent=1 // pred_fallthru
      _
    %7501 = vsyncpa [#allocation3], 1
    %7502 = vsyncpa [#allocation4], 1
    %7503 = vsyncpa [#allocation7], 1

</llo_original>
